<compile_context>
chip_gen: v6e
topology: v6e:2x2x1
jax: 0.10.0
libtpu: 0.0.40
codegen_flags: <defaults>
</compile_context>

<pallas_src>
import math
import functools

import jax
import jax.numpy as jnp
from jax import lax
from jax.experimental import pallas as pl
from jax.experimental.pallas import tpu as pltpu

NEG_INF = -1e9  # finite stand-in for the -inf key-padding mask (same softmax result)


# ---------------------------------------------------------------------------
# Kernel: one batch element per grid step; full encoder stack fused.
# ---------------------------------------------------------------------------
def encoder_kernel(ids_row_ref,   # VMEM (1, 1, S) int32
                   ids_col_ref,   # VMEM (1, S, 1) int32
                   table_ref,     # VMEM (V, E_pad) f32
                   pe_ref,        # VMEM (S, E_pad) f32
                   wqkv_ref, bqkv_ref, wo_ref, bo_ref,
                   g1_ref, beta1_ref, w1_ref, b1_ref, w2_ref, b2_ref,
                   g2_ref, beta2_ref,
                   o_ref,         # VMEM (1, S, E_pad) f32
                   *, nhead, pad_token, e_valid):
    S, E_pad = pe_ref.shape
    V = table_ref.shape[0]
    L = wqkv_ref.shape[0]
    hd_pad = E_pad // nhead
    f32, bf16 = jnp.float32, jnp.bfloat16

    # --- 1) token embedding as ONE one-hot matmul, PE add fused in -----------
    ids_col = ids_col_ref[0]                                           # (S, 1)
    onehot = (ids_col == lax.broadcasted_iota(jnp.int32, (S, V), 1)).astype(f32)
    x = jnp.dot(onehot, table_ref[...], preferred_element_type=f32) + pe_ref[...]

    # --- 2) key-padding additive bias, computed once: (1, 1, S) --------------
    ids_row = ids_row_ref[0]                                           # (1, S)
    key_bias = jnp.where(ids_row == pad_token, NEG_INF, 0.0).astype(f32)[None]

    # --- 3) lane-validity mask: LN statistics only over the real E features --
    valid = (lax.broadcasted_iota(jnp.int32, (1, E_pad), 1) < e_valid).astype(f32)
    inv_e = 1.0 / float(e_valid)

    def layer_norm(y, gamma, beta):
        mu = jnp.sum(y, axis=-1, keepdims=True) * inv_e      # padded lanes are 0
        d = (y - mu) * valid
        var = jnp.sum(d * d, axis=-1, keepdims=True) * inv_e
        # gamma/beta are zero on padded lanes -> padded lanes stay exactly 0
        return d * lax.rsqrt(var + 1e-5) * gamma + beta

    # --- 4) post-norm encoder layers (L=2: static unroll is fine) ------------
    for l in range(L):
        # fused QKV projection: single (S, E_pad) @ (E_pad, 3*E_pad) matmul
        qkv = jnp.dot(x.astype(bf16), wqkv_ref[l],
                      preferred_element_type=f32) + bqkv_ref[l]        # (S, 3E_pad)

        def split_heads(base, qkv=qkv):
            # static 128-aligned-free lane slices stacked on a leading head axis
            return jnp.stack(
                [qkv[:, base + h * hd_pad: base + (h + 1) * hd_pad]
                 for h in range(nhead)], axis=0).astype(bf16)          # (h, S, hd_pad)

        qh = split_heads(0)
        kh = split_heads(E_pad)
        vh = split_heads(2 * E_pad)

        # head-batched attention; 1/sqrt(hd) already folded into Wq/bq
        s = jnp.einsum('hqd,hkd->hqk', qh, kh,
                       preferred_element_type=f32) + key_bias          # (h, S, S)
        m = jnp.max(s, axis=-1, keepdims=True)
        p = jnp.exp(s - m)
        p = p / jnp.sum(p, axis=-1, keepdims=True)   # exact softmax (tiny tensor)

        ctx = jnp.einsum('hqk,hkd->hqd', p.astype(bf16), vh,
                         preferred_element_type=f32)                   # (h, S, hd_pad)
        # heads concatenated on the lane axis -> ONE full-width output projection
        ctx2 = jnp.concatenate([ctx[h] for h in range(nhead)], axis=-1)  # (S, E_pad)
        attn = jnp.dot(ctx2.astype(bf16), wo_ref[l],
                       preferred_element_type=f32) + bo_ref[l]

        # residual + LayerNorm 1
        y = layer_norm(x + attn, g1_ref[l], beta1_ref[l])

        # feed-forward (ReLU), bf16 MXU operands, f32 accumulation
        h1 = jnp.maximum(
            jnp.dot(y.astype(bf16), w1_ref[l], preferred_element_type=f32) + b1_ref[l],
            0.0)
        ff = jnp.dot(h1.astype(bf16), w2_ref[l], preferred_element_type=f32) + b2_ref[l]

        # residual + LayerNorm 2
        x = layer_norm(y + ff, g2_ref[l], beta2_ref[l])

    o_ref[0] = x


# ---------------------------------------------------------------------------
# Wrapper: lane-dense weight repacking (done once, outside the kernel)
# ---------------------------------------------------------------------------
def _round_up(x, m):
    return ((x + m - 1) // m) * m


def pack_params(layers, *, nhead, E, H, E_pad, H_pad):
    hd = E // nhead
    hd_pad = E_pad // nhead
    scale = 1.0 / math.sqrt(hd)
    f32, bf16 = jnp.float32, jnp.bfloat16

    def in_proj_w(w, scaled):                       # (E,E) -> (E_pad, E_pad)
        if scaled:
            w = w * scale                           # fold 1/sqrt(hd) into Wq
        wh = w.reshape(E, nhead, hd)
        wh = jnp.pad(wh, ((0, E_pad - E), (0, 0), (0, hd_pad - hd)))
        return wh.reshape(E_pad, E_pad)

    def in_proj_b(b, scaled):                       # (1,E) -> (1, E_pad)
        if scaled:
            b = b * scale
        bh = b.reshape(nhead, hd)
        bh = jnp.pad(bh, ((0, 0), (0, hd_pad - hd)))
        return bh.reshape(1, E_pad)

    acc = {k: [] for k in ("wqkv", "bqkv", "wo", "bo", "g1", "beta1",
                           "w1", "b1", "w2", "b2", "g2", "beta2")}
    for p in layers:
        acc["wqkv"].append(jnp.concatenate(
            [in_proj_w(p["wq"], True), in_proj_w(p["wk"], False),
             in_proj_w(p["wv"], False)], axis=1))                      # (E_pad, 3E_pad)
        acc["bqkv"].append(jnp.concatenate(
            [in_proj_b(p["bq"], True), in_proj_b(p["bk"], False),
             in_proj_b(p["bv"], False)], axis=1))                      # (1, 3E_pad)
        woh = jnp.pad(p["wo"].reshape(nhead, hd, E),
                      ((0, 0), (0, hd_pad - hd), (0, E_pad - E)))
        acc["wo"].append(woh.reshape(E_pad, E_pad))
        acc["bo"].append(jnp.pad(p["bo"], ((0, 0), (0, E_pad - E))))
        acc["g1"].append(jnp.pad(p["g1"], ((0, 0), (0, E_pad - E))))
        acc["beta1"].append(jnp.pad(p["beta1"], ((0, 0), (0, E_pad - E))))
        acc["w1"].append(jnp.pad(p["w1"], ((0, E_pad - E), (0, H_pad - H))))
        acc["b1"].append(jnp.pad(p["b1"], ((0, 0), (0, H_pad - H))))
        acc["w2"].append(jnp.pad(p["w2"], ((0, H_pad - H), (0, E_pad - E))))
        acc["b2"].append(jnp.pad(p["b2"], ((0, 0), (0, E_pad - E))))
        acc["g2"].append(jnp.pad(p["g2"], ((0, 0), (0, E_pad - E))))
        acc["beta2"].append(jnp.pad(p["beta2"], ((0, 0), (0, E_pad - E))))

    mxu = {"wqkv", "wo", "w1", "w2"}                # bf16 on MXU operands only
    return {k: jnp.stack(v).astype(bf16 if k in mxu else f32) for k, v in acc.items()}


def transformer_encoder_forward(src, table, pe, layers, *, nhead, pad_token):
    B, S = src.shape
    V, E = table.shape
    H = layers[0]["w1"].shape[1]
    L = len(layers)
    E_pad = _round_up(max(E, 128), 128)
    H_pad = _round_up(max(H, 128), 128)

    packed = pack_params(layers, nhead=nhead, E=E, H=H, E_pad=E_pad, H_pad=H_pad)
    table_p = jnp.pad(table.astype(jnp.float32), ((0, 0), (0, E_pad - E)))
    pe_p = jnp.pad(pe.astype(jnp.float32), ((0, 0), (0, E_pad - E)))
    ids_row = src.astype(jnp.int32).reshape(B, 1, S)   # keys-axis layout (pad mask)
    ids_col = src.astype(jnp.int32).reshape(B, S, 1)   # rows-axis layout (one-hot)

    kernel = functools.partial(encoder_kernel, nhead=nhead,
                               pad_token=int(pad_token), e_valid=E)

    const3 = lambda b: (0, 0, 0)    # weights: resident across the B grid
    grid_spec = pltpu.PrefetchScalarGridSpec(
        num_scalar_prefetch=0,
        grid=(B,),
        in_specs=[
            pl.BlockSpec((1, 1, S), lambda b: (b, 0, 0)),            # ids_row
            pl.BlockSpec((1, S, 1), lambda b: (b, 0, 0)),            # ids_col
            pl.BlockSpec((V, E_pad), lambda b: (0, 0)),              # table
            pl.BlockSpec((S, E_pad), lambda b: (0, 0)),              # pe
            pl.BlockSpec((L, E_pad, 3 * E_pad), const3),             # wqkv
            pl.BlockSpec((L, 1, 3 * E_pad), const3),                 # bqkv
            pl.BlockSpec((L, E_pad, E_pad), const3),                 # wo
            pl.BlockSpec((L, 1, E_pad), const3),                     # bo
            pl.BlockSpec((L, 1, E_pad), const3),                     # g1
            pl.BlockSpec((L, 1, E_pad), const3),                     # beta1
            pl.BlockSpec((L, E_pad, H_pad), const3),                 # w1
            pl.BlockSpec((L, 1, H_pad), const3),                     # b1
            pl.BlockSpec((L, H_pad, E_pad), const3),                 # w2
            pl.BlockSpec((L, 1, E_pad), const3),                     # b2
            pl.BlockSpec((L, 1, E_pad), const3),                     # g2
            pl.BlockSpec((L, 1, E_pad), const3),                     # beta2
        ],
        out_specs=pl.BlockSpec((1, S, E_pad), lambda b: (b, 0, 0)),
    )

    out = pl.pallas_call(
        kernel,
        out_shape=jax.ShapeDtypeStruct((B, S, E_pad), jnp.float32),
        grid_spec=grid_spec,
        compiler_params=pltpu.CompilerParams(
            dimension_semantics=("parallel",),        # use both TCs on v7x
            vmem_limit_bytes=32 * 1024 * 1024,        # headroom when shapes scale
        ),
    )(ids_row, ids_col, table_p, pe_p,
      packed["wqkv"], packed["bqkv"], packed["wo"], packed["bo"],
      packed["g1"], packed["beta1"], packed["w1"], packed["b1"],
      packed["w2"], packed["b2"], packed["g2"], packed["beta2"])

    return out[:, :, :E]    # drop the lane padding outside the kernel


# ---------------------------------------------------------------------------
# Deterministic parameter construction (synthetic; no checkpoint loading)
# ---------------------------------------------------------------------------
def init_params(key, vocab, E, H, n_layers):
    keys = jax.random.split(key, 1 + n_layers)
    table = jax.random.normal(keys[0], (vocab, E), jnp.float32) * 0.1
    layers = []
    for l in range(n_layers):
        ks = jax.random.split(keys[1 + l], 6)
        layers.append(dict(
            wq=jax.random.normal(ks[0], (E, E), jnp.float32) * 0.05,
            bq=jnp.zeros((1, E), jnp.float32),
            wk=jax.random.normal(ks[1], (E, E), jnp.float32) * 0.05,
            bk=jnp.zeros((1, E), jnp.float32),
            wv=jax.random.normal(ks[2], (E, E), jnp.float32) * 0.05,
            bv=jnp.zeros((1, E), jnp.float32),
            wo=jax.random.normal(ks[3], (E, E), jnp.float32) * 0.05,
            bo=jnp.zeros((1, E), jnp.float32),
            g1=jnp.ones((1, E), jnp.float32),
            beta1=jnp.zeros((1, E), jnp.float32),
            w1=jax.random.normal(ks[4], (E, H), jnp.float32) * 0.05,
            b1=jnp.zeros((1, H), jnp.float32),
            w2=jax.random.normal(ks[5], (H, E), jnp.float32) * 0.05,
            b2=jnp.zeros((1, E), jnp.float32),
            g2=jnp.ones((1, E), jnp.float32),
            beta2=jnp.zeros((1, E), jnp.float32),
        ))
    return table, layers


def sinusoidal_pe(S, E):
    pos = jnp.arange(S, dtype=jnp.float32)[:, None]
    div = jnp.exp(jnp.arange(0, E, 2, dtype=jnp.float32) * (-math.log(10000.0) / E))
    pe = jnp.zeros((S, E), jnp.float32)
    pe = pe.at[:, 0::2].set(jnp.sin(pos * div))
    pe = pe.at[:, 1::2].set(jnp.cos(pos * div))
    return pe


if __name__ == "__main__":
    # small shapes consistent with the module
    B, S = 2, 8                   # batch, seq (= max_length)
    VOCAB, E, H = 64, 32, 64      # vocab_dim, embedding_dim, hidden_size
    NHEAD, NLAYERS, PAD = 4, 2, 0

    key = jax.random.PRNGKey(0)
    k_tok, k_par = jax.random.split(key)

    # tokens in [1, VOCAB), with the last two positions padded
    src = jax.random.randint(k_tok, (B, S), 1, VOCAB, dtype=jnp.int32)
    src = src.at[:, -2:].set(PAD)

    table, layers = init_params(k_par, VOCAB, E, H, NLAYERS)
    pe = sinusoidal_pe(S, E)

    out = transformer_encoder_forward(src, table, pe, layers, nhead=NHEAD, pad_token=PAD)
    out = jax.block_until_ready(out)

    assert out.shape == (B, S, E)
    assert bool(jnp.all(jnp.isfinite(out)))
    print("KERNEL_OK")
</pallas_src>

<mosaic_0001>
module attributes {stable_mosaic.version = 11 : i64} {
  func.func @encoder_kernel(%arg0: i32, %arg1: memref<1x1x8xi32, #tpu.memory_space<vmem>>, %arg2: memref<1x8x1xi32, #tpu.memory_space<vmem>>, %arg3: memref<64x128xf32, #tpu.memory_space<vmem>>, %arg4: memref<8x128xf32, #tpu.memory_space<vmem>>, %arg5: memref<2x128x384xbf16, #tpu.memory_space<vmem>>, %arg6: memref<2x1x384xf32, #tpu.memory_space<vmem>>, %arg7: memref<2x128x128xbf16, #tpu.memory_space<vmem>>, %arg8: memref<2x1x128xf32, #tpu.memory_space<vmem>>, %arg9: memref<2x1x128xf32, #tpu.memory_space<vmem>>, %arg10: memref<2x1x128xf32, #tpu.memory_space<vmem>>, %arg11: memref<2x128x128xbf16, #tpu.memory_space<vmem>>, %arg12: memref<2x1x128xf32, #tpu.memory_space<vmem>>, %arg13: memref<2x128x128xbf16, #tpu.memory_space<vmem>>, %arg14: memref<2x1x128xf32, #tpu.memory_space<vmem>>, %arg15: memref<2x1x128xf32, #tpu.memory_space<vmem>>, %arg16: memref<2x1x128xf32, #tpu.memory_space<vmem>>, %arg17: memref<1x8x128xf32, #tpu.memory_space<vmem>>) attributes {dimension_semantics = [#tpu.dimension_semantics<parallel>], iteration_bounds = array<i64: 2>, scalar_prefetch = 0 : i64, scratch_operands = 0 : i64, tpu.core_type = #tpu.core_type<tc>, window_params = [{transform_indices = @transform_0, window_bounds = array<i64: 1, 1, 8>}, {transform_indices = @transform_1, window_bounds = array<i64: 1, 8, 1>}, {pipeline_mode = #tpu.pipeline_mode<synchronous>, transform_indices = @transform_2, window_bounds = array<i64: 64, 128>}, {pipeline_mode = #tpu.pipeline_mode<synchronous>, transform_indices = @transform_3, window_bounds = array<i64: 8, 128>}, {pipeline_mode = #tpu.pipeline_mode<synchronous>, transform_indices = @transform_4, window_bounds = array<i64: 2, 128, 384>}, {pipeline_mode = #tpu.pipeline_mode<synchronous>, transform_indices = @transform_5, window_bounds = array<i64: 2, 1, 384>}, {pipeline_mode = #tpu.pipeline_mode<synchronous>, transform_indices = @transform_6, window_bounds = array<i64: 2, 128, 128>}, {pipeline_mode = #tpu.pipeline_mode<synchronous>, transform_indices = @transform_7, window_bounds = array<i64: 2, 1, 128>}, {pipeline_mode = #tpu.pipeline_mode<synchronous>, transform_indices = @transform_8, window_bounds = array<i64: 2, 1, 128>}, {pipeline_mode = #tpu.pipeline_mode<synchronous>, transform_indices = @transform_9, window_bounds = array<i64: 2, 1, 128>}, {pipeline_mode = #tpu.pipeline_mode<synchronous>, transform_indices = @transform_10, window_bounds = array<i64: 2, 128, 128>}, {pipeline_mode = #tpu.pipeline_mode<synchronous>, transform_indices = @transform_11, window_bounds = array<i64: 2, 1, 128>}, {pipeline_mode = #tpu.pipeline_mode<synchronous>, transform_indices = @transform_12, window_bounds = array<i64: 2, 128, 128>}, {pipeline_mode = #tpu.pipeline_mode<synchronous>, transform_indices = @transform_13, window_bounds = array<i64: 2, 1, 128>}, {pipeline_mode = #tpu.pipeline_mode<synchronous>, transform_indices = @transform_14, window_bounds = array<i64: 2, 1, 128>}, {pipeline_mode = #tpu.pipeline_mode<synchronous>, transform_indices = @transform_15, window_bounds = array<i64: 2, 1, 128>}, {transform_indices = @transform_16, window_bounds = array<i64: 1, 8, 128>}]} {
    %c0 = arith.constant 0 : index
    %c0_0 = arith.constant 0 : index
    %c0_1 = arith.constant 0 : index
    %0 = vector.load %arg2[%c0, %c0_0, %c0_1] : memref<1x8x1xi32, #tpu.memory_space<vmem>>, vector<1x8x1xi32>
    %1 = vector.shape_cast %0 : vector<1x8x1xi32> to vector<8x1xi32>
    %2 = tpu.iota {dimensions = array<i32: 1>} : vector<8x64xi32>
    %3 = vector.broadcast %1 : vector<8x1xi32> to vector<8x64xi32>
    %4 = arith.cmpi eq, %3, %2 : vector<8x64xi32>
    %5 = arith.extui %4 : vector<8x64xi1> to vector<8x64xi32>
    %6 = arith.sitofp %5 : vector<8x64xi32> to vector<8x64xf32>
    %c0_2 = arith.constant 0 : index
    %c0_3 = arith.constant 0 : index
    %7 = vector.load %arg3[%c0_2, %c0_3] : memref<64x128xf32, #tpu.memory_space<vmem>>, vector<64x128xf32>
    %cst = arith.constant dense<0.000000e+00> : vector<8x128xf32>
    %8 = tpu.matmul %6, %7, %cst {dimension_numbers = #tpu.dot_dimension_numbers<[1], [0], [0], [1], [0, 0, 1, 1], [], []>} : vector<8x64xf32>, vector<64x128xf32>, vector<8x128xf32> -> vector<8x128xf32>
    %c0_4 = arith.constant 0 : index
    %c0_5 = arith.constant 0 : index
    %9 = vector.load %arg4[%c0_4, %c0_5] : memref<8x128xf32, #tpu.memory_space<vmem>>, vector<8x128xf32>
    %10 = arith.addf %8, %9 : vector<8x128xf32>
    %c0_6 = arith.constant 0 : index
    %c0_7 = arith.constant 0 : index
    %c0_8 = arith.constant 0 : index
    %11 = vector.load %arg1[%c0_6, %c0_7, %c0_8] : memref<1x1x8xi32, #tpu.memory_space<vmem>>, vector<1x1x8xi32>
    %12 = vector.shape_cast %11 : vector<1x1x8xi32> to vector<1x8xi32>
    %c0_i32 = arith.constant 0 : i32
    %13 = vector.broadcast %c0_i32 : i32 to vector<1x8xi32>
    %14 = arith.cmpi eq, %12, %13 : vector<1x8xi32>
    %cst_9 = arith.constant -1.000000e+09 : f32
    %cst_10 = arith.constant 0.000000e+00 : f32
    %15 = vector.broadcast %cst_9 : f32 to vector<1x8xf32>
    %16 = vector.broadcast %cst_10 : f32 to vector<1x8xf32>
    %17 = arith.select %14, %15, %16 : vector<1x8xi1>, vector<1x8xf32>
    %18 = vector.shape_cast %17 : vector<1x8xf32> to vector<1x1x8xf32>
    %19 = tpu.iota {dimensions = array<i32: 1>} : vector<1x128xi32>
    %c32_i32 = arith.constant 32 : i32
    %20 = vector.broadcast %c32_i32 : i32 to vector<1x128xi32>
    %21 = arith.cmpi slt, %19, %20 : vector<1x128xi32>
    %22 = arith.extui %21 : vector<1x128xi1> to vector<1x128xi32>
    %23 = arith.sitofp %22 : vector<1x128xi32> to vector<1x128xf32>
    %24 = arith.truncf %10 : vector<8x128xf32> to vector<8x128xbf16>
    %c0_11 = arith.constant 0 : index
    %c0_12 = arith.constant 0 : index
    %c0_13 = arith.constant 0 : index
    %25 = vector.load %arg5[%c0_11, %c0_12, %c0_13] : memref<2x128x384xbf16, #tpu.memory_space<vmem>>, vector<1x128x384xbf16>
    %26 = vector.shape_cast %25 : vector<1x128x384xbf16> to vector<128x384xbf16>
    %cst_14 = arith.constant dense<0.000000e+00> : vector<8x384xf32>
    %27 = tpu.matmul %24, %26, %cst_14 {dimension_numbers = #tpu.dot_dimension_numbers<[1], [0], [0], [1], [0, 0, 1, 1], [], []>} : vector<8x128xbf16>, vector<128x384xbf16>, vector<8x384xf32> -> vector<8x384xf32>
    %c0_15 = arith.constant 0 : index
    %c0_16 = arith.constant 0 : index
    %c0_17 = arith.constant 0 : index
    %28 = vector.load %arg6[%c0_15, %c0_16, %c0_17] : memref<2x1x384xf32, #tpu.memory_space<vmem>>, vector<1x1x384xf32>
    %29 = vector.shape_cast %28 : vector<1x1x384xf32> to vector<1x384xf32>
    %30 = vector.broadcast %29 : vector<1x384xf32> to vector<8x384xf32>
    %31 = arith.addf %27, %30 : vector<8x384xf32>
    %32 = vector.extract_strided_slice %31 {offsets = [0, 0], sizes = [8, 32], strides = [1, 1]} : vector<8x384xf32> to vector<8x32xf32>
    %33 = vector.extract_strided_slice %31 {offsets = [0, 32], sizes = [8, 32], strides = [1, 1]} : vector<8x384xf32> to vector<8x32xf32>
    %34 = vector.extract_strided_slice %31 {offsets = [0, 64], sizes = [8, 32], strides = [1, 1]} : vector<8x384xf32> to vector<8x32xf32>
    %35 = vector.extract_strided_slice %31 {offsets = [0, 96], sizes = [8, 32], strides = [1, 1]} : vector<8x384xf32> to vector<8x32xf32>
    %36 = vector.shape_cast %32 : vector<8x32xf32> to vector<1x8x32xf32>
    %37 = vector.shape_cast %33 : vector<8x32xf32> to vector<1x8x32xf32>
    %38 = vector.shape_cast %34 : vector<8x32xf32> to vector<1x8x32xf32>
    %39 = vector.shape_cast %35 : vector<8x32xf32> to vector<1x8x32xf32>
    %40 = tpu.concatenate %36, %37, %38, %39 in 0 : vector<1x8x32xf32>, vector<1x8x32xf32>, vector<1x8x32xf32>, vector<1x8x32xf32> -> vector<4x8x32xf32>
    %41 = arith.truncf %40 : vector<4x8x32xf32> to vector<4x8x32xbf16>
    %42 = vector.extract_strided_slice %31 {offsets = [0, 128], sizes = [8, 32], strides = [1, 1]} : vector<8x384xf32> to vector<8x32xf32>
    %43 = vector.extract_strided_slice %31 {offsets = [0, 160], sizes = [8, 32], strides = [1, 1]} : vector<8x384xf32> to vector<8x32xf32>
    %44 = vector.extract_strided_slice %31 {offsets = [0, 192], sizes = [8, 32], strides = [1, 1]} : vector<8x384xf32> to vector<8x32xf32>
    %45 = vector.extract_strided_slice %31 {offsets = [0, 224], sizes = [8, 32], strides = [1, 1]} : vector<8x384xf32> to vector<8x32xf32>
    %46 = vector.shape_cast %42 : vector<8x32xf32> to vector<1x8x32xf32>
    %47 = vector.shape_cast %43 : vector<8x32xf32> to vector<1x8x32xf32>
    %48 = vector.shape_cast %44 : vector<8x32xf32> to vector<1x8x32xf32>
    %49 = vector.shape_cast %45 : vector<8x32xf32> to vector<1x8x32xf32>
    %50 = tpu.concatenate %46, %47, %48, %49 in 0 : vector<1x8x32xf32>, vector<1x8x32xf32>, vector<1x8x32xf32>, vector<1x8x32xf32> -> vector<4x8x32xf32>
    %51 = arith.truncf %50 : vector<4x8x32xf32> to vector<4x8x32xbf16>
    %52 = vector.extract_strided_slice %31 {offsets = [0, 256], sizes = [8, 32], strides = [1, 1]} : vector<8x384xf32> to vector<8x32xf32>
    %53 = vector.extract_strided_slice %31 {offsets = [0, 288], sizes = [8, 32], strides = [1, 1]} : vector<8x384xf32> to vector<8x32xf32>
    %54 = vector.extract_strided_slice %31 {offsets = [0, 320], sizes = [8, 32], strides = [1, 1]} : vector<8x384xf32> to vector<8x32xf32>
    %55 = vector.extract_strided_slice %31 {offsets = [0, 352], sizes = [8, 32], strides = [1, 1]} : vector<8x384xf32> to vector<8x32xf32>
    %56 = vector.shape_cast %52 : vector<8x32xf32> to vector<1x8x32xf32>
    %57 = vector.shape_cast %53 : vector<8x32xf32> to vector<1x8x32xf32>
    %58 = vector.shape_cast %54 : vector<8x32xf32> to vector<1x8x32xf32>
    %59 = vector.shape_cast %55 : vector<8x32xf32> to vector<1x8x32xf32>
    %60 = tpu.concatenate %56, %57, %58, %59 in 0 : vector<1x8x32xf32>, vector<1x8x32xf32>, vector<1x8x32xf32>, vector<1x8x32xf32> -> vector<4x8x32xf32>
    %61 = arith.truncf %60 : vector<4x8x32xf32> to vector<4x8x32xbf16>
    "tpu.trace_start"() <{level = 10 : i32, message = "hqd,hkd->hqk"}> : () -> ()
    %cst_18 = arith.constant dense<0.000000e+00> : vector<4x8x8xf32>
    %62 = tpu.matmul %41, %51, %cst_18 {dimension_numbers = #tpu.dot_dimension_numbers<[2], [2], [1], [1], [0, 0, 0, 1, 1, 1], [0], [0]>} : vector<4x8x32xbf16>, vector<4x8x32xbf16>, vector<4x8x8xf32> -> vector<4x8x8xf32>
    "tpu.trace_stop"() : () -> ()
    %63 = vector.broadcast %18 : vector<1x1x8xf32> to vector<4x8x8xf32>
    %64 = arith.addf %62, %63 : vector<4x8x8xf32>
    %cst_19 = arith.constant dense<0xFF800000> : vector<4x8xf32>
    %65 = vector.multi_reduction <maximumf>, %64, %cst_19 [2] : vector<4x8x8xf32> to vector<4x8xf32>
    %66 = vector.shape_cast %65 : vector<4x8xf32> to vector<4x8x1xf32>
    %67 = vector.broadcast %66 : vector<4x8x1xf32> to vector<4x8x8xf32>
    %68 = arith.subf %64, %67 : vector<4x8x8xf32>
    %69 = math.exp %68 : vector<4x8x8xf32>
    %cst_20 = arith.constant dense<0.000000e+00> : vector<4x8xf32>
    %70 = vector.multi_reduction <add>, %69, %cst_20 [2] : vector<4x8x8xf32> to vector<4x8xf32>
    %71 = vector.shape_cast %70 : vector<4x8xf32> to vector<4x8x1xf32>
    %72 = vector.broadcast %71 : vector<4x8x1xf32> to vector<4x8x8xf32>
    %73 = arith.divf %69, %72 : vector<4x8x8xf32>
    %74 = arith.truncf %73 : vector<4x8x8xf32> to vector<4x8x8xbf16>
    "tpu.trace_start"() <{level = 10 : i32, message = "hqk,hkd->hqd"}> : () -> ()
    %cst_21 = arith.constant dense<0.000000e+00> : vector<4x8x32xf32>
    %75 = tpu.matmul %74, %61, %cst_21 {dimension_numbers = #tpu.dot_dimension_numbers<[2], [1], [1], [2], [0, 0, 0, 1, 1, 2], [0], [0]>} : vector<4x8x8xbf16>, vector<4x8x32xbf16>, vector<4x8x32xf32> -> vector<4x8x32xf32>
    "tpu.trace_stop"() : () -> ()
    %76 = vector.extract_strided_slice %75 {offsets = [0, 0, 0], sizes = [1, 8, 32], strides = [1, 1, 1]} : vector<4x8x32xf32> to vector<1x8x32xf32>
    %77 = vector.shape_cast %76 : vector<1x8x32xf32> to vector<8x32xf32>
    %78 = vector.extract_strided_slice %75 {offsets = [1, 0, 0], sizes = [1, 8, 32], strides = [1, 1, 1]} : vector<4x8x32xf32> to vector<1x8x32xf32>
    %79 = vector.shape_cast %78 : vector<1x8x32xf32> to vector<8x32xf32>
    %80 = vector.extract_strided_slice %75 {offsets = [2, 0, 0], sizes = [1, 8, 32], strides = [1, 1, 1]} : vector<4x8x32xf32> to vector<1x8x32xf32>
    %81 = vector.shape_cast %80 : vector<1x8x32xf32> to vector<8x32xf32>
    %82 = vector.extract_strided_slice %75 {offsets = [3, 0, 0], sizes = [1, 8, 32], strides = [1, 1, 1]} : vector<4x8x32xf32> to vector<1x8x32xf32>
    %83 = vector.shape_cast %82 : vector<1x8x32xf32> to vector<8x32xf32>
    %84 = tpu.concatenate %77, %79, %81, %83 in 1 : vector<8x32xf32>, vector<8x32xf32>, vector<8x32xf32>, vector<8x32xf32> -> vector<8x128xf32>
    %85 = arith.truncf %84 : vector<8x128xf32> to vector<8x128xbf16>
    %c0_22 = arith.constant 0 : index
    %c0_23 = arith.constant 0 : index
    %c0_24 = arith.constant 0 : index
    %86 = vector.load %arg7[%c0_22, %c0_23, %c0_24] : memref<2x128x128xbf16, #tpu.memory_space<vmem>>, vector<1x128x128xbf16>
    %87 = vector.shape_cast %86 : vector<1x128x128xbf16> to vector<128x128xbf16>
    %cst_25 = arith.constant dense<0.000000e+00> : vector<8x128xf32>
    %88 = tpu.matmul %85, %87, %cst_25 {dimension_numbers = #tpu.dot_dimension_numbers<[1], [0], [0], [1], [0, 0, 1, 1], [], []>} : vector<8x128xbf16>, vector<128x128xbf16>, vector<8x128xf32> -> vector<8x128xf32>
    %c0_26 = arith.constant 0 : index
    %c0_27 = arith.constant 0 : index
    %c0_28 = arith.constant 0 : index
    %89 = vector.load %arg8[%c0_26, %c0_27, %c0_28] : memref<2x1x128xf32, #tpu.memory_space<vmem>>, vector<1x1x128xf32>
    %90 = vector.shape_cast %89 : vector<1x1x128xf32> to vector<1x128xf32>
    %91 = vector.broadcast %90 : vector<1x128xf32> to vector<8x128xf32>
    %92 = arith.addf %88, %91 : vector<8x128xf32>
    %93 = arith.addf %10, %92 : vector<8x128xf32>
    %c0_29 = arith.constant 0 : index
    %c0_30 = arith.constant 0 : index
    %c0_31 = arith.constant 0 : index
    %94 = vector.load %arg9[%c0_29, %c0_30, %c0_31] : memref<2x1x128xf32, #tpu.memory_space<vmem>>, vector<1x1x128xf32>
    %95 = vector.shape_cast %94 : vector<1x1x128xf32> to vector<1x128xf32>
    %c0_32 = arith.constant 0 : index
    %c0_33 = arith.constant 0 : index
    %c0_34 = arith.constant 0 : index
    %96 = vector.load %arg10[%c0_32, %c0_33, %c0_34] : memref<2x1x128xf32, #tpu.memory_space<vmem>>, vector<1x1x128xf32>
    %97 = vector.shape_cast %96 : vector<1x1x128xf32> to vector<1x128xf32>
    %cst_35 = arith.constant dense<0.000000e+00> : vector<8xf32>
    %98 = vector.multi_reduction <add>, %93, %cst_35 [1] : vector<8x128xf32> to vector<8xf32>
    %99 = vector.shape_cast %98 : vector<8xf32> to vector<8x1xf32>
    %cst_36 = arith.constant 3.125000e-02 : f32
    %100 = vector.broadcast %cst_36 : f32 to vector<8x1xf32>
    %101 = arith.mulf %99, %100 : vector<8x1xf32>
    %102 = vector.broadcast %101 : vector<8x1xf32> to vector<8x128xf32>
    %103 = arith.subf %93, %102 : vector<8x128xf32>
    %104 = vector.broadcast %23 : vector<1x128xf32> to vector<8x128xf32>
    %105 = arith.mulf %103, %104 : vector<8x128xf32>
    %106 = arith.mulf %105, %105 : vector<8x128xf32>
    %cst_37 = arith.constant dense<0.000000e+00> : vector<8xf32>
    %107 = vector.multi_reduction <add>, %106, %cst_37 [1] : vector<8x128xf32> to vector<8xf32>
    %108 = vector.shape_cast %107 : vector<8xf32> to vector<8x1xf32>
    %cst_38 = arith.constant 3.125000e-02 : f32
    %109 = vector.broadcast %cst_38 : f32 to vector<8x1xf32>
    %110 = arith.mulf %108, %109 : vector<8x1xf32>
    %cst_39 = arith.constant 9.99999974E-6 : f32
    %111 = vector.broadcast %cst_39 : f32 to vector<8x1xf32>
    %112 = arith.addf %110, %111 : vector<8x1xf32>
    %113 = math.rsqrt %112 : vector<8x1xf32>
    %114 = vector.broadcast %113 : vector<8x1xf32> to vector<8x128xf32>
    %115 = arith.mulf %105, %114 : vector<8x128xf32>
    %116 = vector.broadcast %95 : vector<1x128xf32> to vector<8x128xf32>
    %117 = arith.mulf %115, %116 : vector<8x128xf32>
    %118 = vector.broadcast %97 : vector<1x128xf32> to vector<8x128xf32>
    %119 = arith.addf %117, %118 : vector<8x128xf32>
    %120 = arith.truncf %119 : vector<8x128xf32> to vector<8x128xbf16>
    %c0_40 = arith.constant 0 : index
    %c0_41 = arith.constant 0 : index
    %c0_42 = arith.constant 0 : index
    %121 = vector.load %arg11[%c0_40, %c0_41, %c0_42] : memref<2x128x128xbf16, #tpu.memory_space<vmem>>, vector<1x128x128xbf16>
    %122 = vector.shape_cast %121 : vector<1x128x128xbf16> to vector<128x128xbf16>
    %cst_43 = arith.constant dense<0.000000e+00> : vector<8x128xf32>
    %123 = tpu.matmul %120, %122, %cst_43 {dimension_numbers = #tpu.dot_dimension_numbers<[1], [0], [0], [1], [0, 0, 1, 1], [], []>} : vector<8x128xbf16>, vector<128x128xbf16>, vector<8x128xf32> -> vector<8x128xf32>
    %c0_44 = arith.constant 0 : index
    %c0_45 = arith.constant 0 : index
    %c0_46 = arith.constant 0 : index
    %124 = vector.load %arg12[%c0_44, %c0_45, %c0_46] : memref<2x1x128xf32, #tpu.memory_space<vmem>>, vector<1x1x128xf32>
    %125 = vector.shape_cast %124 : vector<1x1x128xf32> to vector<1x128xf32>
    %126 = vector.broadcast %125 : vector<1x128xf32> to vector<8x128xf32>
    %127 = arith.addf %123, %126 : vector<8x128xf32>
    %cst_47 = arith.constant 0.000000e+00 : f32
    %128 = vector.broadcast %cst_47 : f32 to vector<8x128xf32>
    %129 = arith.maximumf %127, %128 : vector<8x128xf32>
    %130 = arith.truncf %129 : vector<8x128xf32> to vector<8x128xbf16>
    %c0_48 = arith.constant 0 : index
    %c0_49 = arith.constant 0 : index
    %c0_50 = arith.constant 0 : index
    %131 = vector.load %arg13[%c0_48, %c0_49, %c0_50] : memref<2x128x128xbf16, #tpu.memory_space<vmem>>, vector<1x128x128xbf16>
    %132 = vector.shape_cast %131 : vector<1x128x128xbf16> to vector<128x128xbf16>
    %cst_51 = arith.constant dense<0.000000e+00> : vector<8x128xf32>
    %133 = tpu.matmul %130, %132, %cst_51 {dimension_numbers = #tpu.dot_dimension_numbers<[1], [0], [0], [1], [0, 0, 1, 1], [], []>} : vector<8x128xbf16>, vector<128x128xbf16>, vector<8x128xf32> -> vector<8x128xf32>
    %c0_52 = arith.constant 0 : index
    %c0_53 = arith.constant 0 : index
    %c0_54 = arith.constant 0 : index
    %134 = vector.load %arg14[%c0_52, %c0_53, %c0_54] : memref<2x1x128xf32, #tpu.memory_space<vmem>>, vector<1x1x128xf32>
    %135 = vector.shape_cast %134 : vector<1x1x128xf32> to vector<1x128xf32>
    %136 = vector.broadcast %135 : vector<1x128xf32> to vector<8x128xf32>
    %137 = arith.addf %133, %136 : vector<8x128xf32>
    %138 = arith.addf %119, %137 : vector<8x128xf32>
    %c0_55 = arith.constant 0 : index
    %c0_56 = arith.constant 0 : index
    %c0_57 = arith.constant 0 : index
    %139 = vector.load %arg15[%c0_55, %c0_56, %c0_57] : memref<2x1x128xf32, #tpu.memory_space<vmem>>, vector<1x1x128xf32>
    %140 = vector.shape_cast %139 : vector<1x1x128xf32> to vector<1x128xf32>
    %c0_58 = arith.constant 0 : index
    %c0_59 = arith.constant 0 : index
    %c0_60 = arith.constant 0 : index
    %141 = vector.load %arg16[%c0_58, %c0_59, %c0_60] : memref<2x1x128xf32, #tpu.memory_space<vmem>>, vector<1x1x128xf32>
    %142 = vector.shape_cast %141 : vector<1x1x128xf32> to vector<1x128xf32>
    %cst_61 = arith.constant dense<0.000000e+00> : vector<8xf32>
    %143 = vector.multi_reduction <add>, %138, %cst_61 [1] : vector<8x128xf32> to vector<8xf32>
    %144 = vector.shape_cast %143 : vector<8xf32> to vector<8x1xf32>
    %cst_62 = arith.constant 3.125000e-02 : f32
    %145 = vector.broadcast %cst_62 : f32 to vector<8x1xf32>
    %146 = arith.mulf %144, %145 : vector<8x1xf32>
    %147 = vector.broadcast %146 : vector<8x1xf32> to vector<8x128xf32>
    %148 = arith.subf %138, %147 : vector<8x128xf32>
    %149 = vector.broadcast %23 : vector<1x128xf32> to vector<8x128xf32>
    %150 = arith.mulf %148, %149 : vector<8x128xf32>
    %151 = arith.mulf %150, %150 : vector<8x128xf32>
    %cst_63 = arith.constant dense<0.000000e+00> : vector<8xf32>
    %152 = vector.multi_reduction <add>, %151, %cst_63 [1] : vector<8x128xf32> to vector<8xf32>
    %153 = vector.shape_cast %152 : vector<8xf32> to vector<8x1xf32>
    %cst_64 = arith.constant 3.125000e-02 : f32
    %154 = vector.broadcast %cst_64 : f32 to vector<8x1xf32>
    %155 = arith.mulf %153, %154 : vector<8x1xf32>
    %cst_65 = arith.constant 9.99999974E-6 : f32
    %156 = vector.broadcast %cst_65 : f32 to vector<8x1xf32>
    %157 = arith.addf %155, %156 : vector<8x1xf32>
    %158 = math.rsqrt %157 : vector<8x1xf32>
    %159 = vector.broadcast %158 : vector<8x1xf32> to vector<8x128xf32>
    %160 = arith.mulf %150, %159 : vector<8x128xf32>
    %161 = vector.broadcast %140 : vector<1x128xf32> to vector<8x128xf32>
    %162 = arith.mulf %160, %161 : vector<8x128xf32>
    %163 = vector.broadcast %142 : vector<1x128xf32> to vector<8x128xf32>
    %164 = arith.addf %162, %163 : vector<8x128xf32>
    %165 = arith.truncf %164 : vector<8x128xf32> to vector<8x128xbf16>
    %c1 = arith.constant 1 : index
    %c0_66 = arith.constant 0 : index
    %c0_67 = arith.constant 0 : index
    %166 = vector.load %arg5[%c1, %c0_66, %c0_67] : memref<2x128x384xbf16, #tpu.memory_space<vmem>>, vector<1x128x384xbf16>
    %167 = vector.shape_cast %166 : vector<1x128x384xbf16> to vector<128x384xbf16>
    %cst_68 = arith.constant dense<0.000000e+00> : vector<8x384xf32>
    %168 = tpu.matmul %165, %167, %cst_68 {dimension_numbers = #tpu.dot_dimension_numbers<[1], [0], [0], [1], [0, 0, 1, 1], [], []>} : vector<8x128xbf16>, vector<128x384xbf16>, vector<8x384xf32> -> vector<8x384xf32>
    %c1_69 = arith.constant 1 : index
    %c0_70 = arith.constant 0 : index
    %c0_71 = arith.constant 0 : index
    %169 = vector.load %arg6[%c1_69, %c0_70, %c0_71] : memref<2x1x384xf32, #tpu.memory_space<vmem>>, vector<1x1x384xf32>
    %170 = vector.shape_cast %169 : vector<1x1x384xf32> to vector<1x384xf32>
    %171 = vector.broadcast %170 : vector<1x384xf32> to vector<8x384xf32>
    %172 = arith.addf %168, %171 : vector<8x384xf32>
    %173 = vector.extract_strided_slice %172 {offsets = [0, 0], sizes = [8, 32], strides = [1, 1]} : vector<8x384xf32> to vector<8x32xf32>
    %174 = vector.extract_strided_slice %172 {offsets = [0, 32], sizes = [8, 32], strides = [1, 1]} : vector<8x384xf32> to vector<8x32xf32>
    %175 = vector.extract_strided_slice %172 {offsets = [0, 64], sizes = [8, 32], strides = [1, 1]} : vector<8x384xf32> to vector<8x32xf32>
    %176 = vector.extract_strided_slice %172 {offsets = [0, 96], sizes = [8, 32], strides = [1, 1]} : vector<8x384xf32> to vector<8x32xf32>
    %177 = vector.shape_cast %173 : vector<8x32xf32> to vector<1x8x32xf32>
    %178 = vector.shape_cast %174 : vector<8x32xf32> to vector<1x8x32xf32>
    %179 = vector.shape_cast %175 : vector<8x32xf32> to vector<1x8x32xf32>
    %180 = vector.shape_cast %176 : vector<8x32xf32> to vector<1x8x32xf32>
    %181 = tpu.concatenate %177, %178, %179, %180 in 0 : vector<1x8x32xf32>, vector<1x8x32xf32>, vector<1x8x32xf32>, vector<1x8x32xf32> -> vector<4x8x32xf32>
    %182 = arith.truncf %181 : vector<4x8x32xf32> to vector<4x8x32xbf16>
    %183 = vector.extract_strided_slice %172 {offsets = [0, 128], sizes = [8, 32], strides = [1, 1]} : vector<8x384xf32> to vector<8x32xf32>
    %184 = vector.extract_strided_slice %172 {offsets = [0, 160], sizes = [8, 32], strides = [1, 1]} : vector<8x384xf32> to vector<8x32xf32>
    %185 = vector.extract_strided_slice %172 {offsets = [0, 192], sizes = [8, 32], strides = [1, 1]} : vector<8x384xf32> to vector<8x32xf32>
    %186 = vector.extract_strided_slice %172 {offsets = [0, 224], sizes = [8, 32], strides = [1, 1]} : vector<8x384xf32> to vector<8x32xf32>
    %187 = vector.shape_cast %183 : vector<8x32xf32> to vector<1x8x32xf32>
    %188 = vector.shape_cast %184 : vector<8x32xf32> to vector<1x8x32xf32>
    %189 = vector.shape_cast %185 : vector<8x32xf32> to vector<1x8x32xf32>
    %190 = vector.shape_cast %186 : vector<8x32xf32> to vector<1x8x32xf32>
    %191 = tpu.concatenate %187, %188, %189, %190 in 0 : vector<1x8x32xf32>, vector<1x8x32xf32>, vector<1x8x32xf32>, vector<1x8x32xf32> -> vector<4x8x32xf32>
    %192 = arith.truncf %191 : vector<4x8x32xf32> to vector<4x8x32xbf16>
    %193 = vector.extract_strided_slice %172 {offsets = [0, 256], sizes = [8, 32], strides = [1, 1]} : vector<8x384xf32> to vector<8x32xf32>
    %194 = vector.extract_strided_slice %172 {offsets = [0, 288], sizes = [8, 32], strides = [1, 1]} : vector<8x384xf32> to vector<8x32xf32>
    %195 = vector.extract_strided_slice %172 {offsets = [0, 320], sizes = [8, 32], strides = [1, 1]} : vector<8x384xf32> to vector<8x32xf32>
    %196 = vector.extract_strided_slice %172 {offsets = [0, 352], sizes = [8, 32], strides = [1, 1]} : vector<8x384xf32> to vector<8x32xf32>
    %197 = vector.shape_cast %193 : vector<8x32xf32> to vector<1x8x32xf32>
    %198 = vector.shape_cast %194 : vector<8x32xf32> to vector<1x8x32xf32>
    %199 = vector.shape_cast %195 : vector<8x32xf32> to vector<1x8x32xf32>
    %200 = vector.shape_cast %196 : vector<8x32xf32> to vector<1x8x32xf32>
    %201 = tpu.concatenate %197, %198, %199, %200 in 0 : vector<1x8x32xf32>, vector<1x8x32xf32>, vector<1x8x32xf32>, vector<1x8x32xf32> -> vector<4x8x32xf32>
    %202 = arith.truncf %201 : vector<4x8x32xf32> to vector<4x8x32xbf16>
    "tpu.trace_start"() <{level = 10 : i32, message = "hqd,hkd->hqk"}> : () -> ()
    %cst_72 = arith.constant dense<0.000000e+00> : vector<4x8x8xf32>
    %203 = tpu.matmul %182, %192, %cst_72 {dimension_numbers = #tpu.dot_dimension_numbers<[2], [2], [1], [1], [0, 0, 0, 1, 1, 1], [0], [0]>} : vector<4x8x32xbf16>, vector<4x8x32xbf16>, vector<4x8x8xf32> -> vector<4x8x8xf32>
    "tpu.trace_stop"() : () -> ()
    %204 = vector.broadcast %18 : vector<1x1x8xf32> to vector<4x8x8xf32>
    %205 = arith.addf %203, %204 : vector<4x8x8xf32>
    %cst_73 = arith.constant dense<0xFF800000> : vector<4x8xf32>
    %206 = vector.multi_reduction <maximumf>, %205, %cst_73 [2] : vector<4x8x8xf32> to vector<4x8xf32>
    %207 = vector.shape_cast %206 : vector<4x8xf32> to vector<4x8x1xf32>
    %208 = vector.broadcast %207 : vector<4x8x1xf32> to vector<4x8x8xf32>
    %209 = arith.subf %205, %208 : vector<4x8x8xf32>
    %210 = math.exp %209 : vector<4x8x8xf32>
    %cst_74 = arith.constant dense<0.000000e+00> : vector<4x8xf32>
    %211 = vector.multi_reduction <add>, %210, %cst_74 [2] : vector<4x8x8xf32> to vector<4x8xf32>
    %212 = vector.shape_cast %211 : vector<4x8xf32> to vector<4x8x1xf32>
    %213 = vector.broadcast %212 : vector<4x8x1xf32> to vector<4x8x8xf32>
    %214 = arith.divf %210, %213 : vector<4x8x8xf32>
    %215 = arith.truncf %214 : vector<4x8x8xf32> to vector<4x8x8xbf16>
    "tpu.trace_start"() <{level = 10 : i32, message = "hqk,hkd->hqd"}> : () -> ()
    %cst_75 = arith.constant dense<0.000000e+00> : vector<4x8x32xf32>
    %216 = tpu.matmul %215, %202, %cst_75 {dimension_numbers = #tpu.dot_dimension_numbers<[2], [1], [1], [2], [0, 0, 0, 1, 1, 2], [0], [0]>} : vector<4x8x8xbf16>, vector<4x8x32xbf16>, vector<4x8x32xf32> -> vector<4x8x32xf32>
    "tpu.trace_stop"() : () -> ()
    %217 = vector.extract_strided_slice %216 {offsets = [0, 0, 0], sizes = [1, 8, 32], strides = [1, 1, 1]} : vector<4x8x32xf32> to vector<1x8x32xf32>
    %218 = vector.shape_cast %217 : vector<1x8x32xf32> to vector<8x32xf32>
    %219 = vector.extract_strided_slice %216 {offsets = [1, 0, 0], sizes = [1, 8, 32], strides = [1, 1, 1]} : vector<4x8x32xf32> to vector<1x8x32xf32>
    %220 = vector.shape_cast %219 : vector<1x8x32xf32> to vector<8x32xf32>
    %221 = vector.extract_strided_slice %216 {offsets = [2, 0, 0], sizes = [1, 8, 32], strides = [1, 1, 1]} : vector<4x8x32xf32> to vector<1x8x32xf32>
    %222 = vector.shape_cast %221 : vector<1x8x32xf32> to vector<8x32xf32>
    %223 = vector.extract_strided_slice %216 {offsets = [3, 0, 0], sizes = [1, 8, 32], strides = [1, 1, 1]} : vector<4x8x32xf32> to vector<1x8x32xf32>
    %224 = vector.shape_cast %223 : vector<1x8x32xf32> to vector<8x32xf32>
    %225 = tpu.concatenate %218, %220, %222, %224 in 1 : vector<8x32xf32>, vector<8x32xf32>, vector<8x32xf32>, vector<8x32xf32> -> vector<8x128xf32>
    %226 = arith.truncf %225 : vector<8x128xf32> to vector<8x128xbf16>
    %c1_76 = arith.constant 1 : index
    %c0_77 = arith.constant 0 : index
    %c0_78 = arith.constant 0 : index
    %227 = vector.load %arg7[%c1_76, %c0_77, %c0_78] : memref<2x128x128xbf16, #tpu.memory_space<vmem>>, vector<1x128x128xbf16>
    %228 = vector.shape_cast %227 : vector<1x128x128xbf16> to vector<128x128xbf16>
    %cst_79 = arith.constant dense<0.000000e+00> : vector<8x128xf32>
    %229 = tpu.matmul %226, %228, %cst_79 {dimension_numbers = #tpu.dot_dimension_numbers<[1], [0], [0], [1], [0, 0, 1, 1], [], []>} : vector<8x128xbf16>, vector<128x128xbf16>, vector<8x128xf32> -> vector<8x128xf32>
    %c1_80 = arith.constant 1 : index
    %c0_81 = arith.constant 0 : index
    %c0_82 = arith.constant 0 : index
    %230 = vector.load %arg8[%c1_80, %c0_81, %c0_82] : memref<2x1x128xf32, #tpu.memory_space<vmem>>, vector<1x1x128xf32>
    %231 = vector.shape_cast %230 : vector<1x1x128xf32> to vector<1x128xf32>
    %232 = vector.broadcast %231 : vector<1x128xf32> to vector<8x128xf32>
    %233 = arith.addf %229, %232 : vector<8x128xf32>
    %234 = arith.addf %164, %233 : vector<8x128xf32>
    %c1_83 = arith.constant 1 : index
    %c0_84 = arith.constant 0 : index
    %c0_85 = arith.constant 0 : index
    %235 = vector.load %arg9[%c1_83, %c0_84, %c0_85] : memref<2x1x128xf32, #tpu.memory_space<vmem>>, vector<1x1x128xf32>
    %236 = vector.shape_cast %235 : vector<1x1x128xf32> to vector<1x128xf32>
    %c1_86 = arith.constant 1 : index
    %c0_87 = arith.constant 0 : index
    %c0_88 = arith.constant 0 : index
    %237 = vector.load %arg10[%c1_86, %c0_87, %c0_88] : memref<2x1x128xf32, #tpu.memory_space<vmem>>, vector<1x1x128xf32>
    %238 = vector.shape_cast %237 : vector<1x1x128xf32> to vector<1x128xf32>
    %cst_89 = arith.constant dense<0.000000e+00> : vector<8xf32>
    %239 = vector.multi_reduction <add>, %234, %cst_89 [1] : vector<8x128xf32> to vector<8xf32>
    %240 = vector.shape_cast %239 : vector<8xf32> to vector<8x1xf32>
    %cst_90 = arith.constant 3.125000e-02 : f32
    %241 = vector.broadcast %cst_90 : f32 to vector<8x1xf32>
    %242 = arith.mulf %240, %241 : vector<8x1xf32>
    %243 = vector.broadcast %242 : vector<8x1xf32> to vector<8x128xf32>
    %244 = arith.subf %234, %243 : vector<8x128xf32>
    %245 = vector.broadcast %23 : vector<1x128xf32> to vector<8x128xf32>
    %246 = arith.mulf %244, %245 : vector<8x128xf32>
    %247 = arith.mulf %246, %246 : vector<8x128xf32>
    %cst_91 = arith.constant dense<0.000000e+00> : vector<8xf32>
    %248 = vector.multi_reduction <add>, %247, %cst_91 [1] : vector<8x128xf32> to vector<8xf32>
    %249 = vector.shape_cast %248 : vector<8xf32> to vector<8x1xf32>
    %cst_92 = arith.constant 3.125000e-02 : f32
    %250 = vector.broadcast %cst_92 : f32 to vector<8x1xf32>
    %251 = arith.mulf %249, %250 : vector<8x1xf32>
    %cst_93 = arith.constant 9.99999974E-6 : f32
    %252 = vector.broadcast %cst_93 : f32 to vector<8x1xf32>
    %253 = arith.addf %251, %252 : vector<8x1xf32>
    %254 = math.rsqrt %253 : vector<8x1xf32>
    %255 = vector.broadcast %254 : vector<8x1xf32> to vector<8x128xf32>
    %256 = arith.mulf %246, %255 : vector<8x128xf32>
    %257 = vector.broadcast %236 : vector<1x128xf32> to vector<8x128xf32>
    %258 = arith.mulf %256, %257 : vector<8x128xf32>
    %259 = vector.broadcast %238 : vector<1x128xf32> to vector<8x128xf32>
    %260 = arith.addf %258, %259 : vector<8x128xf32>
    %261 = arith.truncf %260 : vector<8x128xf32> to vector<8x128xbf16>
    %c1_94 = arith.constant 1 : index
    %c0_95 = arith.constant 0 : index
    %c0_96 = arith.constant 0 : index
    %262 = vector.load %arg11[%c1_94, %c0_95, %c0_96] : memref<2x128x128xbf16, #tpu.memory_space<vmem>>, vector<1x128x128xbf16>
    %263 = vector.shape_cast %262 : vector<1x128x128xbf16> to vector<128x128xbf16>
    %cst_97 = arith.constant dense<0.000000e+00> : vector<8x128xf32>
    %264 = tpu.matmul %261, %263, %cst_97 {dimension_numbers = #tpu.dot_dimension_numbers<[1], [0], [0], [1], [0, 0, 1, 1], [], []>} : vector<8x128xbf16>, vector<128x128xbf16>, vector<8x128xf32> -> vector<8x128xf32>
    %c1_98 = arith.constant 1 : index
    %c0_99 = arith.constant 0 : index
    %c0_100 = arith.constant 0 : index
    %265 = vector.load %arg12[%c1_98, %c0_99, %c0_100] : memref<2x1x128xf32, #tpu.memory_space<vmem>>, vector<1x1x128xf32>
    %266 = vector.shape_cast %265 : vector<1x1x128xf32> to vector<1x128xf32>
    %267 = vector.broadcast %266 : vector<1x128xf32> to vector<8x128xf32>
    %268 = arith.addf %264, %267 : vector<8x128xf32>
    %cst_101 = arith.constant 0.000000e+00 : f32
    %269 = vector.broadcast %cst_101 : f32 to vector<8x128xf32>
    %270 = arith.maximumf %268, %269 : vector<8x128xf32>
    %271 = arith.truncf %270 : vector<8x128xf32> to vector<8x128xbf16>
    %c1_102 = arith.constant 1 : index
    %c0_103 = arith.constant 0 : index
    %c0_104 = arith.constant 0 : index
    %272 = vector.load %arg13[%c1_102, %c0_103, %c0_104] : memref<2x128x128xbf16, #tpu.memory_space<vmem>>, vector<1x128x128xbf16>
    %273 = vector.shape_cast %272 : vector<1x128x128xbf16> to vector<128x128xbf16>
    %cst_105 = arith.constant dense<0.000000e+00> : vector<8x128xf32>
    %274 = tpu.matmul %271, %273, %cst_105 {dimension_numbers = #tpu.dot_dimension_numbers<[1], [0], [0], [1], [0, 0, 1, 1], [], []>} : vector<8x128xbf16>, vector<128x128xbf16>, vector<8x128xf32> -> vector<8x128xf32>
    %c1_106 = arith.constant 1 : index
    %c0_107 = arith.constant 0 : index
    %c0_108 = arith.constant 0 : index
    %275 = vector.load %arg14[%c1_106, %c0_107, %c0_108] : memref<2x1x128xf32, #tpu.memory_space<vmem>>, vector<1x1x128xf32>
    %276 = vector.shape_cast %275 : vector<1x1x128xf32> to vector<1x128xf32>
    %277 = vector.broadcast %276 : vector<1x128xf32> to vector<8x128xf32>
    %278 = arith.addf %274, %277 : vector<8x128xf32>
    %279 = arith.addf %260, %278 : vector<8x128xf32>
    %c1_109 = arith.constant 1 : index
    %c0_110 = arith.constant 0 : index
    %c0_111 = arith.constant 0 : index
    %280 = vector.load %arg15[%c1_109, %c0_110, %c0_111] : memref<2x1x128xf32, #tpu.memory_space<vmem>>, vector<1x1x128xf32>
    %281 = vector.shape_cast %280 : vector<1x1x128xf32> to vector<1x128xf32>
    %c1_112 = arith.constant 1 : index
    %c0_113 = arith.constant 0 : index
    %c0_114 = arith.constant 0 : index
    %282 = vector.load %arg16[%c1_112, %c0_113, %c0_114] : memref<2x1x128xf32, #tpu.memory_space<vmem>>, vector<1x1x128xf32>
    %283 = vector.shape_cast %282 : vector<1x1x128xf32> to vector<1x128xf32>
    %cst_115 = arith.constant dense<0.000000e+00> : vector<8xf32>
    %284 = vector.multi_reduction <add>, %279, %cst_115 [1] : vector<8x128xf32> to vector<8xf32>
    %285 = vector.shape_cast %284 : vector<8xf32> to vector<8x1xf32>
    %cst_116 = arith.constant 3.125000e-02 : f32
    %286 = vector.broadcast %cst_116 : f32 to vector<8x1xf32>
    %287 = arith.mulf %285, %286 : vector<8x1xf32>
    %288 = vector.broadcast %287 : vector<8x1xf32> to vector<8x128xf32>
    %289 = arith.subf %279, %288 : vector<8x128xf32>
    %290 = vector.broadcast %23 : vector<1x128xf32> to vector<8x128xf32>
    %291 = arith.mulf %289, %290 : vector<8x128xf32>
    %292 = arith.mulf %291, %291 : vector<8x128xf32>
    %cst_117 = arith.constant dense<0.000000e+00> : vector<8xf32>
    %293 = vector.multi_reduction <add>, %292, %cst_117 [1] : vector<8x128xf32> to vector<8xf32>
    %294 = vector.shape_cast %293 : vector<8xf32> to vector<8x1xf32>
    %cst_118 = arith.constant 3.125000e-02 : f32
    %295 = vector.broadcast %cst_118 : f32 to vector<8x1xf32>
    %296 = arith.mulf %294, %295 : vector<8x1xf32>
    %cst_119 = arith.constant 9.99999974E-6 : f32
    %297 = vector.broadcast %cst_119 : f32 to vector<8x1xf32>
    %298 = arith.addf %296, %297 : vector<8x1xf32>
    %299 = math.rsqrt %298 : vector<8x1xf32>
    %300 = vector.broadcast %299 : vector<8x1xf32> to vector<8x128xf32>
    %301 = arith.mulf %291, %300 : vector<8x128xf32>
    %302 = vector.broadcast %281 : vector<1x128xf32> to vector<8x128xf32>
    %303 = arith.mulf %301, %302 : vector<8x128xf32>
    %304 = vector.broadcast %283 : vector<1x128xf32> to vector<8x128xf32>
    %305 = arith.addf %303, %304 : vector<8x128xf32>
    %c0_120 = arith.constant 0 : index
    %c0_121 = arith.constant 0 : index
    %c0_122 = arith.constant 0 : index
    %306 = vector.load %arg17[%c0_120, %c0_121, %c0_122] : memref<1x8x128xf32, #tpu.memory_space<vmem>>, vector<1x8x128xf32>
    %307 = vector.shape_cast %306 : vector<1x8x128xf32> to vector<8x128xf32>
    %308 = vector.shape_cast %305 : vector<8x128xf32> to vector<1x8x128xf32>
    tpu.vector_store %arg17[%c0_120, %c0_121, %c0_122], %308 {strides = array<i32>} : memref<1x8x128xf32, #tpu.memory_space<vmem>>, vector<1x8x128xf32>,
    return
  }
  func.func @transform_0(%arg0: i32) -> (i32, i32, i32) {
    %c0_i32 = arith.constant 0 : i32
    %c0_i32_0 = arith.constant 0 : i32
    %c0_i32_1 = arith.constant 0 : i32
    return %arg0, %c0_i32, %c0_i32_0 : i32, i32, i32
  }
  func.func @transform_1(%arg0: i32) -> (i32, i32, i32) {
    %c0_i32 = arith.constant 0 : i32
    %c0_i32_0 = arith.constant 0 : i32
    %c0_i32_1 = arith.constant 0 : i32
    return %arg0, %c0_i32, %c0_i32_0 : i32, i32, i32
  }
  func.func @transform_2(%arg0: i32) -> (i32, i32) {
    %c0_i32 = arith.constant 0 : i32
    %c0_i32_0 = arith.constant 0 : i32
    %c0_i32_1 = arith.constant 0 : i32
    return %c0_i32, %c0_i32_0 : i32, i32
  }
  func.func @transform_3(%arg0: i32) -> (i32, i32) {
    %c0_i32 = arith.constant 0 : i32
    %c0_i32_0 = arith.constant 0 : i32
    %c0_i32_1 = arith.constant 0 : i32
    return %c0_i32, %c0_i32_0 : i32, i32
  }
  func.func @transform_4(%arg0: i32) -> (i32, i32, i32) {
    %c0_i32 = arith.constant 0 : i32
    %c0_i32_0 = arith.constant 0 : i32
    %c0_i32_1 = arith.constant 0 : i32
    %c0_i32_2 = arith.constant 0 : i32
    return %c0_i32, %c0_i32_0, %c0_i32_1 : i32, i32, i32
  }
  func.func @transform_5(%arg0: i32) -> (i32, i32, i32) {
    %c0_i32 = arith.constant 0 : i32
    %c0_i32_0 = arith.constant 0 : i32
    %c0_i32_1 = arith.constant 0 : i32
    %c0_i32_2 = arith.constant 0 : i32
    return %c0_i32, %c0_i32_0, %c0_i32_1 : i32, i32, i32
  }
  func.func @transform_6(%arg0: i32) -> (i32, i32, i32) {
    %c0_i32 = arith.constant 0 : i32
    %c0_i32_0 = arith.constant 0 : i32
    %c0_i32_1 = arith.constant 0 : i32
    %c0_i32_2 = arith.constant 0 : i32
    return %c0_i32, %c0_i32_0, %c0_i32_1 : i32, i32, i32
  }
  func.func @transform_7(%arg0: i32) -> (i32, i32, i32) {
    %c0_i32 = arith.constant 0 : i32
    %c0_i32_0 = arith.constant 0 : i32
    %c0_i32_1 = arith.constant 0 : i32
    %c0_i32_2 = arith.constant 0 : i32
    return %c0_i32, %c0_i32_0, %c0_i32_1 : i32, i32, i32
  }
  func.func @transform_8(%arg0: i32) -> (i32, i32, i32) {
    %c0_i32 = arith.constant 0 : i32
    %c0_i32_0 = arith.constant 0 : i32
    %c0_i32_1 = arith.constant 0 : i32
    %c0_i32_2 = arith.constant 0 : i32
    return %c0_i32, %c0_i32_0, %c0_i32_1 : i32, i32, i32
  }
  func.func @transform_9(%arg0: i32) -> (i32, i32, i32) {
    %c0_i32 = arith.constant 0 : i32
    %c0_i32_0 = arith.constant 0 : i32
    %c0_i32_1 = arith.constant 0 : i32
    %c0_i32_2 = arith.constant 0 : i32
    return %c0_i32, %c0_i32_0, %c0_i32_1 : i32, i32, i32
  }
  func.func @transform_10(%arg0: i32) -> (i32, i32, i32) {
    %c0_i32 = arith.constant 0 : i32
    %c0_i32_0 = arith.constant 0 : i32
    %c0_i32_1 = arith.constant 0 : i32
    %c0_i32_2 = arith.constant 0 : i32
    return %c0_i32, %c0_i32_0, %c0_i32_1 : i32, i32, i32
  }
  func.func @transform_11(%arg0: i32) -> (i32, i32, i32) {
    %c0_i32 = arith.constant 0 : i32
    %c0_i32_0 = arith.constant 0 : i32
    %c0_i32_1 = arith.constant 0 : i32
    %c0_i32_2 = arith.constant 0 : i32
    return %c0_i32, %c0_i32_0, %c0_i32_1 : i32, i32, i32
  }
  func.func @transform_12(%arg0: i32) -> (i32, i32, i32) {
    %c0_i32 = arith.constant 0 : i32
    %c0_i32_0 = arith.constant 0 : i32
    %c0_i32_1 = arith.constant 0 : i32
    %c0_i32_2 = arith.constant 0 : i32
    return %c0_i32, %c0_i32_0, %c0_i32_1 : i32, i32, i32
  }
  func.func @transform_13(%arg0: i32) -> (i32, i32, i32) {
    %c0_i32 = arith.constant 0 : i32
    %c0_i32_0 = arith.constant 0 : i32
    %c0_i32_1 = arith.constant 0 : i32
    %c0_i32_2 = arith.constant 0 : i32
    return %c0_i32, %c0_i32_0, %c0_i32_1 : i32, i32, i32
  }
  func.func @transform_14(%arg0: i32) -> (i32, i32, i32) {
    %c0_i32 = arith.constant 0 : i32
    %c0_i32_0 = arith.constant 0 : i32
    %c0_i32_1 = arith.constant 0 : i32
    %c0_i32_2 = arith.constant 0 : i32
    return %c0_i32, %c0_i32_0, %c0_i32_1 : i32, i32, i32
  }
  func.func @transform_15(%arg0: i32) -> (i32, i32, i32) {
    %c0_i32 = arith.constant 0 : i32
    %c0_i32_0 = arith.constant 0 : i32
    %c0_i32_1 = arith.constant 0 : i32
    %c0_i32_2 = arith.constant 0 : i32
    return %c0_i32, %c0_i32_0, %c0_i32_1 : i32, i32, i32
  }
  func.func @transform_16(%arg0: i32) -> (i32, i32, i32) {
    %c0_i32 = arith.constant 0 : i32
    %c0_i32_0 = arith.constant 0 : i32
    %c0_i32_1 = arith.constant 0 : i32
    return %arg0, %c0_i32, %c0_i32_0 : i32, i32, i32
  }
}

</mosaic_0001>

<llo_original>
// kernel: tpu_custom_call.1
$region0: #{tpu_custom_call.1}
  #allocation0 [shape = 'u32[]', space=smem, size = 0x4, offset = 0x4, fixed_abs, tag = 'smem constant byte address 0x4 - core index']
  #allocation1 [shape = 'u32[144,128]{1,0:T(1,128)}', space=vmem, size = 0x12000, scoped, tag = 'internal scratch']
  %s0 = inlined_call_operand.vmem [shape: s32[2,1,8], index: 0, kind: input, shape index: {}]
  %s1 = inlined_call_operand.vmem [shape: s32[2,8,1], index: 1, kind: input, shape index: {}]
  %s2 = inlined_call_operand.hbm [shape: f32[64,128], index: 2, kind: input, shape index: {}]
  %s3 = inlined_call_operand.vmem [shape: f32[8,128], index: 3, kind: input, shape index: {}]
  %s4 = inlined_call_operand.hbm [shape: bf16[2,128,384], index: 4, kind: input, shape index: {}]
  %s5 = inlined_call_operand.vmem [shape: f32[2,1,384], index: 5, kind: input, shape index: {}]
  %s6 = inlined_call_operand.hbm [shape: bf16[2,128,128], index: 6, kind: input, shape index: {}]
  %s7 = inlined_call_operand.vmem [shape: f32[2,1,128], index: 7, kind: input, shape index: {}]
  %s8 = inlined_call_operand.vmem [shape: f32[2,1,128], index: 8, kind: input, shape index: {}]
  %s9 = inlined_call_operand.vmem [shape: f32[2,1,128], index: 9, kind: input, shape index: {}]
  %s10 = inlined_call_operand.hbm [shape: bf16[2,128,128], index: 10, kind: input, shape index: {}]
  %s11 = inlined_call_operand.vmem [shape: f32[2,1,128], index: 11, kind: input, shape index: {}]
  %s12 = inlined_call_operand.hbm [shape: bf16[2,128,128], index: 12, kind: input, shape index: {}]
  %s13 = inlined_call_operand.vmem [shape: f32[2,1,128], index: 13, kind: input, shape index: {}]
  %s14 = inlined_call_operand.vmem [shape: f32[2,1,128], index: 14, kind: input, shape index: {}]
  %s15 = inlined_call_operand.vmem [shape: f32[2,1,128], index: 15, kind: input, shape index: {}]
  %s16 = inlined_call_operand.hbm [shape: f32[2,8,128], index: 16, kind: output, shape index: {}]
  %s17 = sld [smem:[#allocation0]]
  $region117: #{tpu_custom_call.1} parent=0
    _
  %s19 = ssub.s32 1, %s17
  %s20 = scalar_select 0, %s19, %s17
  $region1: #{tpu_custom_call.1} parent=0
    #allocation2 [shape = 'u8[32768]{0}', space=vmem, size = 0x8000, scoped, tag = 'input window, operand 2, single buffered']
    #allocation3 [shape = 's32[2]{0}', space=sflag, size = 0x8, scoped, tag = 'scoped memory for tpu_custom_call.1']
    #allocation4 [shape = 's32[2]{0}', space=sflag, size = 0x8, scoped, tag = 'scoped memory for tpu_custom_call.1']
    #allocation5 [shape = 'u8[196608]{0}', space=vmem, size = 0x30000, scoped, tag = 'input window, operand 4, single buffered']
    #allocation6 [shape = 's32[1]{0}', space=sflag, size = 0x4, scoped, tag = 'scoped memory for tpu_custom_call.1']
    #allocation7 [shape = 'u8[65536]{0}', space=vmem, size = 0x10000, scoped, tag = 'input window, operand 6, single buffered']
    #allocation8 [shape = 'u8[65536]{0}', space=vmem, size = 0x10000, scoped, tag = 'input window, operand 10, single buffered']
    #allocation9 [shape = 's32[1]{0}', space=sflag, size = 0x4, scoped, tag = 'scoped memory for tpu_custom_call.1']
    #allocation10 [shape = 'u8[65536]{0}', space=vmem, size = 0x10000, scoped, tag = 'input window, operand 12, single buffered']
    #allocation11 [shape = 'u8[8192]{0}', space=vmem, size = 0x2000, scoped, tag = 'output window, operand 0']
    %21 = vsyncpa [#allocation3], 0
    %22 = vsyncpa [#allocation6], 0
    %23 = vsyncpa [#allocation9], 0
    %24 = vsyncpa [#allocation4], 0
    %s25 = scalar_lea.sflag [#allocation4], 1
    %26 = vsyncpa %s25, 0
    loop: start=0, step=1, limit=4
    $region2: #{tpu_custom_call.1} parent=1 // loop_pre_header
      _
    $region3: #{tpu_custom_call.1} parent=1 // loop_header
      %s28 = sphi 0, %s32
      %p29 = scmp.ge.s32.totalorder %s28, 4
      %s38 = sphi 0, %s40
      %s41 = sphi 0, %s38
      %s42 = sphi 0, %s41
      %s58 = sphi 0, %s42
      %s64 = sphi 0, %s66
      %s67 = sphi 0, %s64
      %s68 = sphi 0, %s67
      %s84 = sphi 0, %s68
      %s88 = sphi 0, %s88
      %s90 = sphi 0, %s88
      %s91 = sphi 0, %s90
      %s105 = sphi 0, %s91
      %s109 = sphi 0, %s109
      %s111 = sphi 0, %s109
      %s112 = sphi 0, %s111
      %s126 = sphi 0, %s112
      %s130 = sphi 0, %s130
      %s132 = sphi 0, %s130
      %s133 = sphi 0, %s132
      %s147 = sphi 0, %s133
      %s151 = sphi 0, %s151
      %s153 = sphi 0, %s151
      %s154 = sphi 0, %s153
      %s168 = sphi 0, %s154
      %s172 = sphi 0, %s172
      %s174 = sphi 0, %s172
      %s175 = sphi 0, %s174
      %s189 = sphi 0, %s175
      %s193 = sphi 0, %s193
      %s195 = sphi 0, %s193
      %s196 = sphi 0, %s195
      %s210 = sphi 0, %s196
      %s214 = sphi 0, %s214
      %s216 = sphi 0, %s214
      %s217 = sphi 0, %s216
      %s231 = sphi 0, %s217
      %s235 = sphi 0, %s235
      %s237 = sphi 0, %s235
      %s238 = sphi 0, %s237
      %s252 = sphi 0, %s238
      %s256 = sphi 0, %s256
      %s258 = sphi 0, %s256
      %s259 = sphi 0, %s258
      %s273 = sphi 0, %s259
      %s277 = sphi 0, %s277
      %s279 = sphi 0, %s277
      %s280 = sphi 0, %s279
      %s294 = sphi 0, %s280
      %s298 = sphi 0, %s298
      %s300 = sphi 0, %s298
      %s301 = sphi 0, %s300
      %s315 = sphi 0, %s301
      %s319 = sphi 0, %s319
      %s321 = sphi 0, %s319
      %s322 = sphi 0, %s321
      %s336 = sphi 0, %s322
      %s340 = sphi 0, %s340
      %s342 = sphi 0, %s340
      %s343 = sphi 0, %s342
      %s357 = sphi 0, %s343
      %s361 = sphi 0, %s361
      %s363 = sphi 0, %s361
      %s364 = sphi 0, %s363
      %s378 = sphi 0, %s364
      %s384 = sphi 0, %s386
      %s387 = sphi 0, %s384
      %s388 = sphi 0, %s387
      %s404 = sphi 0, %s388
    $region4: #{tpu_custom_call.1} parent=1 // loop_header_branch
      %31 = sbr.rel (%p29) target = $region8
    $region5: #{tpu_custom_call.1} parent=1 // loop_body
      %s33 = ssub.s32 %s28, 1
      %s34 = ssub.s32 %s28, 2
      %s35 = sadd.s32 %s28, 1
      %s36 = ssub.s32 %s28, %s35
      %p37 = scmp.eq.s32.totalorder %s36, 0
      %s39 = sadd.s32 %s38, 1
      %s40 = scalar_select %p37, %s38, %s39
      %p43 = pneg %p37
      %p44 = scmp.eq.s32.totalorder %s28, 1
      %p45 = por %p43, %p44
      %p46 = scmp.ne.s32.totalorder %s38, %s41
      %p47 = scmp.eq.s32.totalorder %s28, 0
      %p48 = por %p46, %p47
      %p49 = scmp.ne.s32.totalorder %s38, %s41
      %p50 = scmp.eq.s32.totalorder %s33, 1
      %p51 = por %p49, %p50
      %p52 = scmp.ne.s32.totalorder %s41, %s42
      %p53 = scmp.eq.s32.totalorder %s33, 0
      %p54 = por %p52, %p53
      %p55 = scmp.ne.s32.totalorder %s41, %s42
      %p56 = scmp.eq.s32.totalorder %s34, 1
      %p57 = por %p55, %p56
      %p59 = scmp.ne.s32.totalorder %s42, %s58
      %p60 = scmp.eq.s32.totalorder %s34, 0
      %p61 = por %p59, %p60
      %s62 = ssub.s32 %s28, %s35
      %p63 = scmp.eq.s32.totalorder %s62, 0
      %s65 = sadd.s32 %s64, 1
      %s66 = scalar_select %p63, %s64, %s65
      %p69 = pneg %p63
      %p70 = scmp.eq.s32.totalorder %s28, 1
      %p71 = por %p69, %p70
      %p72 = scmp.ne.s32.totalorder %s64, %s67
      %p73 = scmp.eq.s32.totalorder %s28, 0
      %p74 = por %p72, %p73
      %p75 = scmp.ne.s32.totalorder %s64, %s67
      %p76 = scmp.eq.s32.totalorder %s33, 1
      %p77 = por %p75, %p76
      %p78 = scmp.ne.s32.totalorder %s67, %s68
      %p79 = scmp.eq.s32.totalorder %s33, 0
      %p80 = por %p78, %p79
      %p81 = scmp.ne.s32.totalorder %s67, %s68
      %p82 = scmp.eq.s32.totalorder %s34, 1
      %p83 = por %p81, %p82
      %p85 = scmp.ne.s32.totalorder %s68, %s84
      %p86 = scmp.eq.s32.totalorder %s34, 0
      %p87 = por %p85, %p86
      %s89 = sadd.s32 %s88, 1
      %p92 = scmp.eq.s32.totalorder %s28, 1
      %p93 = scmp.ne.s32.totalorder %s88, %s90
      %p94 = scmp.eq.s32.totalorder %s28, 0
      %p95 = por %p93, %p94
      %p96 = scmp.ne.s32.totalorder %s88, %s90
      %p97 = scmp.eq.s32.totalorder %s33, 1
      %p98 = por %p96, %p97
      %p99 = scmp.ne.s32.totalorder %s90, %s91
      %p100 = scmp.eq.s32.totalorder %s33, 0
      %p101 = por %p99, %p100
      %p102 = scmp.ne.s32.totalorder %s90, %s91
      %p103 = scmp.eq.s32.totalorder %s34, 1
      %p104 = por %p102, %p103
      %p106 = scmp.ne.s32.totalorder %s91, %s105
      %p107 = scmp.eq.s32.totalorder %s34, 0
      %p108 = por %p106, %p107
      %s110 = sadd.s32 %s109, 1
      %p113 = scmp.eq.s32.totalorder %s28, 1
      %p114 = scmp.ne.s32.totalorder %s109, %s111
      %p115 = scmp.eq.s32.totalorder %s28, 0
      %p116 = por %p114, %p115
      %p117 = scmp.ne.s32.totalorder %s109, %s111
      %p118 = scmp.eq.s32.totalorder %s33, 1
      %p119 = por %p117, %p118
      %p120 = scmp.ne.s32.totalorder %s111, %s112
      %p121 = scmp.eq.s32.totalorder %s33, 0
      %p122 = por %p120, %p121
      %p123 = scmp.ne.s32.totalorder %s111, %s112
      %p124 = scmp.eq.s32.totalorder %s34, 1
      %p125 = por %p123, %p124
      %p127 = scmp.ne.s32.totalorder %s112, %s126
      %p128 = scmp.eq.s32.totalorder %s34, 0
      %p129 = por %p127, %p128
      %s131 = sadd.s32 %s130, 1
      %p134 = scmp.eq.s32.totalorder %s28, 1
      %p135 = scmp.ne.s32.totalorder %s130, %s132
      %p136 = scmp.eq.s32.totalorder %s28, 0
      %p137 = por %p135, %p136
      %p138 = scmp.ne.s32.totalorder %s130, %s132
      %p139 = scmp.eq.s32.totalorder %s33, 1
      %p140 = por %p138, %p139
      %p141 = scmp.ne.s32.totalorder %s132, %s133
      %p142 = scmp.eq.s32.totalorder %s33, 0
      %p143 = por %p141, %p142
      %p144 = scmp.ne.s32.totalorder %s132, %s133
      %p145 = scmp.eq.s32.totalorder %s34, 1
      %p146 = por %p144, %p145
      %p148 = scmp.ne.s32.totalorder %s133, %s147
      %p149 = scmp.eq.s32.totalorder %s34, 0
      %p150 = por %p148, %p149
      %s152 = sadd.s32 %s151, 1
      %p155 = scmp.eq.s32.totalorder %s28, 1
      %p156 = scmp.ne.s32.totalorder %s151, %s153
      %p157 = scmp.eq.s32.totalorder %s28, 0
      %p158 = por %p156, %p157
      %p159 = scmp.ne.s32.totalorder %s151, %s153
      %p160 = scmp.eq.s32.totalorder %s33, 1
      %p161 = por %p159, %p160
      %p162 = scmp.ne.s32.totalorder %s153, %s154
      %p163 = scmp.eq.s32.totalorder %s33, 0
      %p164 = por %p162, %p163
      %p165 = scmp.ne.s32.totalorder %s153, %s154
      %p166 = scmp.eq.s32.totalorder %s34, 1
      %p167 = por %p165, %p166
      %p169 = scmp.ne.s32.totalorder %s154, %s168
      %p170 = scmp.eq.s32.totalorder %s34, 0
      %p171 = por %p169, %p170
      %s173 = sadd.s32 %s172, 1
      %p176 = scmp.eq.s32.totalorder %s28, 1
      %p177 = scmp.ne.s32.totalorder %s172, %s174
      %p178 = scmp.eq.s32.totalorder %s28, 0
      %p179 = por %p177, %p178
      %p180 = scmp.ne.s32.totalorder %s172, %s174
      %p181 = scmp.eq.s32.totalorder %s33, 1
      %p182 = por %p180, %p181
      %p183 = scmp.ne.s32.totalorder %s174, %s175
      %p184 = scmp.eq.s32.totalorder %s33, 0
      %p185 = por %p183, %p184
      %p186 = scmp.ne.s32.totalorder %s174, %s175
      %p187 = scmp.eq.s32.totalorder %s34, 1
      %p188 = por %p186, %p187
      %p190 = scmp.ne.s32.totalorder %s175, %s189
      %p191 = scmp.eq.s32.totalorder %s34, 0
      %p192 = por %p190, %p191
      %s194 = sadd.s32 %s193, 1
      %p197 = scmp.eq.s32.totalorder %s28, 1
      %p198 = scmp.ne.s32.totalorder %s193, %s195
      %p199 = scmp.eq.s32.totalorder %s28, 0
      %p200 = por %p198, %p199
      %p201 = scmp.ne.s32.totalorder %s193, %s195
      %p202 = scmp.eq.s32.totalorder %s33, 1
      %p203 = por %p201, %p202
      %p204 = scmp.ne.s32.totalorder %s195, %s196
      %p205 = scmp.eq.s32.totalorder %s33, 0
      %p206 = por %p204, %p205
      %p207 = scmp.ne.s32.totalorder %s195, %s196
      %p208 = scmp.eq.s32.totalorder %s34, 1
      %p209 = por %p207, %p208
      %p211 = scmp.ne.s32.totalorder %s196, %s210
      %p212 = scmp.eq.s32.totalorder %s34, 0
      %p213 = por %p211, %p212
      %s215 = sadd.s32 %s214, 1
      %p218 = scmp.eq.s32.totalorder %s28, 1
      %p219 = scmp.ne.s32.totalorder %s214, %s216
      %p220 = scmp.eq.s32.totalorder %s28, 0
      %p221 = por %p219, %p220
      %p222 = scmp.ne.s32.totalorder %s214, %s216
      %p223 = scmp.eq.s32.totalorder %s33, 1
      %p224 = por %p222, %p223
      %p225 = scmp.ne.s32.totalorder %s216, %s217
      %p226 = scmp.eq.s32.totalorder %s33, 0
      %p227 = por %p225, %p226
      %p228 = scmp.ne.s32.totalorder %s216, %s217
      %p229 = scmp.eq.s32.totalorder %s34, 1
      %p230 = por %p228, %p229
      %p232 = scmp.ne.s32.totalorder %s217, %s231
      %p233 = scmp.eq.s32.totalorder %s34, 0
      %p234 = por %p232, %p233
      %s236 = sadd.s32 %s235, 1
      %p239 = scmp.eq.s32.totalorder %s28, 1
      %p240 = scmp.ne.s32.totalorder %s235, %s237
      %p241 = scmp.eq.s32.totalorder %s28, 0
      %p242 = por %p240, %p241
      %p243 = scmp.ne.s32.totalorder %s235, %s237
      %p244 = scmp.eq.s32.totalorder %s33, 1
      %p245 = por %p243, %p244
      %p246 = scmp.ne.s32.totalorder %s237, %s238
      %p247 = scmp.eq.s32.totalorder %s33, 0
      %p248 = por %p246, %p247
      %p249 = scmp.ne.s32.totalorder %s237, %s238
      %p250 = scmp.eq.s32.totalorder %s34, 1
      %p251 = por %p249, %p250
      %p253 = scmp.ne.s32.totalorder %s238, %s252
      %p254 = scmp.eq.s32.totalorder %s34, 0
      %p255 = por %p253, %p254
      %s257 = sadd.s32 %s256, 1
      %p260 = scmp.eq.s32.totalorder %s28, 1
      %p261 = scmp.ne.s32.totalorder %s256, %s258
      %p262 = scmp.eq.s32.totalorder %s28, 0
      %p263 = por %p261, %p262
      %p264 = scmp.ne.s32.totalorder %s256, %s258
      %p265 = scmp.eq.s32.totalorder %s33, 1
      %p266 = por %p264, %p265
      %p267 = scmp.ne.s32.totalorder %s258, %s259
      %p268 = scmp.eq.s32.totalorder %s33, 0
      %p269 = por %p267, %p268
      %p270 = scmp.ne.s32.totalorder %s258, %s259
      %p271 = scmp.eq.s32.totalorder %s34, 1
      %p272 = por %p270, %p271
      %p274 = scmp.ne.s32.totalorder %s259, %s273
      %p275 = scmp.eq.s32.totalorder %s34, 0
      %p276 = por %p274, %p275
      %s278 = sadd.s32 %s277, 1
      %p281 = scmp.eq.s32.totalorder %s28, 1
      %p282 = scmp.ne.s32.totalorder %s277, %s279
      %p283 = scmp.eq.s32.totalorder %s28, 0
      %p284 = por %p282, %p283
      %p285 = scmp.ne.s32.totalorder %s277, %s279
      %p286 = scmp.eq.s32.totalorder %s33, 1
      %p287 = por %p285, %p286
      %p288 = scmp.ne.s32.totalorder %s279, %s280
      %p289 = scmp.eq.s32.totalorder %s33, 0
      %p290 = por %p288, %p289
      %p291 = scmp.ne.s32.totalorder %s279, %s280
      %p292 = scmp.eq.s32.totalorder %s34, 1
      %p293 = por %p291, %p292
      %p295 = scmp.ne.s32.totalorder %s280, %s294
      %p296 = scmp.eq.s32.totalorder %s34, 0
      %p297 = por %p295, %p296
      %s299 = sadd.s32 %s298, 1
      %p302 = scmp.eq.s32.totalorder %s28, 1
      %p303 = scmp.ne.s32.totalorder %s298, %s300
      %p304 = scmp.eq.s32.totalorder %s28, 0
      %p305 = por %p303, %p304
      %p306 = scmp.ne.s32.totalorder %s298, %s300
      %p307 = scmp.eq.s32.totalorder %s33, 1
      %p308 = por %p306, %p307
      %p309 = scmp.ne.s32.totalorder %s300, %s301
      %p310 = scmp.eq.s32.totalorder %s33, 0
      %p311 = por %p309, %p310
      %p312 = scmp.ne.s32.totalorder %s300, %s301
      %p313 = scmp.eq.s32.totalorder %s34, 1
      %p314 = por %p312, %p313
      %p316 = scmp.ne.s32.totalorder %s301, %s315
      %p317 = scmp.eq.s32.totalorder %s34, 0
      %p318 = por %p316, %p317
      %s320 = sadd.s32 %s319, 1
      %p323 = scmp.eq.s32.totalorder %s28, 1
      %p324 = scmp.ne.s32.totalorder %s319, %s321
      %p325 = scmp.eq.s32.totalorder %s28, 0
      %p326 = por %p324, %p325
      %p327 = scmp.ne.s32.totalorder %s319, %s321
      %p328 = scmp.eq.s32.totalorder %s33, 1
      %p329 = por %p327, %p328
      %p330 = scmp.ne.s32.totalorder %s321, %s322
      %p331 = scmp.eq.s32.totalorder %s33, 0
      %p332 = por %p330, %p331
      %p333 = scmp.ne.s32.totalorder %s321, %s322
      %p334 = scmp.eq.s32.totalorder %s34, 1
      %p335 = por %p333, %p334
      %p337 = scmp.ne.s32.totalorder %s322, %s336
      %p338 = scmp.eq.s32.totalorder %s34, 0
      %p339 = por %p337, %p338
      %s341 = sadd.s32 %s340, 1
      %p344 = scmp.eq.s32.totalorder %s28, 1
      %p345 = scmp.ne.s32.totalorder %s340, %s342
      %p346 = scmp.eq.s32.totalorder %s28, 0
      %p347 = por %p345, %p346
      %p348 = scmp.ne.s32.totalorder %s340, %s342
      %p349 = scmp.eq.s32.totalorder %s33, 1
      %p350 = por %p348, %p349
      %p351 = scmp.ne.s32.totalorder %s342, %s343
      %p352 = scmp.eq.s32.totalorder %s33, 0
      %p353 = por %p351, %p352
      %p354 = scmp.ne.s32.totalorder %s342, %s343
      %p355 = scmp.eq.s32.totalorder %s34, 1
      %p356 = por %p354, %p355
      %p358 = scmp.ne.s32.totalorder %s343, %s357
      %p359 = scmp.eq.s32.totalorder %s34, 0
      %p360 = por %p358, %p359
      %s362 = sadd.s32 %s361, 1
      %p365 = scmp.eq.s32.totalorder %s28, 1
      %p366 = scmp.ne.s32.totalorder %s361, %s363
      %p367 = scmp.eq.s32.totalorder %s28, 0
      %p368 = por %p366, %p367
      %p369 = scmp.ne.s32.totalorder %s361, %s363
      %p370 = scmp.eq.s32.totalorder %s33, 1
      %p371 = por %p369, %p370
      %p372 = scmp.ne.s32.totalorder %s363, %s364
      %p373 = scmp.eq.s32.totalorder %s33, 0
      %p374 = por %p372, %p373
      %p375 = scmp.ne.s32.totalorder %s363, %s364
      %p376 = scmp.eq.s32.totalorder %s34, 1
      %p377 = por %p375, %p376
      %p379 = scmp.ne.s32.totalorder %s364, %s378
      %p380 = scmp.eq.s32.totalorder %s34, 0
      %p381 = por %p379, %p380
      %s382 = ssub.s32 %s28, %s35
      %p383 = scmp.eq.s32.totalorder %s382, 0
      %s385 = sadd.s32 %s384, 1
      %s386 = scalar_select %p383, %s384, %s385
      %p389 = pneg %p383
      %p390 = scmp.eq.s32.totalorder %s28, 1
      %p391 = por %p389, %p390
      %p392 = scmp.ne.s32.totalorder %s384, %s387
      %p393 = scmp.eq.s32.totalorder %s28, 0
      %p394 = por %p392, %p393
      %p395 = scmp.ne.s32.totalorder %s384, %s387
      %p396 = scmp.eq.s32.totalorder %s33, 1
      %p397 = por %p395, %p396
      %p398 = scmp.ne.s32.totalorder %s387, %s388
      %p399 = scmp.eq.s32.totalorder %s33, 0
      %p400 = por %p398, %p399
      %p401 = scmp.ne.s32.totalorder %s387, %s388
      %p402 = scmp.eq.s32.totalorder %s34, 1
      %p403 = por %p401, %p402
      %p405 = scmp.ne.s32.totalorder %s388, %s404
      %p406 = scmp.eq.s32.totalorder %s34, 0
      %p407 = por %p405, %p406
      %p408 = scmp.le.s32.totalorder 1, %s28
      %p409 = scmp.lt.s32.totalorder %s28, 3
      %p410 = pnand %p408, %p409
      %p411 = pneg %p410
      // Predicated region
      $region9: #{tpu_custom_call.1} parent=5 // pred_check
        _
      $region10: #{tpu_custom_call.1} parent=5 // pred_check_branch
        %413 = sbr.rel (%p410) target = $region12
      $region11: #{tpu_custom_call.1} parent=5 // pred_region
        %s414 = ssub.s32 %s28, 1
        // Predicated region
        $region13: #{tpu_custom_call.1} parent=11 // pred_check
          %p415 = pneg %p101
        $region14: #{tpu_custom_call.1} parent=11 // pred_check_branch
          %417 = sbr.rel (%p415) target = $region16
        $region15: #{tpu_custom_call.1} parent=11 // pred_region
          %s419 = ssub.s32 1024, 1024
          %420 = vsyncadd [#allocation3], %s419
          %s421 = sshll.u32 [#allocation2], 4
          %s422 = int_to_ptr.vmem [resolvable:$true] %s421
          %427 = dma.hbm_to_vmem [thread:$0]  %s2, 1024, %s422, [#allocation3], 128, 128, 8
        $region16: #{tpu_custom_call.1} parent=11 // pred_fallthru
          _
        // Predicated region
        $region17: #{tpu_custom_call.1} parent=11 // pred_check
          %p428 = pneg %p122
        $region18: #{tpu_custom_call.1} parent=11 // pred_check_branch
          %430 = sbr.rel (%p428) target = $region20
        $region19: #{tpu_custom_call.1} parent=11 // pred_region
          _
        $region20: #{tpu_custom_call.1} parent=11 // pred_fallthru
          _
        // Predicated region
        $region21: #{tpu_custom_call.1} parent=11 // pred_check
          %p431 = pneg %p143
        $region22: #{tpu_custom_call.1} parent=11 // pred_check_branch
          %433 = sbr.rel (%p431) target = $region24
        $region23: #{tpu_custom_call.1} parent=11 // pred_region
          %s435 = ssub.s32 6144, 6144
          %436 = vsyncadd [#allocation6], %s435
          %s437 = sshll.u32 [#allocation5], 4
          %s438 = int_to_ptr.vmem [resolvable:$true] %s437
          %443 = dma.hbm_to_vmem [thread:$0]  %s4, 6144, %s438, [#allocation6], 192, 192, 12
        $region24: #{tpu_custom_call.1} parent=11 // pred_fallthru
          _
        // Predicated region
        $region25: #{tpu_custom_call.1} parent=11 // pred_check
          %p444 = pneg %p164
        $region26: #{tpu_custom_call.1} parent=11 // pred_check_branch
          %446 = sbr.rel (%p444) target = $region28
        $region27: #{tpu_custom_call.1} parent=11 // pred_region
          _
        $region28: #{tpu_custom_call.1} parent=11 // pred_fallthru
          _
        // Predicated region
        $region29: #{tpu_custom_call.1} parent=11 // pred_check
          %p447 = pneg %p185
        $region30: #{tpu_custom_call.1} parent=11 // pred_check_branch
          %449 = sbr.rel (%p447) target = $region32
        $region31: #{tpu_custom_call.1} parent=11 // pred_region
          %s451 = ssub.s32 2048, 2048
          %452 = vsyncadd [#allocation6], %s451
          %s453 = sshll.u32 [#allocation7], 4
          %s454 = int_to_ptr.vmem [resolvable:$true] %s453
          %459 = dma.hbm_to_vmem [thread:$0]  %s6, 2048, %s454, [#allocation6], 64, 64, 4
        $region32: #{tpu_custom_call.1} parent=11 // pred_fallthru
          _
        // Predicated region
        $region33: #{tpu_custom_call.1} parent=11 // pred_check
          %p460 = pneg %p206
        $region34: #{tpu_custom_call.1} parent=11 // pred_check_branch
          %462 = sbr.rel (%p460) target = $region36
        $region35: #{tpu_custom_call.1} parent=11 // pred_region
          _
        $region36: #{tpu_custom_call.1} parent=11 // pred_fallthru
          _
        // Predicated region
        $region37: #{tpu_custom_call.1} parent=11 // pred_check
          %p463 = pneg %p227
        $region38: #{tpu_custom_call.1} parent=11 // pred_check_branch
          %465 = sbr.rel (%p463) target = $region40
        $region39: #{tpu_custom_call.1} parent=11 // pred_region
          _
        $region40: #{tpu_custom_call.1} parent=11 // pred_fallthru
          _
        // Predicated region
        $region41: #{tpu_custom_call.1} parent=11 // pred_check
          %p466 = pneg %p248
        $region42: #{tpu_custom_call.1} parent=11 // pred_check_branch
          %468 = sbr.rel (%p466) target = $region44
        $region43: #{tpu_custom_call.1} parent=11 // pred_region
          _
        $region44: #{tpu_custom_call.1} parent=11 // pred_fallthru
          _
        // Predicated region
        $region45: #{tpu_custom_call.1} parent=11 // pred_check
          %p469 = pneg %p269
        $region46: #{tpu_custom_call.1} parent=11 // pred_check_branch
          %471 = sbr.rel (%p469) target = $region48
        $region47: #{tpu_custom_call.1} parent=11 // pred_region
          %s473 = ssub.s32 2048, 2048
          %474 = vsyncadd [#allocation9], %s473
          %s475 = sshll.u32 [#allocation8], 4
          %s476 = int_to_ptr.vmem [resolvable:$true] %s475
          %481 = dma.hbm_to_vmem [thread:$0]  %s10, 2048, %s476, [#allocation9], 64, 64, 4
        $region48: #{tpu_custom_call.1} parent=11 // pred_fallthru
          _
        // Predicated region
        $region49: #{tpu_custom_call.1} parent=11 // pred_check
          %p482 = pneg %p290
        $region50: #{tpu_custom_call.1} parent=11 // pred_check_branch
          %484 = sbr.rel (%p482) target = $region52
        $region51: #{tpu_custom_call.1} parent=11 // pred_region
          _
        $region52: #{tpu_custom_call.1} parent=11 // pred_fallthru
          _
        // Predicated region
        $region53: #{tpu_custom_call.1} parent=11 // pred_check
          %p485 = pneg %p311
        $region54: #{tpu_custom_call.1} parent=11 // pred_check_branch
          %487 = sbr.rel (%p485) target = $region56
        $region55: #{tpu_custom_call.1} parent=11 // pred_region
          %s489 = ssub.s32 2048, 2048
          %490 = vsyncadd [#allocation9], %s489
          %s491 = sshll.u32 [#allocation10], 4
          %s492 = int_to_ptr.vmem [resolvable:$true] %s491
          %497 = dma.hbm_to_vmem [thread:$0]  %s12, 2048, %s492, [#allocation9], 64, 64, 4
        $region56: #{tpu_custom_call.1} parent=11 // pred_fallthru
          _
        // Predicated region
        $region57: #{tpu_custom_call.1} parent=11 // pred_check
          %p498 = pneg %p332
        $region58: #{tpu_custom_call.1} parent=11 // pred_check_branch
          %500 = sbr.rel (%p498) target = $region60
        $region59: #{tpu_custom_call.1} parent=11 // pred_region
          _
        $region60: #{tpu_custom_call.1} parent=11 // pred_fallthru
          _
        // Predicated region
        $region61: #{tpu_custom_call.1} parent=11 // pred_check
          %p501 = pneg %p353
        $region62: #{tpu_custom_call.1} parent=11 // pred_check_branch
          %503 = sbr.rel (%p501) target = $region64
        $region63: #{tpu_custom_call.1} parent=11 // pred_region
          _
        $region64: #{tpu_custom_call.1} parent=11 // pred_fallthru
          _
        // Predicated region
        $region65: #{tpu_custom_call.1} parent=11 // pred_check
          %p504 = pneg %p374
        $region66: #{tpu_custom_call.1} parent=11 // pred_check_branch
          %506 = sbr.rel (%p504) target = $region68
        $region67: #{tpu_custom_call.1} parent=11 // pred_region
          _
        $region68: #{tpu_custom_call.1} parent=11 // pred_fallthru
          _
      $region12: #{tpu_custom_call.1} parent=5 // pred_fallthru
        _
      %p507 = scmp.lt.s32.totalorder %s28, 2
      // Predicated region
      $region69: #{tpu_custom_call.1} parent=5 // pred_check
        %p508 = pneg %p507
      $region70: #{tpu_custom_call.1} parent=5 // pred_check_branch
        %510 = sbr.rel (%p508) target = $region72
      $region71: #{tpu_custom_call.1} parent=5 // pred_region
        // Predicated region
        $region73: #{tpu_custom_call.1} parent=71 // pred_check
          %p511 = pneg %p48
        $region74: #{tpu_custom_call.1} parent=71 // pred_check_branch
          %513 = sbr.rel (%p511) target = $region76
        $region75: #{tpu_custom_call.1} parent=71 // pred_region
          %p514 = scmp.lt.s32.totalorder %s28, 1
          %s515 = scalar_select %p514, %s28, 1
          %s516 = scalar_lea.vmem %s0, %s515
        $region76: #{tpu_custom_call.1} parent=71 // pred_fallthru
          _
        // Predicated region
        $region77: #{tpu_custom_call.1} parent=71 // pred_check
          %p517 = pneg %p74
        $region78: #{tpu_custom_call.1} parent=71 // pred_check_branch
          %519 = sbr.rel (%p517) target = $region80
        $region79: #{tpu_custom_call.1} parent=71 // pred_region
          %p520 = scmp.lt.s32.totalorder %s28, 1
          %s521 = scalar_select %p520, %s28, 1
          %s522 = smul.addr %s521, 8
          %s523 = scalar_lea.vmem %s1, %s522
        $region80: #{tpu_custom_call.1} parent=71 // pred_fallthru
          _
      $region72: #{tpu_custom_call.1} parent=5 // pred_fallthru
        _
      %p524 = scmp.le.s32.totalorder 1, %s28
      %p525 = scmp.lt.s32.totalorder %s28, 3
      %p526 = pnand %p524, %p525
      %p527 = pneg %p526
      // Predicated region
      $region81: #{tpu_custom_call.1} parent=5 // pred_check
        _
      $region82: #{tpu_custom_call.1} parent=5 // pred_check_branch
        %529 = sbr.rel (%p526) target = $region84
      $region83: #{tpu_custom_call.1} parent=5 // pred_region
        %s530 = ssub.s32 %s28, 1
        // Predicated region
        $region85: #{tpu_custom_call.1} parent=83 // pred_check
          %p531 = pneg %p101
        $region86: #{tpu_custom_call.1} parent=83 // pred_check_branch
          %533 = sbr.rel (%p531) target = $region88
        $region87: #{tpu_custom_call.1} parent=83 // pred_region
          %534 = dma.done [#allocation3], 1024
        $region88: #{tpu_custom_call.1} parent=83 // pred_fallthru
          _
        // Predicated region
        $region89: #{tpu_custom_call.1} parent=83 // pred_check
          %p535 = pneg %p143
        $region90: #{tpu_custom_call.1} parent=83 // pred_check_branch
          %537 = sbr.rel (%p535) target = $region92
        $region91: #{tpu_custom_call.1} parent=83 // pred_region
          %538 = dma.done [#allocation6], 6144
        $region92: #{tpu_custom_call.1} parent=83 // pred_fallthru
          _
        // Predicated region
        $region93: #{tpu_custom_call.1} parent=83 // pred_check
          %p539 = pneg %p185
        $region94: #{tpu_custom_call.1} parent=83 // pred_check_branch
          %541 = sbr.rel (%p539) target = $region96
        $region95: #{tpu_custom_call.1} parent=83 // pred_region
          %542 = dma.done [#allocation6], 2048
        $region96: #{tpu_custom_call.1} parent=83 // pred_fallthru
          _
        // Predicated region
        $region97: #{tpu_custom_call.1} parent=83 // pred_check
          %p543 = pneg %p269
        $region98: #{tpu_custom_call.1} parent=83 // pred_check_branch
          %545 = sbr.rel (%p543) target = $region100
        $region99: #{tpu_custom_call.1} parent=83 // pred_region
          %546 = dma.done [#allocation9], 2048
        $region100: #{tpu_custom_call.1} parent=83 // pred_fallthru
          _
        // Predicated region
        $region101: #{tpu_custom_call.1} parent=83 // pred_check
          %p547 = pneg %p311
        $region102: #{tpu_custom_call.1} parent=83 // pred_check_branch
          %549 = sbr.rel (%p547) target = $region104
        $region103: #{tpu_custom_call.1} parent=83 // pred_region
          %550 = dma.done [#allocation9], 2048
        $region104: #{tpu_custom_call.1} parent=83 // pred_fallthru
          _
        %p551 = scmp.lt.s32.totalorder %s33, 1
        %s552 = scalar_select %p551, %s33, 1
        %s553 = scalar_lea.vmem %s0, %s552
        %p554 = pneg %p54
        %p555 = pneg %p51
        %p556 = scmp.lt.s32.totalorder %s33, 1
        %s557 = scalar_select %p556, %s33, 1
        %s558 = smul.addr %s557, 8
        %s559 = scalar_lea.vmem %s1, %s558
        %p560 = pneg %p80
        %p561 = pneg %p77
        %p562 = pneg %p101
        %p563 = pneg %p98
        %p564 = pneg %p122
        %p565 = pneg %p119
        %p566 = pneg %p143
        %p567 = pneg %p140
        %p568 = pneg %p164
        %p569 = pneg %p161
        %p570 = pneg %p185
        %p571 = pneg %p182
        %p572 = pneg %p206
        %p573 = pneg %p203
        %p574 = pneg %p227
        %p575 = pneg %p224
        %p576 = pneg %p248
        %p577 = pneg %p245
        %p578 = pneg %p269
        %p579 = pneg %p266
        %p580 = pneg %p290
        %p581 = pneg %p287
        %p582 = pneg %p311
        %p583 = pneg %p308
        %p584 = pneg %p332
        %p585 = pneg %p329
        %p586 = pneg %p353
        %p587 = pneg %p350
        %p588 = pneg %p374
        %p589 = pneg %p371
        %p590 = pneg %p400
        %p591 = pneg %p397
        %s592 = sand.u32 %s387, 1
        %s593 = scalar_lea.sflag [#allocation4], %s592
        %s594 = sand.u32 %s387, 1
        %s595 = smul.addr %s594, 8
        %s596 = scalar_lea.vmem [#allocation11], %s595
        %p597 = scmp.lt.s32.totalorder %s33, 1
        %s598 = scalar_select %p597, %s33, 1
        %s599 = scalar_lea.vmem %s0, %s598
        %p600 = scmp.lt.s32.totalorder %s33, 1
        %s601 = scalar_select %p600, %s33, 1
        %s602 = smul.addr %s601, 8
        %s603 = scalar_lea.vmem %s1, %s602
        %v605 = vld [vmem:[%s603] sm:$0xff]
        %v606 = vlaneseq
        %v607 = vand.u32 %v606, 127
        %608 = vset.pattern.permute.xlu0 0
        %609 = vperm.xlu0 %608, %v605
        %v610 = vpop.permute.xlu0 %609
        %vm611 = vcmp.eq.s32.totalorder %v610, %v607
        %v612 = vsel %vm611, 1, 0
        %v613 = vcvt.s32.f32 %v612
        %v614 = vld [vmem:[#allocation2] sm:$0xff]
        %v615 = vld [vmem:[#allocation2 + $0x8] sm:$0xff]
        %v616 = vld [vmem:[#allocation2 + $0x10] sm:$0xff]
        %v617 = vld [vmem:[#allocation2 + $0x18] sm:$0xff]
        %v618 = vld [vmem:[#allocation2 + $0x20] sm:$0xff]
        %v619 = vld [vmem:[#allocation2 + $0x28] sm:$0xff]
        %v620 = vld [vmem:[#allocation2 + $0x30] sm:$0xff]
        %v621 = vld [vmem:[#allocation2 + $0x38] sm:$0xff]
        %v622 = vld [vmem:[%s3] sm:$0xff]
        %vm623 = vcmask 523264
        %v625 = vsel %vm623, %v613, 0
        %627 = vmatprep.subr.mxu0 0.0
        %628 = vmatpush1.msra.mxu0 0.0
        %629 = vmatprep.subr.mxu0 0.0
        %630 = vmatpush1.msra.mxu0 0.0
        %631 = vmatprep.subr.mxu0 0.0
        %632 = vmatpush1.msra.mxu0 0.0
        %633 = vmatprep.subr.mxu0 0.0
        %634 = vmatpush1.msra.mxu0 0.0
        %635 = vmatprep.subr.mxu0 0.0
        %636 = vmatpush1.msra.mxu0 0.0
        %637 = vmatprep.subr.mxu0 0.0
        %638 = vmatpush1.msra.mxu0 0.0
        %639 = vmatprep.subr.mxu0 0.0
        %640 = vmatpush1.msra.mxu0 0.0
        %641 = vmatprep.subr.mxu0 0.0
        %642 = vmatpush1.msra.mxu0 0.0
        %643 = vmatprep.subr.mxu0 0.0
        %644 = vmatpush1.msra.mxu0 %v621
        %645 = vmatprep.subr.mxu0 0.0
        %646 = vmatpush1.msra.mxu0 %v620
        %647 = vmatprep.subr.mxu0 0.0
        %648 = vmatpush1.msra.mxu0 %v619
        %649 = vmatprep.subr.mxu0 0.0
        %650 = vmatpush1.msra.mxu0 %v618
        %651 = vmatprep.subr.mxu0 0.0
        %652 = vmatpush1.msra.mxu0 %v617
        %653 = vmatprep.subr.mxu0 0.0
        %654 = vmatpush1.msra.mxu0 %v616
        %655 = vmatprep.subr.mxu0 0.0
        %656 = vmatpush1.msra.mxu0 %v615
        %657 = vmatprep.subr.mxu0 0.0
        %658 = vmatpush1.msra.mxu0 %v614
        %659 = vmatprep.subr.mxu0 0.0
        %660 = vmatpush2.msra.mxu0 0.0
        %661 = vmatprep.subr.mxu0 0.0
        %662 = vmatpush2.msra.mxu0 0.0
        %663 = vmatprep.subr.mxu0 0.0
        %664 = vmatpush2.msra.mxu0 0.0
        %665 = vmatprep.subr.mxu0 0.0
        %666 = vmatpush2.msra.mxu0 0.0
        %667 = vmatprep.subr.mxu0 0.0
        %668 = vmatpush2.msra.mxu0 0.0
        %669 = vmatprep.subr.mxu0 0.0
        %670 = vmatpush2.msra.mxu0 0.0
        %671 = vmatprep.subr.mxu0 0.0
        %672 = vmatpush2.msra.mxu0 0.0
        %673 = vmatprep.subr.mxu0 0.0
        %674 = vmatpush2.msra.mxu0 0.0
        %675 = vmatprep.subr.mxu0 0.0
        %676 = vmatpush2.msra.mxu0 0.0
        %677 = vmatprep.subr.mxu0 0.0
        %678 = vmatpush2.msra.mxu0 0.0
        %679 = vmatprep.subr.mxu0 0.0
        %680 = vmatpush2.msra.mxu0 0.0
        %681 = vmatprep.subr.mxu0 0.0
        %682 = vmatpush2.msra.mxu0 0.0
        %683 = vmatprep.subr.mxu0 0.0
        %684 = vmatpush2.msra.mxu0 0.0
        %685 = vmatprep.subr.mxu0 0.0
        %686 = vmatpush2.msra.mxu0 0.0
        %687 = vmatprep.subr.mxu0 0.0
        %688 = vmatpush2.msra.mxu0 0.0
        %689 = vmatprep.subr.mxu0 0.0
        %690 = vmatpush2.msra.mxu0 0.0
        %691 = vmatprep.mubr.f32.mxu0 0.0
        %692 = vmatmul.mubr.f32.gmra.mxu0 %v625
        %v693 = vpop.f32.mrf.mxu0
        %v694 = vadd.f32 %v622, %v693
        %v695 = vpop.f32.mrf.mxu0
        %696 = vdwg.mxu0
        %v697 = vld [vmem:[%s599] sm:$0x1]
        %vm698 = vcmp.eq.s32.totalorder %v697, 0
        %v699 = vsel %vm698, -1e+09, 0.0
        %vm700 = vcmp.lt.s32.totalorder %v607, 32
        %v701 = vsel %vm700, 1, 0
        %v702 = vcvt.s32.f32 %v701
        %v703 = vpack.c.bf16 %v694, %v694
        %v704 = vld [vmem:[#allocation5] sm:$0xff]
        %v705 = vld [vmem:[#allocation5 + $0x8] sm:$0xf]
        %v706 = vld [vmem:[#allocation5 + $0xc] sm:$0xff]
        %v707 = vld [vmem:[#allocation5 + $0x14] sm:$0xf]
        %v708 = vld [vmem:[#allocation5 + $0x18] sm:$0xff]
        %v709 = vld [vmem:[#allocation5 + $0x20] sm:$0xf]
        %v710 = vld [vmem:[#allocation5 + $0x24] sm:$0xff]
        %v711 = vld [vmem:[#allocation5 + $0x2c] sm:$0xf]
        %v712 = vld [vmem:[#allocation5 + $0x30] sm:$0xff]
        %v713 = vld [vmem:[#allocation5 + $0x38] sm:$0xf]
        %v714 = vld [vmem:[#allocation5 + $0x3c] sm:$0xff]
        %v715 = vld [vmem:[#allocation5 + $0x44] sm:$0xf]
        %v716 = vld [vmem:[#allocation5 + $0x48] sm:$0xff]
        %v717 = vld [vmem:[#allocation5 + $0x50] sm:$0xf]
        %v718 = vld [vmem:[#allocation5 + $0x54] sm:$0xff]
        %v719 = vld [vmem:[#allocation5 + $0x5c] sm:$0xf]
        %v720 = vld [vmem:[#allocation5 + $0x60] sm:$0xff]
        %v721 = vld [vmem:[#allocation5 + $0x68] sm:$0xf]
        %v722 = vld [vmem:[#allocation5 + $0x6c] sm:$0xff]
        %v723 = vld [vmem:[#allocation5 + $0x74] sm:$0xf]
        %v724 = vld [vmem:[#allocation5 + $0x78] sm:$0xff]
        %v725 = vld [vmem:[#allocation5 + $0x80] sm:$0xf]
        %v726 = vld [vmem:[#allocation5 + $0x84] sm:$0xff]
        %v727 = vld [vmem:[#allocation5 + $0x8c] sm:$0xf]
        %v728 = vld [vmem:[#allocation5 + $0x90] sm:$0xff]
        %v729 = vld [vmem:[#allocation5 + $0x98] sm:$0xf]
        %v730 = vld [vmem:[#allocation5 + $0x9c] sm:$0xff]
        %v731 = vld [vmem:[#allocation5 + $0xa4] sm:$0xf]
        %v732 = vld [vmem:[#allocation5 + $0xa8] sm:$0xff]
        %v733 = vld [vmem:[#allocation5 + $0xb0] sm:$0xf]
        %v734 = vld [vmem:[#allocation5 + $0xb4] sm:$0xff]
        %v735 = vld [vmem:[#allocation5 + $0xbc] sm:$0xf]
        %v736 = vld [vmem:[%s5] sm:$0x7]
        %v738 = vlaneseq
        %v739 = vshrl.u32 %v738, 7
        %v740 = vsub.s32 0, %v739
        %v741 = vrot.slane %v736, %v740
        %v742 = vlaneseq
        %v743 = vshrl.u32 %v742, 7
        %v744 = vsub.s32 1, %v743
        %v745 = vrot.slane %v736, %v744
        %v746 = vlaneseq
        %v747 = vshrl.u32 %v746, 7
        %v748 = vsub.s32 2, %v747
        %v749 = vrot.slane %v736, %v748
        %v785 = vunpack.c.l.b16 %v704
        %v786 = vunpack.c.h.b16 %v704
        %v787 = vunpack.c.l.b16 %v705
        %v788 = vunpack.c.l.b16 %v706
        %v789 = vunpack.c.h.b16 %v706
        %v790 = vunpack.c.l.b16 %v707
        %v791 = vunpack.c.l.b16 %v708
        %v792 = vunpack.c.h.b16 %v708
        %v793 = vunpack.c.l.b16 %v709
        %v794 = vunpack.c.l.b16 %v710
        %v795 = vunpack.c.h.b16 %v710
        %v796 = vunpack.c.l.b16 %v711
        %v797 = vunpack.c.l.b16 %v712
        %v798 = vunpack.c.h.b16 %v712
        %v799 = vunpack.c.l.b16 %v713
        %v800 = vunpack.c.l.b16 %v714
        %v801 = vunpack.c.h.b16 %v714
        %v802 = vunpack.c.l.b16 %v715
        %v803 = vunpack.c.l.b16 %v716
        %v804 = vunpack.c.h.b16 %v716
        %v805 = vunpack.c.l.b16 %v717
        %v806 = vunpack.c.l.b16 %v718
        %v807 = vunpack.c.h.b16 %v718
        %v808 = vunpack.c.l.b16 %v719
        %v809 = vunpack.c.l.b16 %v720
        %v810 = vunpack.c.h.b16 %v720
        %v811 = vunpack.c.l.b16 %v721
        %v812 = vunpack.c.l.b16 %v722
        %v813 = vunpack.c.h.b16 %v722
        %v814 = vunpack.c.l.b16 %v723
        %v815 = vunpack.c.l.b16 %v724
        %v816 = vunpack.c.h.b16 %v724
        %v817 = vunpack.c.l.b16 %v725
        %v818 = vunpack.c.l.b16 %v726
        %v819 = vunpack.c.h.b16 %v726
        %v820 = vunpack.c.l.b16 %v727
        %v821 = vunpack.c.l.b16 %v728
        %v822 = vunpack.c.h.b16 %v728
        %v823 = vunpack.c.l.b16 %v729
        %v824 = vunpack.c.l.b16 %v730
        %v825 = vunpack.c.h.b16 %v730
        %v826 = vunpack.c.l.b16 %v731
        %v827 = vunpack.c.l.b16 %v732
        %v828 = vunpack.c.h.b16 %v732
        %v829 = vunpack.c.l.b16 %v733
        %v830 = vunpack.c.l.b16 %v734
        %v831 = vunpack.c.h.b16 %v734
        %v832 = vunpack.c.l.b16 %v735
        %v833 = vpack.c.b16 %v788, %v785
        %v834 = vpack.c.b16 %v789, %v786
        %v835 = vpack.c.b16 %v790, %v787
        %v836 = vpack.c.b16 %v794, %v791
        %v837 = vpack.c.b16 %v795, %v792
        %v838 = vpack.c.b16 %v796, %v793
        %v839 = vpack.c.b16 %v800, %v797
        %v840 = vpack.c.b16 %v801, %v798
        %v841 = vpack.c.b16 %v802, %v799
        %v842 = vpack.c.b16 %v806, %v803
        %v843 = vpack.c.b16 %v807, %v804
        %v844 = vpack.c.b16 %v808, %v805
        %v845 = vpack.c.b16 %v812, %v809
        %v846 = vpack.c.b16 %v813, %v810
        %v847 = vpack.c.b16 %v814, %v811
        %v848 = vpack.c.b16 %v818, %v815
        %v849 = vpack.c.b16 %v819, %v816
        %v850 = vpack.c.b16 %v820, %v817
        %v851 = vpack.c.b16 %v824, %v821
        %v852 = vpack.c.b16 %v825, %v822
        %v853 = vpack.c.b16 %v826, %v823
        %v854 = vpack.c.b16 %v830, %v827
        %v855 = vpack.c.b16 %v831, %v828
        %v856 = vpack.c.b16 %v832, %v829
        %881 = vmatprep.subr.bf16.mxu0 %v855
        %882 = vmatpush1.bf16.msra.mxu0 %v854
        %883 = vmatprep.subr.bf16.mxu0 %v852
        %884 = vmatpush1.bf16.msra.mxu0 %v851
        %885 = vmatprep.subr.bf16.mxu0 %v849
        %886 = vmatpush1.bf16.msra.mxu0 %v848
        %887 = vmatprep.subr.bf16.mxu0 %v846
        %888 = vmatpush1.bf16.msra.mxu0 %v845
        %889 = vmatprep.subr.bf16.mxu0 %v843
        %890 = vmatpush1.bf16.msra.mxu0 %v842
        %891 = vmatprep.subr.bf16.mxu0 %v840
        %892 = vmatpush1.bf16.msra.mxu0 %v839
        %893 = vmatprep.subr.bf16.mxu0 %v837
        %894 = vmatpush1.bf16.msra.mxu0 %v836
        %895 = vmatprep.subr.bf16.mxu0 %v834
        %896 = vmatpush1.bf16.msra.mxu0 %v833
        %897 = vmatprep.subr.bf16.mxu0 0
        %898 = vmatpush2.bf16.msra.mxu0 0
        %899 = vmatprep.subr.bf16.mxu0 0
        %900 = vmatpush2.bf16.msra.mxu0 0
        %901 = vmatprep.subr.bf16.mxu0 0
        %902 = vmatpush2.bf16.msra.mxu0 0
        %903 = vmatprep.subr.bf16.mxu0 0
        %904 = vmatpush2.bf16.msra.mxu0 0
        %905 = vmatprep.subr.bf16.mxu0 0
        %906 = vmatpush2.bf16.msra.mxu0 0
        %907 = vmatprep.subr.bf16.mxu0 0
        %908 = vmatpush2.bf16.msra.mxu0 0
        %909 = vmatprep.subr.bf16.mxu0 0
        %910 = vmatpush2.bf16.msra.mxu0 0
        %911 = vmatprep.subr.bf16.mxu0 0
        %912 = vmatpush2.bf16.msra.mxu0 0
        %913 = vmatprep.mubr.bf16.mxu0 0
        %914 = vmatmul.mubr.bf16.gmra.mxu0 %v703
        %v915 = vpop.f32.mrf.mxu0
        %v916 = vadd.f32 %v741, %v915
        %v917 = vpop.f32.mrf.mxu0
        %v918 = vadd.f32 %v745, %v917
        %v919 = vpop.f32.mrf.mxu0
        %v920 = vpop.f32.mrf.mxu0
        %921 = vdwg.mxu0
        %922 = vmatprep.subr.bf16.mxu0 0
        %923 = vmatpush1.bf16.msra.mxu0 %v856
        %924 = vmatprep.subr.bf16.mxu0 0
        %925 = vmatpush1.bf16.msra.mxu0 %v853
        %926 = vmatprep.subr.bf16.mxu0 0
        %927 = vmatpush1.bf16.msra.mxu0 %v850
        %928 = vmatprep.subr.bf16.mxu0 0
        %929 = vmatpush1.bf16.msra.mxu0 %v847
        %930 = vmatprep.subr.bf16.mxu0 0
        %931 = vmatpush1.bf16.msra.mxu0 %v844
        %932 = vmatprep.subr.bf16.mxu0 0
        %933 = vmatpush1.bf16.msra.mxu0 %v841
        %934 = vmatprep.subr.bf16.mxu0 0
        %935 = vmatpush1.bf16.msra.mxu0 %v838
        %936 = vmatprep.subr.bf16.mxu0 0
        %937 = vmatpush1.bf16.msra.mxu0 %v835
        %938 = vmatprep.subr.bf16.mxu0 0
        %939 = vmatpush2.bf16.msra.mxu0 0
        %940 = vmatprep.subr.bf16.mxu0 0
        %941 = vmatpush2.bf16.msra.mxu0 0
        %942 = vmatprep.subr.bf16.mxu0 0
        %943 = vmatpush2.bf16.msra.mxu0 0
        %944 = vmatprep.subr.bf16.mxu0 0
        %945 = vmatpush2.bf16.msra.mxu0 0
        %946 = vmatprep.subr.bf16.mxu0 0
        %947 = vmatpush2.bf16.msra.mxu0 0
        %948 = vmatprep.subr.bf16.mxu0 0
        %949 = vmatpush2.bf16.msra.mxu0 0
        %950 = vmatprep.subr.bf16.mxu0 0
        %951 = vmatpush2.bf16.msra.mxu0 0
        %952 = vmatprep.subr.bf16.mxu0 0
        %953 = vmatpush2.bf16.msra.mxu0 0
        %954 = vmatprep.mubr.bf16.mxu0 0
        %955 = vmatmul.mubr.bf16.gmra.mxu0 %v703
        %v956 = vpop.f32.mrf.mxu0
        %v957 = vadd.f32 %v749, %v956
        %v958 = vpop.f32.mrf.mxu0
        %v959 = vpop.f32.mrf.mxu0
        %v960 = vpop.f32.mrf.mxu0
        %961 = vdwg.mxu0
        %963 = vrot.lane.b32.xlu0 %v916, 96
        %v964 = vpop.permute.xlu0 %963
        %966 = vrot.lane.b32.xlu0 %v916, 64
        %v967 = vpop.permute.xlu0 %966
        %969 = vrot.lane.b32.xlu0 %v916, 32
        %v970 = vpop.permute.xlu0 %969
        %v972 = vpack.c.bf16 %v916, %v916
        %v973 = vpack.c.bf16 %v964, %v964
        %v974 = vpack.c.bf16 %v967, %v967
        %v975 = vpack.c.bf16 %v970, %v970
        %977 = vrot.lane.b32.xlu0 %v918, 96
        %v978 = vpop.permute.xlu0 %977
        %980 = vrot.lane.b32.xlu0 %v918, 64
        %v981 = vpop.permute.xlu0 %980
        %983 = vrot.lane.b32.xlu0 %v918, 32
        %v984 = vpop.permute.xlu0 %983
        %v986 = vpack.c.bf16 %v918, %v918
        %v987 = vpack.c.bf16 %v978, %v978
        %v988 = vpack.c.bf16 %v981, %v981
        %v989 = vpack.c.bf16 %v984, %v984
        %991 = vrot.lane.b32.xlu0 %v957, 96
        %v992 = vpop.permute.xlu0 %991
        %994 = vrot.lane.b32.xlu0 %v957, 64
        %v995 = vpop.permute.xlu0 %994
        %997 = vrot.lane.b32.xlu0 %v957, 32
        %v998 = vpop.permute.xlu0 %997
        %v1000 = vpack.c.bf16 %v957, %v957
        %v1001 = vpack.c.bf16 %v992, %v992
        %v1002 = vpack.c.bf16 %v995, %v995
        %v1003 = vpack.c.bf16 %v998, %v998
        %v1005 = vlaneseq
        %v1006 = vshrl.u32 %v1005, 7
        %v1007 = vsub.s32 0, %v1006
        %v1008 = vrot.slane %v699, %v1007
        %vm1010 = vcmask 261120
        %v1012 = vsel %vm1010, %v972, 0
        %v1015 = vsel %vm1010, %v986, 0
        %1017 = vmatprep.subr.bf16.mxu0 0
        %1018 = vmatpush1.bf16.xpose.msra.mxu0 0
        %1019 = vmatprep.subr.bf16.mxu0 0
        %1020 = vmatpush1.bf16.xpose.msra.mxu0 0
        %1021 = vmatprep.subr.bf16.mxu0 0
        %1022 = vmatpush1.bf16.xpose.msra.mxu0 0
        %1023 = vmatprep.subr.bf16.mxu0 0
        %1024 = vmatpush1.bf16.xpose.msra.mxu0 0
        %1025 = vmatprep.subr.bf16.mxu0 0
        %1026 = vmatpush1.bf16.xpose.msra.mxu0 0
        %1027 = vmatprep.subr.bf16.mxu0 0
        %1028 = vmatpush1.bf16.xpose.msra.mxu0 0
        %1029 = vmatprep.subr.bf16.mxu0 0
        %1030 = vmatpush1.bf16.xpose.msra.mxu0 0
        %1031 = vmatprep.subr.bf16.mxu0 0
        %1032 = vmatpush1.bf16.xpose.msra.mxu0 %v1015
        %1033 = vmatprep.subr.bf16.mxu0 0
        %1034 = vmatpush2.bf16.xpose.msra.mxu0 0
        %1035 = vmatprep.subr.bf16.mxu0 0
        %1036 = vmatpush2.bf16.xpose.msra.mxu0 0
        %1037 = vmatprep.subr.bf16.mxu0 0
        %1038 = vmatpush2.bf16.xpose.msra.mxu0 0
        %1039 = vmatprep.subr.bf16.mxu0 0
        %1040 = vmatpush2.bf16.xpose.msra.mxu0 0
        %1041 = vmatprep.subr.bf16.mxu0 0
        %1042 = vmatpush2.bf16.xpose.msra.mxu0 0
        %1043 = vmatprep.subr.bf16.mxu0 0
        %1044 = vmatpush2.bf16.xpose.msra.mxu0 0
        %1045 = vmatprep.subr.bf16.mxu0 0
        %1046 = vmatpush2.bf16.xpose.msra.mxu0 0
        %1047 = vmatprep.subr.bf16.mxu0 0
        %1048 = vmatpush2.bf16.xpose.msra.mxu0 0
        %1049 = vmatprep.mubr.bf16.mxu0 0
        %1050 = vmatmul.mubr.bf16.gmra.mxu0 %v1012
        %v1051 = vpop.f32.mrf.mxu0
        %v1052 = vadd.f32 %v1008, %v1051
        %v1053 = vpop.f32.mrf.mxu0
        %v1054 = vpop.f32.mrf.mxu0
        %v1055 = vpop.f32.mrf.mxu0
        %1056 = vdwg.mxu0
        %v1058 = vsel %vm1010, %v973, 0
        %v1061 = vsel %vm1010, %v987, 0
        %1063 = vmatprep.subr.bf16.mxu0 0
        %1064 = vmatpush1.bf16.xpose.msra.mxu0 0
        %1065 = vmatprep.subr.bf16.mxu0 0
        %1066 = vmatpush1.bf16.xpose.msra.mxu0 0
        %1067 = vmatprep.subr.bf16.mxu0 0
        %1068 = vmatpush1.bf16.xpose.msra.mxu0 0
        %1069 = vmatprep.subr.bf16.mxu0 0
        %1070 = vmatpush1.bf16.xpose.msra.mxu0 0
        %1071 = vmatprep.subr.bf16.mxu0 0
        %1072 = vmatpush1.bf16.xpose.msra.mxu0 0
        %1073 = vmatprep.subr.bf16.mxu0 0
        %1074 = vmatpush1.bf16.xpose.msra.mxu0 0
        %1075 = vmatprep.subr.bf16.mxu0 0
        %1076 = vmatpush1.bf16.xpose.msra.mxu0 0
        %1077 = vmatprep.subr.bf16.mxu0 0
        %1078 = vmatpush1.bf16.xpose.msra.mxu0 %v1061
        %1079 = vmatprep.subr.bf16.mxu0 0
        %1080 = vmatpush2.bf16.xpose.msra.mxu0 0
        %1081 = vmatprep.subr.bf16.mxu0 0
        %1082 = vmatpush2.bf16.xpose.msra.mxu0 0
        %1083 = vmatprep.subr.bf16.mxu0 0
        %1084 = vmatpush2.bf16.xpose.msra.mxu0 0
        %1085 = vmatprep.subr.bf16.mxu0 0
        %1086 = vmatpush2.bf16.xpose.msra.mxu0 0
        %1087 = vmatprep.subr.bf16.mxu0 0
        %1088 = vmatpush2.bf16.xpose.msra.mxu0 0
        %1089 = vmatprep.subr.bf16.mxu0 0
        %1090 = vmatpush2.bf16.xpose.msra.mxu0 0
        %1091 = vmatprep.subr.bf16.mxu0 0
        %1092 = vmatpush2.bf16.xpose.msra.mxu0 0
        %1093 = vmatprep.subr.bf16.mxu0 0
        %1094 = vmatpush2.bf16.xpose.msra.mxu0 0
        %1095 = vmatprep.mubr.bf16.mxu0 0
        %1096 = vmatmul.mubr.bf16.gmra.mxu0 %v1058
        %v1097 = vpop.f32.mrf.mxu0
        %v1098 = vadd.f32 %v1008, %v1097
        %v1099 = vpop.f32.mrf.mxu0
        %v1100 = vpop.f32.mrf.mxu0
        %v1101 = vpop.f32.mrf.mxu0
        %1102 = vdwg.mxu0
        %v1104 = vsel %vm1010, %v974, 0
        %v1107 = vsel %vm1010, %v988, 0
        %1109 = vmatprep.subr.bf16.mxu0 0
        %1110 = vmatpush1.bf16.xpose.msra.mxu0 0
        %1111 = vmatprep.subr.bf16.mxu0 0
        %1112 = vmatpush1.bf16.xpose.msra.mxu0 0
        %1113 = vmatprep.subr.bf16.mxu0 0
        %1114 = vmatpush1.bf16.xpose.msra.mxu0 0
        %1115 = vmatprep.subr.bf16.mxu0 0
        %1116 = vmatpush1.bf16.xpose.msra.mxu0 0
        %1117 = vmatprep.subr.bf16.mxu0 0
        %1118 = vmatpush1.bf16.xpose.msra.mxu0 0
        %1119 = vmatprep.subr.bf16.mxu0 0
        %1120 = vmatpush1.bf16.xpose.msra.mxu0 0
        %1121 = vmatprep.subr.bf16.mxu0 0
        %1122 = vmatpush1.bf16.xpose.msra.mxu0 0
        %1123 = vmatprep.subr.bf16.mxu0 0
        %1124 = vmatpush1.bf16.xpose.msra.mxu0 %v1107
        %1125 = vmatprep.subr.bf16.mxu0 0
        %1126 = vmatpush2.bf16.xpose.msra.mxu0 0
        %1127 = vmatprep.subr.bf16.mxu0 0
        %1128 = vmatpush2.bf16.xpose.msra.mxu0 0
        %1129 = vmatprep.subr.bf16.mxu0 0
        %1130 = vmatpush2.bf16.xpose.msra.mxu0 0
        %1131 = vmatprep.subr.bf16.mxu0 0
        %1132 = vmatpush2.bf16.xpose.msra.mxu0 0
        %1133 = vmatprep.subr.bf16.mxu0 0
        %1134 = vmatpush2.bf16.xpose.msra.mxu0 0
        %1135 = vmatprep.subr.bf16.mxu0 0
        %1136 = vmatpush2.bf16.xpose.msra.mxu0 0
        %1137 = vmatprep.subr.bf16.mxu0 0
        %1138 = vmatpush2.bf16.xpose.msra.mxu0 0
        %1139 = vmatprep.subr.bf16.mxu0 0
        %1140 = vmatpush2.bf16.xpose.msra.mxu0 0
        %1141 = vmatprep.mubr.bf16.mxu0 0
        %1142 = vmatmul.mubr.bf16.gmra.mxu0 %v1104
        %v1143 = vpop.f32.mrf.mxu0
        %v1144 = vadd.f32 %v1008, %v1143
        %v1145 = vpop.f32.mrf.mxu0
        %v1146 = vpop.f32.mrf.mxu0
        %v1147 = vpop.f32.mrf.mxu0
        %1148 = vdwg.mxu0
        %v1150 = vsel %vm1010, %v975, 0
        %v1153 = vsel %vm1010, %v989, 0
        %1155 = vmatprep.subr.bf16.mxu0 0
        %1156 = vmatpush1.bf16.xpose.msra.mxu0 0
        %1157 = vmatprep.subr.bf16.mxu0 0
        %1158 = vmatpush1.bf16.xpose.msra.mxu0 0
        %1159 = vmatprep.subr.bf16.mxu0 0
        %1160 = vmatpush1.bf16.xpose.msra.mxu0 0
        %1161 = vmatprep.subr.bf16.mxu0 0
        %1162 = vmatpush1.bf16.xpose.msra.mxu0 0
        %1163 = vmatprep.subr.bf16.mxu0 0
        %1164 = vmatpush1.bf16.xpose.msra.mxu0 0
        %1165 = vmatprep.subr.bf16.mxu0 0
        %1166 = vmatpush1.bf16.xpose.msra.mxu0 0
        %1167 = vmatprep.subr.bf16.mxu0 0
        %1168 = vmatpush1.bf16.xpose.msra.mxu0 0
        %1169 = vmatprep.subr.bf16.mxu0 0
        %1170 = vmatpush1.bf16.xpose.msra.mxu0 %v1153
        %1171 = vmatprep.subr.bf16.mxu0 0
        %1172 = vmatpush2.bf16.xpose.msra.mxu0 0
        %1173 = vmatprep.subr.bf16.mxu0 0
        %1174 = vmatpush2.bf16.xpose.msra.mxu0 0
        %1175 = vmatprep.subr.bf16.mxu0 0
        %1176 = vmatpush2.bf16.xpose.msra.mxu0 0
        %1177 = vmatprep.subr.bf16.mxu0 0
        %1178 = vmatpush2.bf16.xpose.msra.mxu0 0
        %1179 = vmatprep.subr.bf16.mxu0 0
        %1180 = vmatpush2.bf16.xpose.msra.mxu0 0
        %1181 = vmatprep.subr.bf16.mxu0 0
        %1182 = vmatpush2.bf16.xpose.msra.mxu0 0
        %1183 = vmatprep.subr.bf16.mxu0 0
        %1184 = vmatpush2.bf16.xpose.msra.mxu0 0
        %1185 = vmatprep.subr.bf16.mxu0 0
        %1186 = vmatpush2.bf16.xpose.msra.mxu0 0
        %1187 = vmatprep.mubr.bf16.mxu0 0
        %1188 = vmatmul.mubr.bf16.gmra.mxu0 %v1150
        %v1189 = vpop.f32.mrf.mxu0
        %v1190 = vadd.f32 %v1008, %v1189
        %v1191 = vpop.f32.mrf.mxu0
        %v1192 = vpop.f32.mrf.mxu0
        %v1193 = vpop.f32.mrf.mxu0
        %1194 = vdwg.mxu0
        %vm1195 = vcmask 64512
        %v1196 = vsel %vm1195, %v1052, -inf
        %1197 = vmax.xlane.f32.xlu0 %v1196
        %v1198 = vpop.xlane.xlu0 %1197
        %v1199 = vsel %vm1195, %v1098, -inf
        %1200 = vmax.xlane.f32.xlu0 %v1199
        %v1201 = vpop.xlane.xlu0 %1200
        %v1202 = vsel %vm1195, %v1144, -inf
        %1203 = vmax.xlane.f32.xlu0 %v1202
        %v1204 = vpop.xlane.xlu0 %1203
        %v1205 = vsel %vm1195, %v1190, -inf
        %1206 = vmax.xlane.f32.xlu0 %v1205
        %v1207 = vpop.xlane.xlu0 %1206
        %v1208 = vsub.f32 %v1052, %v1198
        %v1209 = vsub.f32 %v1098, %v1201
        %v1210 = vsub.f32 %v1144, %v1204
        %v1211 = vsub.f32 %v1190, %v1207
        %v1212 = vmul.f32 %v1208, 1.442695
        %v1213 = vpow.pop %v1212
        %v1214 = vmul.f32 %v1209, 1.442695
        %v1215 = vpow.pop %v1214
        %v1216 = vmul.f32 %v1210, 1.442695
        %v1217 = vpow.pop %v1216
        %v1218 = vmul.f32 %v1211, 1.442695
        %v1219 = vpow.pop %v1218
        %v1220 = vsel %vm1195, %v1213, 0.0
        %1221 = vadd.xlane.f32.xlu0 %v1220
        %v1222 = vpop.xlane.xlu0 %1221
        %v1223 = vsel %vm1195, %v1215, 0.0
        %1224 = vadd.xlane.f32.xlu0 %v1223
        %v1225 = vpop.xlane.xlu0 %1224
        %v1226 = vsel %vm1195, %v1217, 0.0
        %1227 = vadd.xlane.f32.xlu0 %v1226
        %v1228 = vpop.xlane.xlu0 %1227
        %v1229 = vsel %vm1195, %v1219, 0.0
        %1230 = vadd.xlane.f32.xlu0 %v1229
        %v1231 = vpop.xlane.xlu0 %1230
        %v1232 = vrcp.pop %v1222
        %v1233 = vmul.f32 %v1213, %v1232
        %v1234 = vrcp.pop %v1225
        %v1235 = vmul.f32 %v1215, %v1234
        %v1236 = vrcp.pop %v1228
        %v1237 = vmul.f32 %v1217, %v1236
        %v1238 = vrcp.pop %v1231
        %v1239 = vmul.f32 %v1219, %v1238
        %v1240 = vpack.c.bf16 %v1233, %v1233
        %v1241 = vpack.c.bf16 %v1235, %v1235
        %v1242 = vpack.c.bf16 %v1237, %v1237
        %v1243 = vpack.c.bf16 %v1239, %v1239
        %v1245 = vsel %vm1195, %v1240, 0
        %vm1247 = vcmask 1043456
        %v1249 = vsel %vm1247, %v1000, 0
        %1251 = vmatprep.subr.bf16.mxu0 0
        %1252 = vmatpush1.bf16.msra.mxu0 0
        %1253 = vmatprep.subr.bf16.mxu0 0
        %1254 = vmatpush1.bf16.msra.mxu0 0
        %1255 = vmatprep.subr.bf16.mxu0 0
        %1256 = vmatpush1.bf16.msra.mxu0 0
        %1257 = vmatprep.subr.bf16.mxu0 0
        %1258 = vmatpush1.bf16.msra.mxu0 0
        %1259 = vmatprep.subr.bf16.mxu0 0
        %1260 = vmatpush1.bf16.msra.mxu0 0
        %1261 = vmatprep.subr.bf16.mxu0 0
        %1262 = vmatpush1.bf16.msra.mxu0 0
        %1263 = vmatprep.subr.bf16.mxu0 0
        %1264 = vmatpush1.bf16.msra.mxu0 0
        %1265 = vmatprep.subr.bf16.mxu0 0
        %1266 = vmatpush1.bf16.msra.mxu0 %v1249
        %1267 = vmatprep.subr.bf16.mxu0 0
        %1268 = vmatpush2.bf16.msra.mxu0 0
        %1269 = vmatprep.subr.bf16.mxu0 0
        %1270 = vmatpush2.bf16.msra.mxu0 0
        %1271 = vmatprep.subr.bf16.mxu0 0
        %1272 = vmatpush2.bf16.msra.mxu0 0
        %1273 = vmatprep.subr.bf16.mxu0 0
        %1274 = vmatpush2.bf16.msra.mxu0 0
        %1275 = vmatprep.subr.bf16.mxu0 0
        %1276 = vmatpush2.bf16.msra.mxu0 0
        %1277 = vmatprep.subr.bf16.mxu0 0
        %1278 = vmatpush2.bf16.msra.mxu0 0
        %1279 = vmatprep.subr.bf16.mxu0 0
        %1280 = vmatpush2.bf16.msra.mxu0 0
        %1281 = vmatprep.subr.bf16.mxu0 0
        %1282 = vmatpush2.bf16.msra.mxu0 0
        %1283 = vmatprep.mubr.bf16.mxu0 0
        %1284 = vmatmul.mubr.bf16.gmra.mxu0 %v1245
        %v1285 = vpop.f32.mrf.mxu0
        %v1286 = vadd.f32 0.0, %v1285
        %v1287 = vpop.f32.mrf.mxu0
        %v1288 = vpop.f32.mrf.mxu0
        %v1289 = vpop.f32.mrf.mxu0
        %1290 = vdwg.mxu0
        %v1292 = vsel %vm1195, %v1241, 0
        %v1295 = vsel %vm1247, %v1001, 0
        %1297 = vmatprep.subr.bf16.mxu0 0
        %1298 = vmatpush1.bf16.msra.mxu0 0
        %1299 = vmatprep.subr.bf16.mxu0 0
        %1300 = vmatpush1.bf16.msra.mxu0 0
        %1301 = vmatprep.subr.bf16.mxu0 0
        %1302 = vmatpush1.bf16.msra.mxu0 0
        %1303 = vmatprep.subr.bf16.mxu0 0
        %1304 = vmatpush1.bf16.msra.mxu0 0
        %1305 = vmatprep.subr.bf16.mxu0 0
        %1306 = vmatpush1.bf16.msra.mxu0 0
        %1307 = vmatprep.subr.bf16.mxu0 0
        %1308 = vmatpush1.bf16.msra.mxu0 0
        %1309 = vmatprep.subr.bf16.mxu0 0
        %1310 = vmatpush1.bf16.msra.mxu0 0
        %1311 = vmatprep.subr.bf16.mxu0 0
        %1312 = vmatpush1.bf16.msra.mxu0 %v1295
        %1313 = vmatprep.subr.bf16.mxu0 0
        %1314 = vmatpush2.bf16.msra.mxu0 0
        %1315 = vmatprep.subr.bf16.mxu0 0
        %1316 = vmatpush2.bf16.msra.mxu0 0
        %1317 = vmatprep.subr.bf16.mxu0 0
        %1318 = vmatpush2.bf16.msra.mxu0 0
        %1319 = vmatprep.subr.bf16.mxu0 0
        %1320 = vmatpush2.bf16.msra.mxu0 0
        %1321 = vmatprep.subr.bf16.mxu0 0
        %1322 = vmatpush2.bf16.msra.mxu0 0
        %1323 = vmatprep.subr.bf16.mxu0 0
        %1324 = vmatpush2.bf16.msra.mxu0 0
        %1325 = vmatprep.subr.bf16.mxu0 0
        %1326 = vmatpush2.bf16.msra.mxu0 0
        %1327 = vmatprep.subr.bf16.mxu0 0
        %1328 = vmatpush2.bf16.msra.mxu0 0
        %1329 = vmatprep.mubr.bf16.mxu0 0
        %1330 = vmatmul.mubr.bf16.gmra.mxu0 %v1292
        %v1331 = vpop.f32.mrf.mxu0
        %v1332 = vadd.f32 0.0, %v1331
        %v1333 = vpop.f32.mrf.mxu0
        %v1334 = vpop.f32.mrf.mxu0
        %v1335 = vpop.f32.mrf.mxu0
        %1336 = vdwg.mxu0
        %v1338 = vsel %vm1195, %v1242, 0
        %v1341 = vsel %vm1247, %v1002, 0
        %1343 = vmatprep.subr.bf16.mxu0 0
        %1344 = vmatpush1.bf16.msra.mxu0 0
        %1345 = vmatprep.subr.bf16.mxu0 0
        %1346 = vmatpush1.bf16.msra.mxu0 0
        %1347 = vmatprep.subr.bf16.mxu0 0
        %1348 = vmatpush1.bf16.msra.mxu0 0
        %1349 = vmatprep.subr.bf16.mxu0 0
        %1350 = vmatpush1.bf16.msra.mxu0 0
        %1351 = vmatprep.subr.bf16.mxu0 0
        %1352 = vmatpush1.bf16.msra.mxu0 0
        %1353 = vmatprep.subr.bf16.mxu0 0
        %1354 = vmatpush1.bf16.msra.mxu0 0
        %1355 = vmatprep.subr.bf16.mxu0 0
        %1356 = vmatpush1.bf16.msra.mxu0 0
        %1357 = vmatprep.subr.bf16.mxu0 0
        %1358 = vmatpush1.bf16.msra.mxu0 %v1341
        %1359 = vmatprep.subr.bf16.mxu0 0
        %1360 = vmatpush2.bf16.msra.mxu0 0
        %1361 = vmatprep.subr.bf16.mxu0 0
        %1362 = vmatpush2.bf16.msra.mxu0 0
        %1363 = vmatprep.subr.bf16.mxu0 0
        %1364 = vmatpush2.bf16.msra.mxu0 0
        %1365 = vmatprep.subr.bf16.mxu0 0
        %1366 = vmatpush2.bf16.msra.mxu0 0
        %1367 = vmatprep.subr.bf16.mxu0 0
        %1368 = vmatpush2.bf16.msra.mxu0 0
        %1369 = vmatprep.subr.bf16.mxu0 0
        %1370 = vmatpush2.bf16.msra.mxu0 0
        %1371 = vmatprep.subr.bf16.mxu0 0
        %1372 = vmatpush2.bf16.msra.mxu0 0
        %1373 = vmatprep.subr.bf16.mxu0 0
        %1374 = vmatpush2.bf16.msra.mxu0 0
        %1375 = vmatprep.mubr.bf16.mxu0 0
        %1376 = vmatmul.mubr.bf16.gmra.mxu0 %v1338
        %v1377 = vpop.f32.mrf.mxu0
        %v1378 = vadd.f32 0.0, %v1377
        %v1379 = vpop.f32.mrf.mxu0
        %v1380 = vpop.f32.mrf.mxu0
        %v1381 = vpop.f32.mrf.mxu0
        %1382 = vdwg.mxu0
        %v1384 = vsel %vm1195, %v1243, 0
        %v1387 = vsel %vm1247, %v1003, 0
        %1389 = vmatprep.subr.bf16.mxu0 0
        %1390 = vmatpush1.bf16.msra.mxu0 0
        %1391 = vmatprep.subr.bf16.mxu0 0
        %1392 = vmatpush1.bf16.msra.mxu0 0
        %1393 = vmatprep.subr.bf16.mxu0 0
        %1394 = vmatpush1.bf16.msra.mxu0 0
        %1395 = vmatprep.subr.bf16.mxu0 0
        %1396 = vmatpush1.bf16.msra.mxu0 0
        %1397 = vmatprep.subr.bf16.mxu0 0
        %1398 = vmatpush1.bf16.msra.mxu0 0
        %1399 = vmatprep.subr.bf16.mxu0 0
        %1400 = vmatpush1.bf16.msra.mxu0 0
        %1401 = vmatprep.subr.bf16.mxu0 0
        %1402 = vmatpush1.bf16.msra.mxu0 0
        %1403 = vmatprep.subr.bf16.mxu0 0
        %1404 = vmatpush1.bf16.msra.mxu0 %v1387
        %1405 = vmatprep.subr.bf16.mxu0 0
        %1406 = vmatpush2.bf16.msra.mxu0 0
        %1407 = vmatprep.subr.bf16.mxu0 0
        %1408 = vmatpush2.bf16.msra.mxu0 0
        %1409 = vmatprep.subr.bf16.mxu0 0
        %1410 = vmatpush2.bf16.msra.mxu0 0
        %1411 = vmatprep.subr.bf16.mxu0 0
        %1412 = vmatpush2.bf16.msra.mxu0 0
        %1413 = vmatprep.subr.bf16.mxu0 0
        %1414 = vmatpush2.bf16.msra.mxu0 0
        %1415 = vmatprep.subr.bf16.mxu0 0
        %1416 = vmatpush2.bf16.msra.mxu0 0
        %1417 = vmatprep.subr.bf16.mxu0 0
        %1418 = vmatpush2.bf16.msra.mxu0 0
        %1419 = vmatprep.subr.bf16.mxu0 0
        %1420 = vmatpush2.bf16.msra.mxu0 0
        %1421 = vmatprep.mubr.bf16.mxu0 0
        %1422 = vmatmul.mubr.bf16.gmra.mxu0 %v1384
        %v1423 = vpop.f32.mrf.mxu0
        %v1424 = vadd.f32 0.0, %v1423
        %v1425 = vpop.f32.mrf.mxu0
        %v1426 = vpop.f32.mrf.mxu0
        %v1427 = vpop.f32.mrf.mxu0
        %1428 = vdwg.mxu0
        %1430 = vrot.lane.b32.xlu0 %v1332, 32
        %v1431 = vpop.permute.xlu0 %1430
        %1434 = vrot.lane.b32.xlu0 %v1378, 64
        %v1435 = vpop.permute.xlu0 %1434
        %1438 = vrot.lane.b32.xlu0 %v1424, 96
        %v1439 = vpop.permute.xlu0 %1438
        %v1441 = vsel %vm1010, %v1286, %v1431
        %v1442 = vsel %vm623, %v1441, %v1435
        %vm1443 = vcmask 785408
        %v1444 = vsel %vm1443, %v1442, %v1439
        %v1445 = vpack.c.bf16 %v1444, %v1444
        %v1446 = vld [vmem:[#allocation7] sm:$0xf]
        %v1447 = vld [vmem:[#allocation7 + $0x4] sm:$0xf]
        %v1448 = vld [vmem:[#allocation7 + $0x8] sm:$0xf]
        %v1449 = vld [vmem:[#allocation7 + $0xc] sm:$0xf]
        %v1450 = vld [vmem:[#allocation7 + $0x10] sm:$0xf]
        %v1451 = vld [vmem:[#allocation7 + $0x14] sm:$0xf]
        %v1452 = vld [vmem:[#allocation7 + $0x18] sm:$0xf]
        %v1453 = vld [vmem:[#allocation7 + $0x1c] sm:$0xf]
        %v1454 = vld [vmem:[#allocation7 + $0x20] sm:$0xf]
        %v1455 = vld [vmem:[#allocation7 + $0x24] sm:$0xf]
        %v1456 = vld [vmem:[#allocation7 + $0x28] sm:$0xf]
        %v1457 = vld [vmem:[#allocation7 + $0x2c] sm:$0xf]
        %v1458 = vld [vmem:[#allocation7 + $0x30] sm:$0xf]
        %v1459 = vld [vmem:[#allocation7 + $0x34] sm:$0xf]
        %v1460 = vld [vmem:[#allocation7 + $0x38] sm:$0xf]
        %v1461 = vld [vmem:[#allocation7 + $0x3c] sm:$0xf]
        %v1462 = vld [vmem:[%s7] sm:$0x1]
        %v1464 = vlaneseq
        %v1465 = vshrl.u32 %v1464, 7
        %v1466 = vsub.s32 0, %v1465
        %v1467 = vrot.slane %v1462, %v1466
        %v1485 = vunpack.c.l.b16 %v1446
        %v1486 = vunpack.c.l.b16 %v1447
        %v1487 = vunpack.c.l.b16 %v1448
        %v1488 = vunpack.c.l.b16 %v1449
        %v1489 = vunpack.c.l.b16 %v1450
        %v1490 = vunpack.c.l.b16 %v1451
        %v1491 = vunpack.c.l.b16 %v1452
        %v1492 = vunpack.c.l.b16 %v1453
        %v1493 = vunpack.c.l.b16 %v1454
        %v1494 = vunpack.c.l.b16 %v1455
        %v1495 = vunpack.c.l.b16 %v1456
        %v1496 = vunpack.c.l.b16 %v1457
        %v1497 = vunpack.c.l.b16 %v1458
        %v1498 = vunpack.c.l.b16 %v1459
        %v1499 = vunpack.c.l.b16 %v1460
        %v1500 = vunpack.c.l.b16 %v1461
        %v1501 = vpack.c.b16 %v1486, %v1485
        %v1502 = vpack.c.b16 %v1488, %v1487
        %v1503 = vpack.c.b16 %v1490, %v1489
        %v1504 = vpack.c.b16 %v1492, %v1491
        %v1505 = vpack.c.b16 %v1494, %v1493
        %v1506 = vpack.c.b16 %v1496, %v1495
        %v1507 = vpack.c.b16 %v1498, %v1497
        %v1508 = vpack.c.b16 %v1500, %v1499
        %1517 = vmatprep.subr.bf16.mxu0 0
        %1518 = vmatpush1.bf16.msra.mxu0 %v1508
        %1519 = vmatprep.subr.bf16.mxu0 0
        %1520 = vmatpush1.bf16.msra.mxu0 %v1507
        %1521 = vmatprep.subr.bf16.mxu0 0
        %1522 = vmatpush1.bf16.msra.mxu0 %v1506
        %1523 = vmatprep.subr.bf16.mxu0 0
        %1524 = vmatpush1.bf16.msra.mxu0 %v1505
        %1525 = vmatprep.subr.bf16.mxu0 0
        %1526 = vmatpush1.bf16.msra.mxu0 %v1504
        %1527 = vmatprep.subr.bf16.mxu0 0
        %1528 = vmatpush1.bf16.msra.mxu0 %v1503
        %1529 = vmatprep.subr.bf16.mxu0 0
        %1530 = vmatpush1.bf16.msra.mxu0 %v1502
        %1531 = vmatprep.subr.bf16.mxu0 0
        %1532 = vmatpush1.bf16.msra.mxu0 %v1501
        %1533 = vmatprep.subr.bf16.mxu0 0
        %1534 = vmatpush2.bf16.msra.mxu0 0
        %1535 = vmatprep.subr.bf16.mxu0 0
        %1536 = vmatpush2.bf16.msra.mxu0 0
        %1537 = vmatprep.subr.bf16.mxu0 0
        %1538 = vmatpush2.bf16.msra.mxu0 0
        %1539 = vmatprep.subr.bf16.mxu0 0
        %1540 = vmatpush2.bf16.msra.mxu0 0
        %1541 = vmatprep.subr.bf16.mxu0 0
        %1542 = vmatpush2.bf16.msra.mxu0 0
        %1543 = vmatprep.subr.bf16.mxu0 0
        %1544 = vmatpush2.bf16.msra.mxu0 0
        %1545 = vmatprep.subr.bf16.mxu0 0
        %1546 = vmatpush2.bf16.msra.mxu0 0
        %1547 = vmatprep.subr.bf16.mxu0 0
        %1548 = vmatpush2.bf16.msra.mxu0 0
        %1549 = vmatprep.mubr.bf16.mxu0 0
        %1550 = vmatmul.mubr.bf16.gmra.mxu0 %v1445
        %v1551 = vpop.f32.mrf.mxu0
        %v1552 = vadd.f32 %v1467, %v1551
        %v1553 = vpop.f32.mrf.mxu0
        %v1554 = vpop.f32.mrf.mxu0
        %v1555 = vpop.f32.mrf.mxu0
        %1556 = vdwg.mxu0
        %v1557 = vadd.f32 %v694, %v1552
        %v1558 = vld [vmem:[%s8] sm:$0x1]
        %v1559 = vld [vmem:[%s9] sm:$0x1]
        %1560 = vadd.xlane.f32.xlu0 %v1557
        %v1561 = vpop.xlane.xlu0 %1560
        %v1562 = vmul.f32 %v1561, 0.03125
        %v1563 = vsub.f32 %v1557, %v1562
        %v1564 = vmul.f32 %v1563, %v702
        %v1565 = vmul.f32 %v1564, %v1564
        %1566 = vadd.xlane.f32.xlu0 %v1565
        %v1567 = vpop.xlane.xlu0 %1566
        %v1568 = vmul.f32 %v1567, 0.03125
        %v1569 = vadd.f32 %v1568, 1e-05
        %v1570 = vrsqrt.pop %v1569
        %v1571 = vmul.f32 %v1564, %v1570
        %v1573 = vlaneseq
        %v1574 = vshrl.u32 %v1573, 7
        %v1575 = vsub.s32 0, %v1574
        %v1576 = vrot.slane %v1558, %v1575
        %v1578 = vmul.f32 %v1571, %v1576
        %v1580 = vlaneseq
        %v1581 = vshrl.u32 %v1580, 7
        %v1582 = vsub.s32 0, %v1581
        %v1583 = vrot.slane %v1559, %v1582
        %v1585 = vadd.f32 %v1578, %v1583
        %v1586 = vpack.c.bf16 %v1585, %v1585
        %v1587 = vld [vmem:[#allocation8] sm:$0xf]
        %v1588 = vld [vmem:[#allocation8 + $0x4] sm:$0xf]
        %v1589 = vld [vmem:[#allocation8 + $0x8] sm:$0xf]
        %v1590 = vld [vmem:[#allocation8 + $0xc] sm:$0xf]
        %v1591 = vld [vmem:[#allocation8 + $0x10] sm:$0xf]
        %v1592 = vld [vmem:[#allocation8 + $0x14] sm:$0xf]
        %v1593 = vld [vmem:[#allocation8 + $0x18] sm:$0xf]
        %v1594 = vld [vmem:[#allocation8 + $0x1c] sm:$0xf]
        %v1595 = vld [vmem:[#allocation8 + $0x20] sm:$0xf]
        %v1596 = vld [vmem:[#allocation8 + $0x24] sm:$0xf]
        %v1597 = vld [vmem:[#allocation8 + $0x28] sm:$0xf]
        %v1598 = vld [vmem:[#allocation8 + $0x2c] sm:$0xf]
        %v1599 = vld [vmem:[#allocation8 + $0x30] sm:$0xf]
        %v1600 = vld [vmem:[#allocation8 + $0x34] sm:$0xf]
        %v1601 = vld [vmem:[#allocation8 + $0x38] sm:$0xf]
        %v1602 = vld [vmem:[#allocation8 + $0x3c] sm:$0xf]
        %v1603 = vld [vmem:[%s11] sm:$0x1]
        %v1605 = vlaneseq
        %v1606 = vshrl.u32 %v1605, 7
        %v1607 = vsub.s32 0, %v1606
        %v1608 = vrot.slane %v1603, %v1607
        %v1626 = vunpack.c.l.b16 %v1587
        %v1627 = vunpack.c.l.b16 %v1588
        %v1628 = vunpack.c.l.b16 %v1589
        %v1629 = vunpack.c.l.b16 %v1590
        %v1630 = vunpack.c.l.b16 %v1591
        %v1631 = vunpack.c.l.b16 %v1592
        %v1632 = vunpack.c.l.b16 %v1593
        %v1633 = vunpack.c.l.b16 %v1594
        %v1634 = vunpack.c.l.b16 %v1595
        %v1635 = vunpack.c.l.b16 %v1596
        %v1636 = vunpack.c.l.b16 %v1597
        %v1637 = vunpack.c.l.b16 %v1598
        %v1638 = vunpack.c.l.b16 %v1599
        %v1639 = vunpack.c.l.b16 %v1600
        %v1640 = vunpack.c.l.b16 %v1601
        %v1641 = vunpack.c.l.b16 %v1602
        %v1642 = vpack.c.b16 %v1627, %v1626
        %v1643 = vpack.c.b16 %v1629, %v1628
        %v1644 = vpack.c.b16 %v1631, %v1630
        %v1645 = vpack.c.b16 %v1633, %v1632
        %v1646 = vpack.c.b16 %v1635, %v1634
        %v1647 = vpack.c.b16 %v1637, %v1636
        %v1648 = vpack.c.b16 %v1639, %v1638
        %v1649 = vpack.c.b16 %v1641, %v1640
        %1658 = vmatprep.subr.bf16.mxu0 0
        %1659 = vmatpush1.bf16.msra.mxu0 %v1649
        %1660 = vmatprep.subr.bf16.mxu0 0
        %1661 = vmatpush1.bf16.msra.mxu0 %v1648
        %1662 = vmatprep.subr.bf16.mxu0 0
        %1663 = vmatpush1.bf16.msra.mxu0 %v1647
        %1664 = vmatprep.subr.bf16.mxu0 0
        %1665 = vmatpush1.bf16.msra.mxu0 %v1646
        %1666 = vmatprep.subr.bf16.mxu0 0
        %1667 = vmatpush1.bf16.msra.mxu0 %v1645
        %1668 = vmatprep.subr.bf16.mxu0 0
        %1669 = vmatpush1.bf16.msra.mxu0 %v1644
        %1670 = vmatprep.subr.bf16.mxu0 0
        %1671 = vmatpush1.bf16.msra.mxu0 %v1643
        %1672 = vmatprep.subr.bf16.mxu0 0
        %1673 = vmatpush1.bf16.msra.mxu0 %v1642
        %1674 = vmatprep.subr.bf16.mxu0 0
        %1675 = vmatpush2.bf16.msra.mxu0 0
        %1676 = vmatprep.subr.bf16.mxu0 0
        %1677 = vmatpush2.bf16.msra.mxu0 0
        %1678 = vmatprep.subr.bf16.mxu0 0
        %1679 = vmatpush2.bf16.msra.mxu0 0
        %1680 = vmatprep.subr.bf16.mxu0 0
        %1681 = vmatpush2.bf16.msra.mxu0 0
        %1682 = vmatprep.subr.bf16.mxu0 0
        %1683 = vmatpush2.bf16.msra.mxu0 0
        %1684 = vmatprep.subr.bf16.mxu0 0
        %1685 = vmatpush2.bf16.msra.mxu0 0
        %1686 = vmatprep.subr.bf16.mxu0 0
        %1687 = vmatpush2.bf16.msra.mxu0 0
        %1688 = vmatprep.subr.bf16.mxu0 0
        %1689 = vmatpush2.bf16.msra.mxu0 0
        %1690 = vmatprep.mubr.bf16.mxu0 0
        %1691 = vmatmul.mubr.bf16.gmra.mxu0 %v1586
        %v1692 = vpop.f32.mrf.mxu0
        %v1693 = vadd.f32 %v1608, %v1692
        %v1694 = vpop.f32.mrf.mxu0
        %v1695 = vpop.f32.mrf.mxu0
        %v1696 = vpop.f32.mrf.mxu0
        %1697 = vdwg.mxu0
        %v1698 = vmax.f32 %v1693, 0.0
        %v1699 = vpack.c.bf16 %v1698, %v1698
        %v1700 = vld [vmem:[#allocation10] sm:$0xf]
        %v1701 = vld [vmem:[#allocation10 + $0x4] sm:$0xf]
        %v1702 = vld [vmem:[#allocation10 + $0x8] sm:$0xf]
        %v1703 = vld [vmem:[#allocation10 + $0xc] sm:$0xf]
        %v1704 = vld [vmem:[#allocation10 + $0x10] sm:$0xf]
        %v1705 = vld [vmem:[#allocation10 + $0x14] sm:$0xf]
        %v1706 = vld [vmem:[#allocation10 + $0x18] sm:$0xf]
        %v1707 = vld [vmem:[#allocation10 + $0x1c] sm:$0xf]
        %v1708 = vld [vmem:[#allocation10 + $0x20] sm:$0xf]
        %v1709 = vld [vmem:[#allocation10 + $0x24] sm:$0xf]
        %v1710 = vld [vmem:[#allocation10 + $0x28] sm:$0xf]
        %v1711 = vld [vmem:[#allocation10 + $0x2c] sm:$0xf]
        %v1712 = vld [vmem:[#allocation10 + $0x30] sm:$0xf]
        %v1713 = vld [vmem:[#allocation10 + $0x34] sm:$0xf]
        %v1714 = vld [vmem:[#allocation10 + $0x38] sm:$0xf]
        %v1715 = vld [vmem:[#allocation10 + $0x3c] sm:$0xf]
        %v1716 = vld [vmem:[%s13] sm:$0x1]
        %v1718 = vlaneseq
        %v1719 = vshrl.u32 %v1718, 7
        %v1720 = vsub.s32 0, %v1719
        %v1721 = vrot.slane %v1716, %v1720
        %v1739 = vunpack.c.l.b16 %v1700
        %v1740 = vunpack.c.l.b16 %v1701
        %v1741 = vunpack.c.l.b16 %v1702
        %v1742 = vunpack.c.l.b16 %v1703
        %v1743 = vunpack.c.l.b16 %v1704
        %v1744 = vunpack.c.l.b16 %v1705
        %v1745 = vunpack.c.l.b16 %v1706
        %v1746 = vunpack.c.l.b16 %v1707
        %v1747 = vunpack.c.l.b16 %v1708
        %v1748 = vunpack.c.l.b16 %v1709
        %v1749 = vunpack.c.l.b16 %v1710
        %v1750 = vunpack.c.l.b16 %v1711
        %v1751 = vunpack.c.l.b16 %v1712
        %v1752 = vunpack.c.l.b16 %v1713
        %v1753 = vunpack.c.l.b16 %v1714
        %v1754 = vunpack.c.l.b16 %v1715
        %v1755 = vpack.c.b16 %v1740, %v1739
        %v1756 = vpack.c.b16 %v1742, %v1741
        %v1757 = vpack.c.b16 %v1744, %v1743
        %v1758 = vpack.c.b16 %v1746, %v1745
        %v1759 = vpack.c.b16 %v1748, %v1747
        %v1760 = vpack.c.b16 %v1750, %v1749
        %v1761 = vpack.c.b16 %v1752, %v1751
        %v1762 = vpack.c.b16 %v1754, %v1753
        %1771 = vmatprep.subr.bf16.mxu0 0
        %1772 = vmatpush1.bf16.msra.mxu0 %v1762
        %1773 = vmatprep.subr.bf16.mxu0 0
        %1774 = vmatpush1.bf16.msra.mxu0 %v1761
        %1775 = vmatprep.subr.bf16.mxu0 0
        %1776 = vmatpush1.bf16.msra.mxu0 %v1760
        %1777 = vmatprep.subr.bf16.mxu0 0
        %1778 = vmatpush1.bf16.msra.mxu0 %v1759
        %1779 = vmatprep.subr.bf16.mxu0 0
        %1780 = vmatpush1.bf16.msra.mxu0 %v1758
        %1781 = vmatprep.subr.bf16.mxu0 0
        %1782 = vmatpush1.bf16.msra.mxu0 %v1757
        %1783 = vmatprep.subr.bf16.mxu0 0
        %1784 = vmatpush1.bf16.msra.mxu0 %v1756
        %1785 = vmatprep.subr.bf16.mxu0 0
        %1786 = vmatpush1.bf16.msra.mxu0 %v1755
        %1787 = vmatprep.subr.bf16.mxu0 0
        %1788 = vmatpush2.bf16.msra.mxu0 0
        %1789 = vmatprep.subr.bf16.mxu0 0
        %1790 = vmatpush2.bf16.msra.mxu0 0
        %1791 = vmatprep.subr.bf16.mxu0 0
        %1792 = vmatpush2.bf16.msra.mxu0 0
        %1793 = vmatprep.subr.bf16.mxu0 0
        %1794 = vmatpush2.bf16.msra.mxu0 0
        %1795 = vmatprep.subr.bf16.mxu0 0
        %1796 = vmatpush2.bf16.msra.mxu0 0
        %1797 = vmatprep.subr.bf16.mxu0 0
        %1798 = vmatpush2.bf16.msra.mxu0 0
        %1799 = vmatprep.subr.bf16.mxu0 0
        %1800 = vmatpush2.bf16.msra.mxu0 0
        %1801 = vmatprep.subr.bf16.mxu0 0
        %1802 = vmatpush2.bf16.msra.mxu0 0
        %1803 = vmatprep.mubr.bf16.mxu0 0
        %1804 = vmatmul.mubr.bf16.gmra.mxu0 %v1699
        %v1805 = vpop.f32.mrf.mxu0
        %v1806 = vadd.f32 %v1721, %v1805
        %v1807 = vpop.f32.mrf.mxu0
        %v1808 = vpop.f32.mrf.mxu0
        %v1809 = vpop.f32.mrf.mxu0
        %1810 = vdwg.mxu0
        %v1811 = vadd.f32 %v1585, %v1806
        %v1812 = vld [vmem:[%s14] sm:$0x1]
        %v1813 = vld [vmem:[%s15] sm:$0x1]
        %1814 = vadd.xlane.f32.xlu0 %v1811
        %v1815 = vpop.xlane.xlu0 %1814
        %v1816 = vmul.f32 %v1815, 0.03125
        %v1817 = vsub.f32 %v1811, %v1816
        %v1818 = vmul.f32 %v1817, %v702
        %v1819 = vmul.f32 %v1818, %v1818
        %1820 = vadd.xlane.f32.xlu0 %v1819
        %v1821 = vpop.xlane.xlu0 %1820
        %v1822 = vmul.f32 %v1821, 0.03125
        %v1823 = vadd.f32 %v1822, 1e-05
        %v1824 = vrsqrt.pop %v1823
        %v1825 = vmul.f32 %v1818, %v1824
        %v1827 = vlaneseq
        %v1828 = vshrl.u32 %v1827, 7
        %v1829 = vsub.s32 0, %v1828
        %v1830 = vrot.slane %v1812, %v1829
        %v1832 = vmul.f32 %v1825, %v1830
        %v1834 = vlaneseq
        %v1835 = vshrl.u32 %v1834, 7
        %v1836 = vsub.s32 0, %v1835
        %v1837 = vrot.slane %v1813, %v1836
        %v1839 = vadd.f32 %v1832, %v1837
        %v1840 = vpack.c.bf16 %v1839, %v1839
        %s1841 = scalar_lea.vmem [#allocation5], 192
        %v1842 = vld [vmem:[%s1841] sm:$0xff]
        %v1843 = vld [vmem:[%s1841 + $0x8] sm:$0xf]
        %v1844 = vld [vmem:[%s1841 + $0xc] sm:$0xff]
        %v1845 = vld [vmem:[%s1841 + $0x14] sm:$0xf]
        %v1846 = vld [vmem:[%s1841 + $0x18] sm:$0xff]
        %v1847 = vld [vmem:[%s1841 + $0x20] sm:$0xf]
        %v1848 = vld [vmem:[%s1841 + $0x24] sm:$0xff]
        %v1849 = vld [vmem:[%s1841 + $0x2c] sm:$0xf]
        %v1850 = vld [vmem:[%s1841 + $0x30] sm:$0xff]
        %v1851 = vld [vmem:[%s1841 + $0x38] sm:$0xf]
        %v1852 = vld [vmem:[%s1841 + $0x3c] sm:$0xff]
        %v1853 = vld [vmem:[%s1841 + $0x44] sm:$0xf]
        %v1854 = vld [vmem:[%s1841 + $0x48] sm:$0xff]
        %v1855 = vld [vmem:[%s1841 + $0x50] sm:$0xf]
        %v1856 = vld [vmem:[%s1841 + $0x54] sm:$0xff]
        %v1857 = vld [vmem:[%s1841 + $0x5c] sm:$0xf]
        %v1858 = vld [vmem:[%s1841 + $0x60] sm:$0xff]
        %v1859 = vld [vmem:[%s1841 + $0x68] sm:$0xf]
        %v1860 = vld [vmem:[%s1841 + $0x6c] sm:$0xff]
        %v1861 = vld [vmem:[%s1841 + $0x74] sm:$0xf]
        %v1862 = vld [vmem:[%s1841 + $0x78] sm:$0xff]
        %v1863 = vld [vmem:[%s1841 + $0x80] sm:$0xf]
        %v1864 = vld [vmem:[%s1841 + $0x84] sm:$0xff]
        %v1865 = vld [vmem:[%s1841 + $0x8c] sm:$0xf]
        %v1866 = vld [vmem:[%s1841 + $0x90] sm:$0xff]
        %v1867 = vld [vmem:[%s1841 + $0x98] sm:$0xf]
        %v1868 = vld [vmem:[%s1841 + $0x9c] sm:$0xff]
        %v1869 = vld [vmem:[%s1841 + $0xa4] sm:$0xf]
        %v1870 = vld [vmem:[%s1841 + $0xa8] sm:$0xff]
        %v1871 = vld [vmem:[%s1841 + $0xb0] sm:$0xf]
        %v1872 = vld [vmem:[%s1841 + $0xb4] sm:$0xff]
        %v1873 = vld [vmem:[%s1841 + $0xbc] sm:$0xf]
        %s1874 = scalar_lea.vmem %s5, 3
        %v1875 = vld [vmem:[%s1874] sm:$0x7]
        %v1877 = vlaneseq
        %v1878 = vshrl.u32 %v1877, 7
        %v1879 = vsub.s32 0, %v1878
        %v1880 = vrot.slane %v1875, %v1879
        %v1881 = vlaneseq
        %v1882 = vshrl.u32 %v1881, 7
        %v1883 = vsub.s32 1, %v1882
        %v1884 = vrot.slane %v1875, %v1883
        %v1885 = vlaneseq
        %v1886 = vshrl.u32 %v1885, 7
        %v1887 = vsub.s32 2, %v1886
        %v1888 = vrot.slane %v1875, %v1887
        %v1924 = vunpack.c.l.b16 %v1842
        %v1925 = vunpack.c.h.b16 %v1842
        %v1926 = vunpack.c.l.b16 %v1843
        %v1927 = vunpack.c.l.b16 %v1844
        %v1928 = vunpack.c.h.b16 %v1844
        %v1929 = vunpack.c.l.b16 %v1845
        %v1930 = vunpack.c.l.b16 %v1846
        %v1931 = vunpack.c.h.b16 %v1846
        %v1932 = vunpack.c.l.b16 %v1847
        %v1933 = vunpack.c.l.b16 %v1848
        %v1934 = vunpack.c.h.b16 %v1848
        %v1935 = vunpack.c.l.b16 %v1849
        %v1936 = vunpack.c.l.b16 %v1850
        %v1937 = vunpack.c.h.b16 %v1850
        %v1938 = vunpack.c.l.b16 %v1851
        %v1939 = vunpack.c.l.b16 %v1852
        %v1940 = vunpack.c.h.b16 %v1852
        %v1941 = vunpack.c.l.b16 %v1853
        %v1942 = vunpack.c.l.b16 %v1854
        %v1943 = vunpack.c.h.b16 %v1854
        %v1944 = vunpack.c.l.b16 %v1855
        %v1945 = vunpack.c.l.b16 %v1856
        %v1946 = vunpack.c.h.b16 %v1856
        %v1947 = vunpack.c.l.b16 %v1857
        %v1948 = vunpack.c.l.b16 %v1858
        %v1949 = vunpack.c.h.b16 %v1858
        %v1950 = vunpack.c.l.b16 %v1859
        %v1951 = vunpack.c.l.b16 %v1860
        %v1952 = vunpack.c.h.b16 %v1860
        %v1953 = vunpack.c.l.b16 %v1861
        %v1954 = vunpack.c.l.b16 %v1862
        %v1955 = vunpack.c.h.b16 %v1862
        %v1956 = vunpack.c.l.b16 %v1863
        %v1957 = vunpack.c.l.b16 %v1864
        %v1958 = vunpack.c.h.b16 %v1864
        %v1959 = vunpack.c.l.b16 %v1865
        %v1960 = vunpack.c.l.b16 %v1866
        %v1961 = vunpack.c.h.b16 %v1866
        %v1962 = vunpack.c.l.b16 %v1867
        %v1963 = vunpack.c.l.b16 %v1868
        %v1964 = vunpack.c.h.b16 %v1868
        %v1965 = vunpack.c.l.b16 %v1869
        %v1966 = vunpack.c.l.b16 %v1870
        %v1967 = vunpack.c.h.b16 %v1870
        %v1968 = vunpack.c.l.b16 %v1871
        %v1969 = vunpack.c.l.b16 %v1872
        %v1970 = vunpack.c.h.b16 %v1872
        %v1971 = vunpack.c.l.b16 %v1873
        %v1972 = vpack.c.b16 %v1927, %v1924
        %v1973 = vpack.c.b16 %v1928, %v1925
        %v1974 = vpack.c.b16 %v1929, %v1926
        %v1975 = vpack.c.b16 %v1933, %v1930
        %v1976 = vpack.c.b16 %v1934, %v1931
        %v1977 = vpack.c.b16 %v1935, %v1932
        %v1978 = vpack.c.b16 %v1939, %v1936
        %v1979 = vpack.c.b16 %v1940, %v1937
        %v1980 = vpack.c.b16 %v1941, %v1938
        %v1981 = vpack.c.b16 %v1945, %v1942
        %v1982 = vpack.c.b16 %v1946, %v1943
        %v1983 = vpack.c.b16 %v1947, %v1944
        %v1984 = vpack.c.b16 %v1951, %v1948
        %v1985 = vpack.c.b16 %v1952, %v1949
        %v1986 = vpack.c.b16 %v1953, %v1950
        %v1987 = vpack.c.b16 %v1957, %v1954
        %v1988 = vpack.c.b16 %v1958, %v1955
        %v1989 = vpack.c.b16 %v1959, %v1956
        %v1990 = vpack.c.b16 %v1963, %v1960
        %v1991 = vpack.c.b16 %v1964, %v1961
        %v1992 = vpack.c.b16 %v1965, %v1962
        %v1993 = vpack.c.b16 %v1969, %v1966
        %v1994 = vpack.c.b16 %v1970, %v1967
        %v1995 = vpack.c.b16 %v1971, %v1968
        %2020 = vmatprep.subr.bf16.mxu0 %v1994
        %2021 = vmatpush1.bf16.msra.mxu0 %v1993
        %2022 = vmatprep.subr.bf16.mxu0 %v1991
        %2023 = vmatpush1.bf16.msra.mxu0 %v1990
        %2024 = vmatprep.subr.bf16.mxu0 %v1988
        %2025 = vmatpush1.bf16.msra.mxu0 %v1987
        %2026 = vmatprep.subr.bf16.mxu0 %v1985
        %2027 = vmatpush1.bf16.msra.mxu0 %v1984
        %2028 = vmatprep.subr.bf16.mxu0 %v1982
        %2029 = vmatpush1.bf16.msra.mxu0 %v1981
        %2030 = vmatprep.subr.bf16.mxu0 %v1979
        %2031 = vmatpush1.bf16.msra.mxu0 %v1978
        %2032 = vmatprep.subr.bf16.mxu0 %v1976
        %2033 = vmatpush1.bf16.msra.mxu0 %v1975
        %2034 = vmatprep.subr.bf16.mxu0 %v1973
        %2035 = vmatpush1.bf16.msra.mxu0 %v1972
        %2036 = vmatprep.subr.bf16.mxu0 0
        %2037 = vmatpush2.bf16.msra.mxu0 0
        %2038 = vmatprep.subr.bf16.mxu0 0
        %2039 = vmatpush2.bf16.msra.mxu0 0
        %2040 = vmatprep.subr.bf16.mxu0 0
        %2041 = vmatpush2.bf16.msra.mxu0 0
        %2042 = vmatprep.subr.bf16.mxu0 0
        %2043 = vmatpush2.bf16.msra.mxu0 0
        %2044 = vmatprep.subr.bf16.mxu0 0
        %2045 = vmatpush2.bf16.msra.mxu0 0
        %2046 = vmatprep.subr.bf16.mxu0 0
        %2047 = vmatpush2.bf16.msra.mxu0 0
        %2048 = vmatprep.subr.bf16.mxu0 0
        %2049 = vmatpush2.bf16.msra.mxu0 0
        %2050 = vmatprep.subr.bf16.mxu0 0
        %2051 = vmatpush2.bf16.msra.mxu0 0
        %2052 = vmatprep.mubr.bf16.mxu0 0
        %2053 = vmatmul.mubr.bf16.gmra.mxu0 %v1840
        %v2054 = vpop.f32.mrf.mxu0
        %v2055 = vadd.f32 %v1880, %v2054
        %v2056 = vpop.f32.mrf.mxu0
        %v2057 = vadd.f32 %v1884, %v2056
        %v2058 = vpop.f32.mrf.mxu0
        %v2059 = vpop.f32.mrf.mxu0
        %2060 = vdwg.mxu0
        %2061 = vmatprep.subr.bf16.mxu0 0
        %2062 = vmatpush1.bf16.msra.mxu0 %v1995
        %2063 = vmatprep.subr.bf16.mxu0 0
        %2064 = vmatpush1.bf16.msra.mxu0 %v1992
        %2065 = vmatprep.subr.bf16.mxu0 0
        %2066 = vmatpush1.bf16.msra.mxu0 %v1989
        %2067 = vmatprep.subr.bf16.mxu0 0
        %2068 = vmatpush1.bf16.msra.mxu0 %v1986
        %2069 = vmatprep.subr.bf16.mxu0 0
        %2070 = vmatpush1.bf16.msra.mxu0 %v1983
        %2071 = vmatprep.subr.bf16.mxu0 0
        %2072 = vmatpush1.bf16.msra.mxu0 %v1980
        %2073 = vmatprep.subr.bf16.mxu0 0
        %2074 = vmatpush1.bf16.msra.mxu0 %v1977
        %2075 = vmatprep.subr.bf16.mxu0 0
        %2076 = vmatpush1.bf16.msra.mxu0 %v1974
        %2077 = vmatprep.subr.bf16.mxu0 0
        %2078 = vmatpush2.bf16.msra.mxu0 0
        %2079 = vmatprep.subr.bf16.mxu0 0
        %2080 = vmatpush2.bf16.msra.mxu0 0
        %2081 = vmatprep.subr.bf16.mxu0 0
        %2082 = vmatpush2.bf16.msra.mxu0 0
        %2083 = vmatprep.subr.bf16.mxu0 0
        %2084 = vmatpush2.bf16.msra.mxu0 0
        %2085 = vmatprep.subr.bf16.mxu0 0
        %2086 = vmatpush2.bf16.msra.mxu0 0
        %2087 = vmatprep.subr.bf16.mxu0 0
        %2088 = vmatpush2.bf16.msra.mxu0 0
        %2089 = vmatprep.subr.bf16.mxu0 0
        %2090 = vmatpush2.bf16.msra.mxu0 0
        %2091 = vmatprep.subr.bf16.mxu0 0
        %2092 = vmatpush2.bf16.msra.mxu0 0
        %2093 = vmatprep.mubr.bf16.mxu0 0
        %2094 = vmatmul.mubr.bf16.gmra.mxu0 %v1840
        %v2095 = vpop.f32.mrf.mxu0
        %v2096 = vadd.f32 %v1888, %v2095
        %v2097 = vpop.f32.mrf.mxu0
        %v2098 = vpop.f32.mrf.mxu0
        %v2099 = vpop.f32.mrf.mxu0
        %2100 = vdwg.mxu0
        %2102 = vrot.lane.b32.xlu0 %v2055, 96
        %v2103 = vpop.permute.xlu0 %2102
        %2105 = vrot.lane.b32.xlu0 %v2055, 64
        %v2106 = vpop.permute.xlu0 %2105
        %2108 = vrot.lane.b32.xlu0 %v2055, 32
        %v2109 = vpop.permute.xlu0 %2108
        %v2111 = vpack.c.bf16 %v2055, %v2055
        %v2112 = vpack.c.bf16 %v2103, %v2103
        %v2113 = vpack.c.bf16 %v2106, %v2106
        %v2114 = vpack.c.bf16 %v2109, %v2109
        %2116 = vrot.lane.b32.xlu0 %v2057, 96
        %v2117 = vpop.permute.xlu0 %2116
        %2119 = vrot.lane.b32.xlu0 %v2057, 64
        %v2120 = vpop.permute.xlu0 %2119
        %2122 = vrot.lane.b32.xlu0 %v2057, 32
        %v2123 = vpop.permute.xlu0 %2122
        %v2125 = vpack.c.bf16 %v2057, %v2057
        %v2126 = vpack.c.bf16 %v2117, %v2117
        %v2127 = vpack.c.bf16 %v2120, %v2120
        %v2128 = vpack.c.bf16 %v2123, %v2123
        %2130 = vrot.lane.b32.xlu0 %v2096, 96
        %v2131 = vpop.permute.xlu0 %2130
        %2133 = vrot.lane.b32.xlu0 %v2096, 64
        %v2134 = vpop.permute.xlu0 %2133
        %2136 = vrot.lane.b32.xlu0 %v2096, 32
        %v2137 = vpop.permute.xlu0 %2136
        %v2139 = vpack.c.bf16 %v2096, %v2096
        %v2140 = vpack.c.bf16 %v2131, %v2131
        %v2141 = vpack.c.bf16 %v2134, %v2134
        %v2142 = vpack.c.bf16 %v2137, %v2137
        %v2144 = vsel %vm1010, %v2111, 0
        %v2147 = vsel %vm1010, %v2125, 0
        %2149 = vmatprep.subr.bf16.mxu0 0
        %2150 = vmatpush1.bf16.xpose.msra.mxu0 0
        %2151 = vmatprep.subr.bf16.mxu0 0
        %2152 = vmatpush1.bf16.xpose.msra.mxu0 0
        %2153 = vmatprep.subr.bf16.mxu0 0
        %2154 = vmatpush1.bf16.xpose.msra.mxu0 0
        %2155 = vmatprep.subr.bf16.mxu0 0
        %2156 = vmatpush1.bf16.xpose.msra.mxu0 0
        %2157 = vmatprep.subr.bf16.mxu0 0
        %2158 = vmatpush1.bf16.xpose.msra.mxu0 0
        %2159 = vmatprep.subr.bf16.mxu0 0
        %2160 = vmatpush1.bf16.xpose.msra.mxu0 0
        %2161 = vmatprep.subr.bf16.mxu0 0
        %2162 = vmatpush1.bf16.xpose.msra.mxu0 0
        %2163 = vmatprep.subr.bf16.mxu0 0
        %2164 = vmatpush1.bf16.xpose.msra.mxu0 %v2147
        %2165 = vmatprep.subr.bf16.mxu0 0
        %2166 = vmatpush2.bf16.xpose.msra.mxu0 0
        %2167 = vmatprep.subr.bf16.mxu0 0
        %2168 = vmatpush2.bf16.xpose.msra.mxu0 0
        %2169 = vmatprep.subr.bf16.mxu0 0
        %2170 = vmatpush2.bf16.xpose.msra.mxu0 0
        %2171 = vmatprep.subr.bf16.mxu0 0
        %2172 = vmatpush2.bf16.xpose.msra.mxu0 0
        %2173 = vmatprep.subr.bf16.mxu0 0
        %2174 = vmatpush2.bf16.xpose.msra.mxu0 0
        %2175 = vmatprep.subr.bf16.mxu0 0
        %2176 = vmatpush2.bf16.xpose.msra.mxu0 0
        %2177 = vmatprep.subr.bf16.mxu0 0
        %2178 = vmatpush2.bf16.xpose.msra.mxu0 0
        %2179 = vmatprep.subr.bf16.mxu0 0
        %2180 = vmatpush2.bf16.xpose.msra.mxu0 0
        %2181 = vmatprep.mubr.bf16.mxu0 0
        %2182 = vmatmul.mubr.bf16.gmra.mxu0 %v2144
        %v2183 = vpop.f32.mrf.mxu0
        %v2184 = vadd.f32 %v1008, %v2183
        %v2185 = vpop.f32.mrf.mxu0
        %v2186 = vpop.f32.mrf.mxu0
        %v2187 = vpop.f32.mrf.mxu0
        %2188 = vdwg.mxu0
        %v2190 = vsel %vm1010, %v2112, 0
        %v2193 = vsel %vm1010, %v2126, 0
        %2195 = vmatprep.subr.bf16.mxu0 0
        %2196 = vmatpush1.bf16.xpose.msra.mxu0 0
        %2197 = vmatprep.subr.bf16.mxu0 0
        %2198 = vmatpush1.bf16.xpose.msra.mxu0 0
        %2199 = vmatprep.subr.bf16.mxu0 0
        %2200 = vmatpush1.bf16.xpose.msra.mxu0 0
        %2201 = vmatprep.subr.bf16.mxu0 0
        %2202 = vmatpush1.bf16.xpose.msra.mxu0 0
        %2203 = vmatprep.subr.bf16.mxu0 0
        %2204 = vmatpush1.bf16.xpose.msra.mxu0 0
        %2205 = vmatprep.subr.bf16.mxu0 0
        %2206 = vmatpush1.bf16.xpose.msra.mxu0 0
        %2207 = vmatprep.subr.bf16.mxu0 0
        %2208 = vmatpush1.bf16.xpose.msra.mxu0 0
        %2209 = vmatprep.subr.bf16.mxu0 0
        %2210 = vmatpush1.bf16.xpose.msra.mxu0 %v2193
        %2211 = vmatprep.subr.bf16.mxu0 0
        %2212 = vmatpush2.bf16.xpose.msra.mxu0 0
        %2213 = vmatprep.subr.bf16.mxu0 0
        %2214 = vmatpush2.bf16.xpose.msra.mxu0 0
        %2215 = vmatprep.subr.bf16.mxu0 0
        %2216 = vmatpush2.bf16.xpose.msra.mxu0 0
        %2217 = vmatprep.subr.bf16.mxu0 0
        %2218 = vmatpush2.bf16.xpose.msra.mxu0 0
        %2219 = vmatprep.subr.bf16.mxu0 0
        %2220 = vmatpush2.bf16.xpose.msra.mxu0 0
        %2221 = vmatprep.subr.bf16.mxu0 0
        %2222 = vmatpush2.bf16.xpose.msra.mxu0 0
        %2223 = vmatprep.subr.bf16.mxu0 0
        %2224 = vmatpush2.bf16.xpose.msra.mxu0 0
        %2225 = vmatprep.subr.bf16.mxu0 0
        %2226 = vmatpush2.bf16.xpose.msra.mxu0 0
        %2227 = vmatprep.mubr.bf16.mxu0 0
        %2228 = vmatmul.mubr.bf16.gmra.mxu0 %v2190
        %v2229 = vpop.f32.mrf.mxu0
        %v2230 = vadd.f32 %v1008, %v2229
        %v2231 = vpop.f32.mrf.mxu0
        %v2232 = vpop.f32.mrf.mxu0
        %v2233 = vpop.f32.mrf.mxu0
        %2234 = vdwg.mxu0
        %v2236 = vsel %vm1010, %v2113, 0
        %v2239 = vsel %vm1010, %v2127, 0
        %2241 = vmatprep.subr.bf16.mxu0 0
        %2242 = vmatpush1.bf16.xpose.msra.mxu0 0
        %2243 = vmatprep.subr.bf16.mxu0 0
        %2244 = vmatpush1.bf16.xpose.msra.mxu0 0
        %2245 = vmatprep.subr.bf16.mxu0 0
        %2246 = vmatpush1.bf16.xpose.msra.mxu0 0
        %2247 = vmatprep.subr.bf16.mxu0 0
        %2248 = vmatpush1.bf16.xpose.msra.mxu0 0
        %2249 = vmatprep.subr.bf16.mxu0 0
        %2250 = vmatpush1.bf16.xpose.msra.mxu0 0
        %2251 = vmatprep.subr.bf16.mxu0 0
        %2252 = vmatpush1.bf16.xpose.msra.mxu0 0
        %2253 = vmatprep.subr.bf16.mxu0 0
        %2254 = vmatpush1.bf16.xpose.msra.mxu0 0
        %2255 = vmatprep.subr.bf16.mxu0 0
        %2256 = vmatpush1.bf16.xpose.msra.mxu0 %v2239
        %2257 = vmatprep.subr.bf16.mxu0 0
        %2258 = vmatpush2.bf16.xpose.msra.mxu0 0
        %2259 = vmatprep.subr.bf16.mxu0 0
        %2260 = vmatpush2.bf16.xpose.msra.mxu0 0
        %2261 = vmatprep.subr.bf16.mxu0 0
        %2262 = vmatpush2.bf16.xpose.msra.mxu0 0
        %2263 = vmatprep.subr.bf16.mxu0 0
        %2264 = vmatpush2.bf16.xpose.msra.mxu0 0
        %2265 = vmatprep.subr.bf16.mxu0 0
        %2266 = vmatpush2.bf16.xpose.msra.mxu0 0
        %2267 = vmatprep.subr.bf16.mxu0 0
        %2268 = vmatpush2.bf16.xpose.msra.mxu0 0
        %2269 = vmatprep.subr.bf16.mxu0 0
        %2270 = vmatpush2.bf16.xpose.msra.mxu0 0
        %2271 = vmatprep.subr.bf16.mxu0 0
        %2272 = vmatpush2.bf16.xpose.msra.mxu0 0
        %2273 = vmatprep.mubr.bf16.mxu0 0
        %2274 = vmatmul.mubr.bf16.gmra.mxu0 %v2236
        %v2275 = vpop.f32.mrf.mxu0
        %v2276 = vadd.f32 %v1008, %v2275
        %v2277 = vpop.f32.mrf.mxu0
        %v2278 = vpop.f32.mrf.mxu0
        %v2279 = vpop.f32.mrf.mxu0
        %2280 = vdwg.mxu0
        %v2282 = vsel %vm1010, %v2114, 0
        %v2285 = vsel %vm1010, %v2128, 0
        %2287 = vmatprep.subr.bf16.mxu0 0
        %2288 = vmatpush1.bf16.xpose.msra.mxu0 0
        %2289 = vmatprep.subr.bf16.mxu0 0
        %2290 = vmatpush1.bf16.xpose.msra.mxu0 0
        %2291 = vmatprep.subr.bf16.mxu0 0
        %2292 = vmatpush1.bf16.xpose.msra.mxu0 0
        %2293 = vmatprep.subr.bf16.mxu0 0
        %2294 = vmatpush1.bf16.xpose.msra.mxu0 0
        %2295 = vmatprep.subr.bf16.mxu0 0
        %2296 = vmatpush1.bf16.xpose.msra.mxu0 0
        %2297 = vmatprep.subr.bf16.mxu0 0
        %2298 = vmatpush1.bf16.xpose.msra.mxu0 0
        %2299 = vmatprep.subr.bf16.mxu0 0
        %2300 = vmatpush1.bf16.xpose.msra.mxu0 0
        %2301 = vmatprep.subr.bf16.mxu0 0
        %2302 = vmatpush1.bf16.xpose.msra.mxu0 %v2285
        %2303 = vmatprep.subr.bf16.mxu0 0
        %2304 = vmatpush2.bf16.xpose.msra.mxu0 0
        %2305 = vmatprep.subr.bf16.mxu0 0
        %2306 = vmatpush2.bf16.xpose.msra.mxu0 0
        %2307 = vmatprep.subr.bf16.mxu0 0
        %2308 = vmatpush2.bf16.xpose.msra.mxu0 0
        %2309 = vmatprep.subr.bf16.mxu0 0
        %2310 = vmatpush2.bf16.xpose.msra.mxu0 0
        %2311 = vmatprep.subr.bf16.mxu0 0
        %2312 = vmatpush2.bf16.xpose.msra.mxu0 0
        %2313 = vmatprep.subr.bf16.mxu0 0
        %2314 = vmatpush2.bf16.xpose.msra.mxu0 0
        %2315 = vmatprep.subr.bf16.mxu0 0
        %2316 = vmatpush2.bf16.xpose.msra.mxu0 0
        %2317 = vmatprep.subr.bf16.mxu0 0
        %2318 = vmatpush2.bf16.xpose.msra.mxu0 0
        %2319 = vmatprep.mubr.bf16.mxu0 0
        %2320 = vmatmul.mubr.bf16.gmra.mxu0 %v2282
        %v2321 = vpop.f32.mrf.mxu0
        %v2322 = vadd.f32 %v1008, %v2321
        %v2323 = vpop.f32.mrf.mxu0
        %v2324 = vpop.f32.mrf.mxu0
        %v2325 = vpop.f32.mrf.mxu0
        %2326 = vdwg.mxu0
        %v2327 = vsel %vm1195, %v2184, -inf
        %2328 = vmax.xlane.f32.xlu0 %v2327
        %v2329 = vpop.xlane.xlu0 %2328
        %v2330 = vsel %vm1195, %v2230, -inf
        %2331 = vmax.xlane.f32.xlu0 %v2330
        %v2332 = vpop.xlane.xlu0 %2331
        %v2333 = vsel %vm1195, %v2276, -inf
        %2334 = vmax.xlane.f32.xlu0 %v2333
        %v2335 = vpop.xlane.xlu0 %2334
        %v2336 = vsel %vm1195, %v2322, -inf
        %2337 = vmax.xlane.f32.xlu0 %v2336
        %v2338 = vpop.xlane.xlu0 %2337
        %v2339 = vsub.f32 %v2184, %v2329
        %v2340 = vsub.f32 %v2230, %v2332
        %v2341 = vsub.f32 %v2276, %v2335
        %v2342 = vsub.f32 %v2322, %v2338
        %v2343 = vmul.f32 %v2339, 1.442695
        %v2344 = vpow.pop %v2343
        %v2345 = vmul.f32 %v2340, 1.442695
        %v2346 = vpow.pop %v2345
        %v2347 = vmul.f32 %v2341, 1.442695
        %v2348 = vpow.pop %v2347
        %v2349 = vmul.f32 %v2342, 1.442695
        %v2350 = vpow.pop %v2349
        %v2351 = vsel %vm1195, %v2344, 0.0
        %2352 = vadd.xlane.f32.xlu0 %v2351
        %v2353 = vpop.xlane.xlu0 %2352
        %v2354 = vsel %vm1195, %v2346, 0.0
        %2355 = vadd.xlane.f32.xlu0 %v2354
        %v2356 = vpop.xlane.xlu0 %2355
        %v2357 = vsel %vm1195, %v2348, 0.0
        %2358 = vadd.xlane.f32.xlu0 %v2357
        %v2359 = vpop.xlane.xlu0 %2358
        %v2360 = vsel %vm1195, %v2350, 0.0
        %2361 = vadd.xlane.f32.xlu0 %v2360
        %v2362 = vpop.xlane.xlu0 %2361
        %v2363 = vrcp.pop %v2353
        %v2364 = vmul.f32 %v2344, %v2363
        %v2365 = vrcp.pop %v2356
        %v2366 = vmul.f32 %v2346, %v2365
        %v2367 = vrcp.pop %v2359
        %v2368 = vmul.f32 %v2348, %v2367
        %v2369 = vrcp.pop %v2362
        %v2370 = vmul.f32 %v2350, %v2369
        %v2371 = vpack.c.bf16 %v2364, %v2364
        %v2372 = vpack.c.bf16 %v2366, %v2366
        %v2373 = vpack.c.bf16 %v2368, %v2368
        %v2374 = vpack.c.bf16 %v2370, %v2370
        %v2376 = vsel %vm1195, %v2371, 0
        %v2379 = vsel %vm1247, %v2139, 0
        %2381 = vmatprep.subr.bf16.mxu0 0
        %2382 = vmatpush1.bf16.msra.mxu0 0
        %2383 = vmatprep.subr.bf16.mxu0 0
        %2384 = vmatpush1.bf16.msra.mxu0 0
        %2385 = vmatprep.subr.bf16.mxu0 0
        %2386 = vmatpush1.bf16.msra.mxu0 0
        %2387 = vmatprep.subr.bf16.mxu0 0
        %2388 = vmatpush1.bf16.msra.mxu0 0
        %2389 = vmatprep.subr.bf16.mxu0 0
        %2390 = vmatpush1.bf16.msra.mxu0 0
        %2391 = vmatprep.subr.bf16.mxu0 0
        %2392 = vmatpush1.bf16.msra.mxu0 0
        %2393 = vmatprep.subr.bf16.mxu0 0
        %2394 = vmatpush1.bf16.msra.mxu0 0
        %2395 = vmatprep.subr.bf16.mxu0 0
        %2396 = vmatpush1.bf16.msra.mxu0 %v2379
        %2397 = vmatprep.subr.bf16.mxu0 0
        %2398 = vmatpush2.bf16.msra.mxu0 0
        %2399 = vmatprep.subr.bf16.mxu0 0
        %2400 = vmatpush2.bf16.msra.mxu0 0
        %2401 = vmatprep.subr.bf16.mxu0 0
        %2402 = vmatpush2.bf16.msra.mxu0 0
        %2403 = vmatprep.subr.bf16.mxu0 0
        %2404 = vmatpush2.bf16.msra.mxu0 0
        %2405 = vmatprep.subr.bf16.mxu0 0
        %2406 = vmatpush2.bf16.msra.mxu0 0
        %2407 = vmatprep.subr.bf16.mxu0 0
        %2408 = vmatpush2.bf16.msra.mxu0 0
        %2409 = vmatprep.subr.bf16.mxu0 0
        %2410 = vmatpush2.bf16.msra.mxu0 0
        %2411 = vmatprep.subr.bf16.mxu0 0
        %2412 = vmatpush2.bf16.msra.mxu0 0
        %2413 = vmatprep.mubr.bf16.mxu0 0
        %2414 = vmatmul.mubr.bf16.gmra.mxu0 %v2376
        %v2415 = vpop.f32.mrf.mxu0
        %v2416 = vadd.f32 0.0, %v2415
        %v2417 = vpop.f32.mrf.mxu0
        %v2418 = vpop.f32.mrf.mxu0
        %v2419 = vpop.f32.mrf.mxu0
        %2420 = vdwg.mxu0
        %v2422 = vsel %vm1195, %v2372, 0
        %v2425 = vsel %vm1247, %v2140, 0
        %2427 = vmatprep.subr.bf16.mxu0 0
        %2428 = vmatpush1.bf16.msra.mxu0 0
        %2429 = vmatprep.subr.bf16.mxu0 0
        %2430 = vmatpush1.bf16.msra.mxu0 0
        %2431 = vmatprep.subr.bf16.mxu0 0
        %2432 = vmatpush1.bf16.msra.mxu0 0
        %2433 = vmatprep.subr.bf16.mxu0 0
        %2434 = vmatpush1.bf16.msra.mxu0 0
        %2435 = vmatprep.subr.bf16.mxu0 0
        %2436 = vmatpush1.bf16.msra.mxu0 0
        %2437 = vmatprep.subr.bf16.mxu0 0
        %2438 = vmatpush1.bf16.msra.mxu0 0
        %2439 = vmatprep.subr.bf16.mxu0 0
        %2440 = vmatpush1.bf16.msra.mxu0 0
        %2441 = vmatprep.subr.bf16.mxu0 0
        %2442 = vmatpush1.bf16.msra.mxu0 %v2425
        %2443 = vmatprep.subr.bf16.mxu0 0
        %2444 = vmatpush2.bf16.msra.mxu0 0
        %2445 = vmatprep.subr.bf16.mxu0 0
        %2446 = vmatpush2.bf16.msra.mxu0 0
        %2447 = vmatprep.subr.bf16.mxu0 0
        %2448 = vmatpush2.bf16.msra.mxu0 0
        %2449 = vmatprep.subr.bf16.mxu0 0
        %2450 = vmatpush2.bf16.msra.mxu0 0
        %2451 = vmatprep.subr.bf16.mxu0 0
        %2452 = vmatpush2.bf16.msra.mxu0 0
        %2453 = vmatprep.subr.bf16.mxu0 0
        %2454 = vmatpush2.bf16.msra.mxu0 0
        %2455 = vmatprep.subr.bf16.mxu0 0
        %2456 = vmatpush2.bf16.msra.mxu0 0
        %2457 = vmatprep.subr.bf16.mxu0 0
        %2458 = vmatpush2.bf16.msra.mxu0 0
        %2459 = vmatprep.mubr.bf16.mxu0 0
        %2460 = vmatmul.mubr.bf16.gmra.mxu0 %v2422
        %v2461 = vpop.f32.mrf.mxu0
        %v2462 = vadd.f32 0.0, %v2461
        %v2463 = vpop.f32.mrf.mxu0
        %v2464 = vpop.f32.mrf.mxu0
        %v2465 = vpop.f32.mrf.mxu0
        %2466 = vdwg.mxu0
        %v2468 = vsel %vm1195, %v2373, 0
        %v2471 = vsel %vm1247, %v2141, 0
        %2473 = vmatprep.subr.bf16.mxu0 0
        %2474 = vmatpush1.bf16.msra.mxu0 0
        %2475 = vmatprep.subr.bf16.mxu0 0
        %2476 = vmatpush1.bf16.msra.mxu0 0
        %2477 = vmatprep.subr.bf16.mxu0 0
        %2478 = vmatpush1.bf16.msra.mxu0 0
        %2479 = vmatprep.subr.bf16.mxu0 0
        %2480 = vmatpush1.bf16.msra.mxu0 0
        %2481 = vmatprep.subr.bf16.mxu0 0
        %2482 = vmatpush1.bf16.msra.mxu0 0
        %2483 = vmatprep.subr.bf16.mxu0 0
        %2484 = vmatpush1.bf16.msra.mxu0 0
        %2485 = vmatprep.subr.bf16.mxu0 0
        %2486 = vmatpush1.bf16.msra.mxu0 0
        %2487 = vmatprep.subr.bf16.mxu0 0
        %2488 = vmatpush1.bf16.msra.mxu0 %v2471
        %2489 = vmatprep.subr.bf16.mxu0 0
        %2490 = vmatpush2.bf16.msra.mxu0 0
        %2491 = vmatprep.subr.bf16.mxu0 0
        %2492 = vmatpush2.bf16.msra.mxu0 0
        %2493 = vmatprep.subr.bf16.mxu0 0
        %2494 = vmatpush2.bf16.msra.mxu0 0
        %2495 = vmatprep.subr.bf16.mxu0 0
        %2496 = vmatpush2.bf16.msra.mxu0 0
        %2497 = vmatprep.subr.bf16.mxu0 0
        %2498 = vmatpush2.bf16.msra.mxu0 0
        %2499 = vmatprep.subr.bf16.mxu0 0
        %2500 = vmatpush2.bf16.msra.mxu0 0
        %2501 = vmatprep.subr.bf16.mxu0 0
        %2502 = vmatpush2.bf16.msra.mxu0 0
        %2503 = vmatprep.subr.bf16.mxu0 0
        %2504 = vmatpush2.bf16.msra.mxu0 0
        %2505 = vmatprep.mubr.bf16.mxu0 0
        %2506 = vmatmul.mubr.bf16.gmra.mxu0 %v2468
        %v2507 = vpop.f32.mrf.mxu0
        %v2508 = vadd.f32 0.0, %v2507
        %v2509 = vpop.f32.mrf.mxu0
        %v2510 = vpop.f32.mrf.mxu0
        %v2511 = vpop.f32.mrf.mxu0
        %2512 = vdwg.mxu0
        %v2514 = vsel %vm1195, %v2374, 0
        %v2517 = vsel %vm1247, %v2142, 0
        %2519 = vmatprep.subr.bf16.mxu0 0
        %2520 = vmatpush1.bf16.msra.mxu0 0
        %2521 = vmatprep.subr.bf16.mxu0 0
        %2522 = vmatpush1.bf16.msra.mxu0 0
        %2523 = vmatprep.subr.bf16.mxu0 0
        %2524 = vmatpush1.bf16.msra.mxu0 0
        %2525 = vmatprep.subr.bf16.mxu0 0
        %2526 = vmatpush1.bf16.msra.mxu0 0
        %2527 = vmatprep.subr.bf16.mxu0 0
        %2528 = vmatpush1.bf16.msra.mxu0 0
        %2529 = vmatprep.subr.bf16.mxu0 0
        %2530 = vmatpush1.bf16.msra.mxu0 0
        %2531 = vmatprep.subr.bf16.mxu0 0
        %2532 = vmatpush1.bf16.msra.mxu0 0
        %2533 = vmatprep.subr.bf16.mxu0 0
        %2534 = vmatpush1.bf16.msra.mxu0 %v2517
        %2535 = vmatprep.subr.bf16.mxu0 0
        %2536 = vmatpush2.bf16.msra.mxu0 0
        %2537 = vmatprep.subr.bf16.mxu0 0
        %2538 = vmatpush2.bf16.msra.mxu0 0
        %2539 = vmatprep.subr.bf16.mxu0 0
        %2540 = vmatpush2.bf16.msra.mxu0 0
        %2541 = vmatprep.subr.bf16.mxu0 0
        %2542 = vmatpush2.bf16.msra.mxu0 0
        %2543 = vmatprep.subr.bf16.mxu0 0
        %2544 = vmatpush2.bf16.msra.mxu0 0
        %2545 = vmatprep.subr.bf16.mxu0 0
        %2546 = vmatpush2.bf16.msra.mxu0 0
        %2547 = vmatprep.subr.bf16.mxu0 0
        %2548 = vmatpush2.bf16.msra.mxu0 0
        %2549 = vmatprep.subr.bf16.mxu0 0
        %2550 = vmatpush2.bf16.msra.mxu0 0
        %2551 = vmatprep.mubr.bf16.mxu0 0
        %2552 = vmatmul.mubr.bf16.gmra.mxu0 %v2514
        %v2553 = vpop.f32.mrf.mxu0
        %v2554 = vadd.f32 0.0, %v2553
        %v2555 = vpop.f32.mrf.mxu0
        %v2556 = vpop.f32.mrf.mxu0
        %v2557 = vpop.f32.mrf.mxu0
        %2558 = vdwg.mxu0
        %2560 = vrot.lane.b32.xlu0 %v2462, 32
        %v2561 = vpop.permute.xlu0 %2560
        %2564 = vrot.lane.b32.xlu0 %v2508, 64
        %v2565 = vpop.permute.xlu0 %2564
        %2568 = vrot.lane.b32.xlu0 %v2554, 96
        %v2569 = vpop.permute.xlu0 %2568
        %v2571 = vsel %vm1010, %v2416, %v2561
        %v2572 = vsel %vm623, %v2571, %v2565
        %v2573 = vsel %vm1443, %v2572, %v2569
        %v2574 = vpack.c.bf16 %v2573, %v2573
        %s2575 = scalar_lea.vmem [#allocation7], 64
        %v2576 = vld [vmem:[%s2575] sm:$0xf]
        %v2577 = vld [vmem:[%s2575 + $0x4] sm:$0xf]
        %v2578 = vld [vmem:[%s2575 + $0x8] sm:$0xf]
        %v2579 = vld [vmem:[%s2575 + $0xc] sm:$0xf]
        %v2580 = vld [vmem:[%s2575 + $0x10] sm:$0xf]
        %v2581 = vld [vmem:[%s2575 + $0x14] sm:$0xf]
        %v2582 = vld [vmem:[%s2575 + $0x18] sm:$0xf]
        %v2583 = vld [vmem:[%s2575 + $0x1c] sm:$0xf]
        %v2584 = vld [vmem:[%s2575 + $0x20] sm:$0xf]
        %v2585 = vld [vmem:[%s2575 + $0x24] sm:$0xf]
        %v2586 = vld [vmem:[%s2575 + $0x28] sm:$0xf]
        %v2587 = vld [vmem:[%s2575 + $0x2c] sm:$0xf]
        %v2588 = vld [vmem:[%s2575 + $0x30] sm:$0xf]
        %v2589 = vld [vmem:[%s2575 + $0x34] sm:$0xf]
        %v2590 = vld [vmem:[%s2575 + $0x38] sm:$0xf]
        %v2591 = vld [vmem:[%s2575 + $0x3c] sm:$0xf]
        %s2592 = scalar_lea.vmem %s7, 1
        %v2593 = vld [vmem:[%s2592] sm:$0x1]
        %v2595 = vlaneseq
        %v2596 = vshrl.u32 %v2595, 7
        %v2597 = vsub.s32 0, %v2596
        %v2598 = vrot.slane %v2593, %v2597
        %v2616 = vunpack.c.l.b16 %v2576
        %v2617 = vunpack.c.l.b16 %v2577
        %v2618 = vunpack.c.l.b16 %v2578
        %v2619 = vunpack.c.l.b16 %v2579
        %v2620 = vunpack.c.l.b16 %v2580
        %v2621 = vunpack.c.l.b16 %v2581
        %v2622 = vunpack.c.l.b16 %v2582
        %v2623 = vunpack.c.l.b16 %v2583
        %v2624 = vunpack.c.l.b16 %v2584
        %v2625 = vunpack.c.l.b16 %v2585
        %v2626 = vunpack.c.l.b16 %v2586
        %v2627 = vunpack.c.l.b16 %v2587
        %v2628 = vunpack.c.l.b16 %v2588
        %v2629 = vunpack.c.l.b16 %v2589
        %v2630 = vunpack.c.l.b16 %v2590
        %v2631 = vunpack.c.l.b16 %v2591
        %v2632 = vpack.c.b16 %v2617, %v2616
        %v2633 = vpack.c.b16 %v2619, %v2618
        %v2634 = vpack.c.b16 %v2621, %v2620
        %v2635 = vpack.c.b16 %v2623, %v2622
        %v2636 = vpack.c.b16 %v2625, %v2624
        %v2637 = vpack.c.b16 %v2627, %v2626
        %v2638 = vpack.c.b16 %v2629, %v2628
        %v2639 = vpack.c.b16 %v2631, %v2630
        %2648 = vmatprep.subr.bf16.mxu0 0
        %2649 = vmatpush1.bf16.msra.mxu0 %v2639
        %2650 = vmatprep.subr.bf16.mxu0 0
        %2651 = vmatpush1.bf16.msra.mxu0 %v2638
        %2652 = vmatprep.subr.bf16.mxu0 0
        %2653 = vmatpush1.bf16.msra.mxu0 %v2637
        %2654 = vmatprep.subr.bf16.mxu0 0
        %2655 = vmatpush1.bf16.msra.mxu0 %v2636
        %2656 = vmatprep.subr.bf16.mxu0 0
        %2657 = vmatpush1.bf16.msra.mxu0 %v2635
        %2658 = vmatprep.subr.bf16.mxu0 0
        %2659 = vmatpush1.bf16.msra.mxu0 %v2634
        %2660 = vmatprep.subr.bf16.mxu0 0
        %2661 = vmatpush1.bf16.msra.mxu0 %v2633
        %2662 = vmatprep.subr.bf16.mxu0 0
        %2663 = vmatpush1.bf16.msra.mxu0 %v2632
        %2664 = vmatprep.subr.bf16.mxu0 0
        %2665 = vmatpush2.bf16.msra.mxu0 0
        %2666 = vmatprep.subr.bf16.mxu0 0
        %2667 = vmatpush2.bf16.msra.mxu0 0
        %2668 = vmatprep.subr.bf16.mxu0 0
        %2669 = vmatpush2.bf16.msra.mxu0 0
        %2670 = vmatprep.subr.bf16.mxu0 0
        %2671 = vmatpush2.bf16.msra.mxu0 0
        %2672 = vmatprep.subr.bf16.mxu0 0
        %2673 = vmatpush2.bf16.msra.mxu0 0
        %2674 = vmatprep.subr.bf16.mxu0 0
        %2675 = vmatpush2.bf16.msra.mxu0 0
        %2676 = vmatprep.subr.bf16.mxu0 0
        %2677 = vmatpush2.bf16.msra.mxu0 0
        %2678 = vmatprep.subr.bf16.mxu0 0
        %2679 = vmatpush2.bf16.msra.mxu0 0
        %2680 = vmatprep.mubr.bf16.mxu0 0
        %2681 = vmatmul.mubr.bf16.gmra.mxu0 %v2574
        %v2682 = vpop.f32.mrf.mxu0
        %v2683 = vadd.f32 %v2598, %v2682
        %v2684 = vpop.f32.mrf.mxu0
        %v2685 = vpop.f32.mrf.mxu0
        %v2686 = vpop.f32.mrf.mxu0
        %2687 = vdwg.mxu0
        %v2688 = vadd.f32 %v1839, %v2683
        %s2689 = scalar_lea.vmem %s8, 1
        %v2690 = vld [vmem:[%s2689] sm:$0x1]
        %s2691 = scalar_lea.vmem %s9, 1
        %v2692 = vld [vmem:[%s2691] sm:$0x1]
        %2693 = vadd.xlane.f32.xlu0 %v2688
        %v2694 = vpop.xlane.xlu0 %2693
        %v2695 = vmul.f32 %v2694, 0.03125
        %v2696 = vsub.f32 %v2688, %v2695
        %v2697 = vmul.f32 %v2696, %v702
        %v2698 = vmul.f32 %v2697, %v2697
        %2699 = vadd.xlane.f32.xlu0 %v2698
        %v2700 = vpop.xlane.xlu0 %2699
        %v2701 = vmul.f32 %v2700, 0.03125
        %v2702 = vadd.f32 %v2701, 1e-05
        %v2703 = vrsqrt.pop %v2702
        %v2704 = vmul.f32 %v2697, %v2703
        %v2706 = vlaneseq
        %v2707 = vshrl.u32 %v2706, 7
        %v2708 = vsub.s32 0, %v2707
        %v2709 = vrot.slane %v2690, %v2708
        %v2711 = vmul.f32 %v2704, %v2709
        %v2713 = vlaneseq
        %v2714 = vshrl.u32 %v2713, 7
        %v2715 = vsub.s32 0, %v2714
        %v2716 = vrot.slane %v2692, %v2715
        %v2718 = vadd.f32 %v2711, %v2716
        %v2719 = vpack.c.bf16 %v2718, %v2718
        %s2720 = scalar_lea.vmem [#allocation8], 64
        %v2721 = vld [vmem:[%s2720] sm:$0xf]
        %v2722 = vld [vmem:[%s2720 + $0x4] sm:$0xf]
        %v2723 = vld [vmem:[%s2720 + $0x8] sm:$0xf]
        %v2724 = vld [vmem:[%s2720 + $0xc] sm:$0xf]
        %v2725 = vld [vmem:[%s2720 + $0x10] sm:$0xf]
        %v2726 = vld [vmem:[%s2720 + $0x14] sm:$0xf]
        %v2727 = vld [vmem:[%s2720 + $0x18] sm:$0xf]
        %v2728 = vld [vmem:[%s2720 + $0x1c] sm:$0xf]
        %v2729 = vld [vmem:[%s2720 + $0x20] sm:$0xf]
        %v2730 = vld [vmem:[%s2720 + $0x24] sm:$0xf]
        %v2731 = vld [vmem:[%s2720 + $0x28] sm:$0xf]
        %v2732 = vld [vmem:[%s2720 + $0x2c] sm:$0xf]
        %v2733 = vld [vmem:[%s2720 + $0x30] sm:$0xf]
        %v2734 = vld [vmem:[%s2720 + $0x34] sm:$0xf]
        %v2735 = vld [vmem:[%s2720 + $0x38] sm:$0xf]
        %v2736 = vld [vmem:[%s2720 + $0x3c] sm:$0xf]
        %s2737 = scalar_lea.vmem %s11, 1
        %v2738 = vld [vmem:[%s2737] sm:$0x1]
        %v2740 = vlaneseq
        %v2741 = vshrl.u32 %v2740, 7
        %v2742 = vsub.s32 0, %v2741
        %v2743 = vrot.slane %v2738, %v2742
        %v2761 = vunpack.c.l.b16 %v2721
        %v2762 = vunpack.c.l.b16 %v2722
        %v2763 = vunpack.c.l.b16 %v2723
        %v2764 = vunpack.c.l.b16 %v2724
        %v2765 = vunpack.c.l.b16 %v2725
        %v2766 = vunpack.c.l.b16 %v2726
        %v2767 = vunpack.c.l.b16 %v2727
        %v2768 = vunpack.c.l.b16 %v2728
        %v2769 = vunpack.c.l.b16 %v2729
        %v2770 = vunpack.c.l.b16 %v2730
        %v2771 = vunpack.c.l.b16 %v2731
        %v2772 = vunpack.c.l.b16 %v2732
        %v2773 = vunpack.c.l.b16 %v2733
        %v2774 = vunpack.c.l.b16 %v2734
        %v2775 = vunpack.c.l.b16 %v2735
        %v2776 = vunpack.c.l.b16 %v2736
        %v2777 = vpack.c.b16 %v2762, %v2761
        %v2778 = vpack.c.b16 %v2764, %v2763
        %v2779 = vpack.c.b16 %v2766, %v2765
        %v2780 = vpack.c.b16 %v2768, %v2767
        %v2781 = vpack.c.b16 %v2770, %v2769
        %v2782 = vpack.c.b16 %v2772, %v2771
        %v2783 = vpack.c.b16 %v2774, %v2773
        %v2784 = vpack.c.b16 %v2776, %v2775
        %2793 = vmatprep.subr.bf16.mxu0 0
        %2794 = vmatpush1.bf16.msra.mxu0 %v2784
        %2795 = vmatprep.subr.bf16.mxu0 0
        %2796 = vmatpush1.bf16.msra.mxu0 %v2783
        %2797 = vmatprep.subr.bf16.mxu0 0
        %2798 = vmatpush1.bf16.msra.mxu0 %v2782
        %2799 = vmatprep.subr.bf16.mxu0 0
        %2800 = vmatpush1.bf16.msra.mxu0 %v2781
        %2801 = vmatprep.subr.bf16.mxu0 0
        %2802 = vmatpush1.bf16.msra.mxu0 %v2780
        %2803 = vmatprep.subr.bf16.mxu0 0
        %2804 = vmatpush1.bf16.msra.mxu0 %v2779
        %2805 = vmatprep.subr.bf16.mxu0 0
        %2806 = vmatpush1.bf16.msra.mxu0 %v2778
        %2807 = vmatprep.subr.bf16.mxu0 0
        %2808 = vmatpush1.bf16.msra.mxu0 %v2777
        %2809 = vmatprep.subr.bf16.mxu0 0
        %2810 = vmatpush2.bf16.msra.mxu0 0
        %2811 = vmatprep.subr.bf16.mxu0 0
        %2812 = vmatpush2.bf16.msra.mxu0 0
        %2813 = vmatprep.subr.bf16.mxu0 0
        %2814 = vmatpush2.bf16.msra.mxu0 0
        %2815 = vmatprep.subr.bf16.mxu0 0
        %2816 = vmatpush2.bf16.msra.mxu0 0
        %2817 = vmatprep.subr.bf16.mxu0 0
        %2818 = vmatpush2.bf16.msra.mxu0 0
        %2819 = vmatprep.subr.bf16.mxu0 0
        %2820 = vmatpush2.bf16.msra.mxu0 0
        %2821 = vmatprep.subr.bf16.mxu0 0
        %2822 = vmatpush2.bf16.msra.mxu0 0
        %2823 = vmatprep.subr.bf16.mxu0 0
        %2824 = vmatpush2.bf16.msra.mxu0 0
        %2825 = vmatprep.mubr.bf16.mxu0 0
        %2826 = vmatmul.mubr.bf16.gmra.mxu0 %v2719
        %v2827 = vpop.f32.mrf.mxu0
        %v2828 = vadd.f32 %v2743, %v2827
        %v2829 = vpop.f32.mrf.mxu0
        %v2830 = vpop.f32.mrf.mxu0
        %v2831 = vpop.f32.mrf.mxu0
        %2832 = vdwg.mxu0
        %v2833 = vmax.f32 %v2828, 0.0
        %v2834 = vpack.c.bf16 %v2833, %v2833
        %s2835 = scalar_lea.vmem [#allocation10], 64
        %v2836 = vld [vmem:[%s2835] sm:$0xf]
        %v2837 = vld [vmem:[%s2835 + $0x4] sm:$0xf]
        %v2838 = vld [vmem:[%s2835 + $0x8] sm:$0xf]
        %v2839 = vld [vmem:[%s2835 + $0xc] sm:$0xf]
        %v2840 = vld [vmem:[%s2835 + $0x10] sm:$0xf]
        %v2841 = vld [vmem:[%s2835 + $0x14] sm:$0xf]
        %v2842 = vld [vmem:[%s2835 + $0x18] sm:$0xf]
        %v2843 = vld [vmem:[%s2835 + $0x1c] sm:$0xf]
        %v2844 = vld [vmem:[%s2835 + $0x20] sm:$0xf]
        %v2845 = vld [vmem:[%s2835 + $0x24] sm:$0xf]
        %v2846 = vld [vmem:[%s2835 + $0x28] sm:$0xf]
        %v2847 = vld [vmem:[%s2835 + $0x2c] sm:$0xf]
        %v2848 = vld [vmem:[%s2835 + $0x30] sm:$0xf]
        %v2849 = vld [vmem:[%s2835 + $0x34] sm:$0xf]
        %v2850 = vld [vmem:[%s2835 + $0x38] sm:$0xf]
        %v2851 = vld [vmem:[%s2835 + $0x3c] sm:$0xf]
        %s2852 = scalar_lea.vmem %s13, 1
        %v2853 = vld [vmem:[%s2852] sm:$0x1]
        %v2855 = vlaneseq
        %v2856 = vshrl.u32 %v2855, 7
        %v2857 = vsub.s32 0, %v2856
        %v2858 = vrot.slane %v2853, %v2857
        %v2876 = vunpack.c.l.b16 %v2836
        %v2877 = vunpack.c.l.b16 %v2837
        %v2878 = vunpack.c.l.b16 %v2838
        %v2879 = vunpack.c.l.b16 %v2839
        %v2880 = vunpack.c.l.b16 %v2840
        %v2881 = vunpack.c.l.b16 %v2841
        %v2882 = vunpack.c.l.b16 %v2842
        %v2883 = vunpack.c.l.b16 %v2843
        %v2884 = vunpack.c.l.b16 %v2844
        %v2885 = vunpack.c.l.b16 %v2845
        %v2886 = vunpack.c.l.b16 %v2846
        %v2887 = vunpack.c.l.b16 %v2847
        %v2888 = vunpack.c.l.b16 %v2848
        %v2889 = vunpack.c.l.b16 %v2849
        %v2890 = vunpack.c.l.b16 %v2850
        %v2891 = vunpack.c.l.b16 %v2851
        %v2892 = vpack.c.b16 %v2877, %v2876
        %v2893 = vpack.c.b16 %v2879, %v2878
        %v2894 = vpack.c.b16 %v2881, %v2880
        %v2895 = vpack.c.b16 %v2883, %v2882
        %v2896 = vpack.c.b16 %v2885, %v2884
        %v2897 = vpack.c.b16 %v2887, %v2886
        %v2898 = vpack.c.b16 %v2889, %v2888
        %v2899 = vpack.c.b16 %v2891, %v2890
        %2908 = vmatprep.subr.bf16.mxu0 0
        %2909 = vmatpush1.bf16.msra.mxu0 %v2899
        %2910 = vmatprep.subr.bf16.mxu0 0
        %2911 = vmatpush1.bf16.msra.mxu0 %v2898
        %2912 = vmatprep.subr.bf16.mxu0 0
        %2913 = vmatpush1.bf16.msra.mxu0 %v2897
        %2914 = vmatprep.subr.bf16.mxu0 0
        %2915 = vmatpush1.bf16.msra.mxu0 %v2896
        %2916 = vmatprep.subr.bf16.mxu0 0
        %2917 = vmatpush1.bf16.msra.mxu0 %v2895
        %2918 = vmatprep.subr.bf16.mxu0 0
        %2919 = vmatpush1.bf16.msra.mxu0 %v2894
        %2920 = vmatprep.subr.bf16.mxu0 0
        %2921 = vmatpush1.bf16.msra.mxu0 %v2893
        %2922 = vmatprep.subr.bf16.mxu0 0
        %2923 = vmatpush1.bf16.msra.mxu0 %v2892
        %2924 = vmatprep.subr.bf16.mxu0 0
        %2925 = vmatpush2.bf16.msra.mxu0 0
        %2926 = vmatprep.subr.bf16.mxu0 0
        %2927 = vmatpush2.bf16.msra.mxu0 0
        %2928 = vmatprep.subr.bf16.mxu0 0
        %2929 = vmatpush2.bf16.msra.mxu0 0
        %2930 = vmatprep.subr.bf16.mxu0 0
        %2931 = vmatpush2.bf16.msra.mxu0 0
        %2932 = vmatprep.subr.bf16.mxu0 0
        %2933 = vmatpush2.bf16.msra.mxu0 0
        %2934 = vmatprep.subr.bf16.mxu0 0
        %2935 = vmatpush2.bf16.msra.mxu0 0
        %2936 = vmatprep.subr.bf16.mxu0 0
        %2937 = vmatpush2.bf16.msra.mxu0 0
        %2938 = vmatprep.subr.bf16.mxu0 0
        %2939 = vmatpush2.bf16.msra.mxu0 0
        %2940 = vmatprep.mubr.bf16.mxu0 0
        %2941 = vmatmul.mubr.bf16.gmra.mxu0 %v2834
        %v2942 = vpop.f32.mrf.mxu0
        %v2943 = vadd.f32 %v2858, %v2942
        %v2944 = vpop.f32.mrf.mxu0
        %v2945 = vpop.f32.mrf.mxu0
        %v2946 = vpop.f32.mrf.mxu0
        %2947 = vdwg.mxu0
        %v2948 = vadd.f32 %v2718, %v2943
        %s2949 = scalar_lea.vmem %s14, 1
        %v2950 = vld [vmem:[%s2949] sm:$0x1]
        %s2951 = scalar_lea.vmem %s15, 1
        %v2952 = vld [vmem:[%s2951] sm:$0x1]
        %2953 = vadd.xlane.f32.xlu0 %v2948
        %v2954 = vpop.xlane.xlu0 %2953
        %v2955 = vmul.f32 %v2954, 0.03125
        %v2956 = vsub.f32 %v2948, %v2955
        %v2957 = vmul.f32 %v2956, %v702
        %v2958 = vmul.f32 %v2957, %v2957
        %2959 = vadd.xlane.f32.xlu0 %v2958
        %v2960 = vpop.xlane.xlu0 %2959
        %v2961 = vmul.f32 %v2960, 0.03125
        %v2962 = vadd.f32 %v2961, 1e-05
        %v2963 = vrsqrt.pop %v2962
        %v2964 = vmul.f32 %v2957, %v2963
        %v2966 = vlaneseq
        %v2967 = vshrl.u32 %v2966, 7
        %v2968 = vsub.s32 0, %v2967
        %v2969 = vrot.slane %v2950, %v2968
        %v2971 = vmul.f32 %v2964, %v2969
        %v2973 = vlaneseq
        %v2974 = vshrl.u32 %v2973, 7
        %v2975 = vsub.s32 0, %v2974
        %v2976 = vrot.slane %v2952, %v2975
        %v2978 = vadd.f32 %v2971, %v2976
        %2979 = vst [vmem:[%s596] sm:$0xff] %v2978
        %s2980 = sand.u32 %s387, 1
        %s2981 = scalar_lea.sflag [#allocation4], %s2980
        %s2982 = sand.u32 %s387, 1
        %s2983 = smul.addr %s2982, 8
        %s2984 = scalar_lea.vmem [#allocation11], %s2983
        // Predicated region
        $region105: #{tpu_custom_call.1} parent=83 // pred_check
          %p2985 = pneg %p397
        $region106: #{tpu_custom_call.1} parent=83 // pred_check_branch
          %2987 = sbr.rel (%p2985) target = $region108
        $region107: #{tpu_custom_call.1} parent=83 // pred_region
          %s2989 = ssub.s32 128, 128
          %2990 = vsyncadd %s2981, %s2989
          %s2991 = smul.addr %s33, 128
          %s2992 = scalar_lea.hbm %s16, %s2991
          %s2994 = sshll.u32 %s2984, 4
          %s2995 = int_to_ptr.vmem [resolvable:$true] %s2994
          %2997 = dma.vmem_to_hbm [thread:$0]  %s2995, 128, %s2992, %s2981
        $region108: #{tpu_custom_call.1} parent=83 // pred_fallthru
          _
      $region84: #{tpu_custom_call.1} parent=5 // pred_fallthru
        _
      %p2998 = scmp.le.s32.totalorder 2, %s28
      // Predicated region
      $region109: #{tpu_custom_call.1} parent=5 // pred_check
        %p2999 = pneg %p2998
      $region110: #{tpu_custom_call.1} parent=5 // pred_check_branch
        %3001 = sbr.rel (%p2999) target = $region112
      $region111: #{tpu_custom_call.1} parent=5 // pred_region
        %s3002 = ssub.s32 %s28, 2
        // Predicated region
        $region113: #{tpu_custom_call.1} parent=111 // pred_check
          %p3003 = pneg %p403
        $region114: #{tpu_custom_call.1} parent=111 // pred_check_branch
          %3005 = sbr.rel (%p3003) target = $region116
        $region115: #{tpu_custom_call.1} parent=111 // pred_region
          %s3006 = sand.u32 %s388, 1
          %s3007 = scalar_lea.sflag [#allocation4], %s3006
          %s3008 = sand.u32 %s388, 1
          %s3009 = smul.addr %s3008, 8
          %s3010 = scalar_lea.vmem [#allocation11], %s3009
          %3011 = dma.done %s3007, 128
        $region116: #{tpu_custom_call.1} parent=111 // pred_fallthru
          _
      $region112: #{tpu_custom_call.1} parent=5 // pred_fallthru
        _
    $region6: #{tpu_custom_call.1} parent=1 // loop_footer
      %s32 = sadd.s32 1, %s28
    $region7: #{tpu_custom_call.1} parent=1 // loop_footer_branch
      %27 = sbr.rel target = $region3
    $region8: #{tpu_custom_call.1} parent=1 // loop_exit
      _
    %3012 = vsyncpa [#allocation3], 1
    %s3013 = scalar_lea.sflag [#allocation3], 1
    %3014 = vsyncpa %s3013, 1
    %3015 = vsyncpa [#allocation6], 1
    %3016 = vsyncpa [#allocation9], 1
    %3017 = vsyncpa [#allocation4], 1
    %s3018 = scalar_lea.sflag [#allocation4], 1
    %3019 = vsyncpa %s3018, 1

</llo_original>
